<compile_context>
chip_gen: v7x
topology: tpu7x:2x2x1
jax: 0.10.0
libtpu: 0.0.40
codegen_flags: <defaults>
</compile_context>

<pallas_src>
import functools

import numpy as np
import jax
import jax.numpy as jnp
from jax.experimental import pallas as pl
from jax.experimental.pallas import tpu as pltpu

_BN_EPS = 1e-5
_LANE = 128


def _round_up(x: int, m: int) -> int:
    return (x + m - 1) // m * m


def _pad_to(a, shape):
    pads = [(0, t - s) for s, t in zip(a.shape, shape)]
    if all(p == (0, 0) for p in pads):
        return a
    return jnp.pad(a, pads)


@functools.lru_cache(maxsize=None)
def _vmem_limit_bytes() -> int:
    # Generation-aware VMEM budget (v5e/v6e: 128 MiB, v7x: 64 MiB per core).
    try:
        cap = int(pltpu.get_tpu_info().vmem_capacity_bytes)
    except Exception:
        cap = 64 * 1024 * 1024
    return min(cap * 3 // 4, 96 * 1024 * 1024)


# ---------------------------------------------------------------------------
# Fused  act(X @ W + bias [+ residual])   Pallas matmul kernel (1x1 convs)
# ---------------------------------------------------------------------------

def _mm_kernel_1k(x_ref, w_ref, b_ref, *rest, apply_relu, has_res):
    if has_res:
        res_ref, o_ref = rest
    else:
        (o_ref,) = rest
    y = jnp.dot(x_ref[...], w_ref[...], preferred_element_type=jnp.float32)
    y = y + b_ref[...]
    if has_res:
        y = y + res_ref[...].astype(jnp.float32)
    if apply_relu:
        y = jnp.maximum(y, 0.0)
    o_ref[...] = y.astype(o_ref.dtype)


def _mm_kernel_multik(x_ref, w_ref, b_ref, *rest, apply_relu, has_res):
    if has_res:
        res_ref, o_ref, acc_ref = rest
    else:
        o_ref, acc_ref = rest
    k = pl.program_id(2)
    prod = jnp.dot(x_ref[...], w_ref[...], preferred_element_type=jnp.float32)

    @pl.when(k == 0)
    def _():
        acc_ref[...] = prod

    @pl.when(k > 0)
    def _():
        acc_ref[...] += prod

    @pl.when(k == pl.num_programs(2) - 1)
    def _():
        y = acc_ref[...] + b_ref[...]
        if has_res:
            y = y + res_ref[...].astype(jnp.float32)
        if apply_relu:
            y = jnp.maximum(y, 0.0)
        o_ref[...] = y.astype(o_ref.dtype)


def matmul_bias_act(x, w, bias, residual=None, *, apply_relu=True, out_dtype=None):
    """out = act(x @ w + bias [+ residual]).

    x:(M,K), w:(K,N) with BN scale pre-folded into the columns, bias:(N,).
    Operands are cast to bf16 (MXU native on v5e/v6e/v7x); accumulation and the
    epilogue stay in f32.  Returns (M, round_up(N,128)) so the padded channel
    layout can be chained; the caller slices [:, :N] only at the very end.
    """
    M, K = x.shape
    K2, N = w.shape
    assert K == K2, (K, K2)
    out_dtype = out_dtype or x.dtype
    has_res = residual is not None

    n_pad = _round_up(N, _LANE)
    tn = 256 if n_pad % 256 == 0 else 128          # 256-wide MXU on v6e/v7x

    if M <= 256:
        tm = _round_up(M, 8)
    elif M <= 4096:
        tm = 256                                    # >=2 row tiles for megacore
    else:
        tm = 512
    m_pad = _round_up(M, tm)

    if K <= 2048:
        tk, k_pad, multi_k = K, K, False            # single reduction step
    else:
        tk, multi_k = 512, True
        k_pad = _round_up(K, tk)

    xp = _pad_to(x.astype(jnp.bfloat16), (m_pad, k_pad))
    wp = _pad_to(w.astype(jnp.bfloat16), (k_pad, n_pad))
    bp = _pad_to(bias.astype(jnp.float32).reshape(1, N), (1, n_pad))
    args = [xp, wp, bp]
    if has_res:
        args.append(_pad_to(residual.astype(jnp.float32), (m_pad, n_pad)))

    grid_mn = (m_pad // tm, n_pad // tn)
    vmem = _vmem_limit_bytes()

    if not multi_k:
        in_specs = [
            pl.BlockSpec((tm, tk), lambda i, j: (i, 0)),
            pl.BlockSpec((tk, tn), lambda i, j: (0, j)),
            pl.BlockSpec((1, tn), lambda i, j: (0, j)),
        ]
        if has_res:
            in_specs.append(pl.BlockSpec((tm, tn), lambda i, j: (i, j)))
        out = pl.pallas_call(
            functools.partial(_mm_kernel_1k, apply_relu=apply_relu, has_res=has_res),
            out_shape=jax.ShapeDtypeStruct((m_pad, n_pad), out_dtype),
            grid_spec=pltpu.PrefetchScalarGridSpec(
                num_scalar_prefetch=0,
                grid=grid_mn,
                in_specs=in_specs,
                out_specs=pl.BlockSpec((tm, tn), lambda i, j: (i, j)),
            ),
            compiler_params=pltpu.CompilerParams(
                dimension_semantics=("parallel", "parallel"),
                vmem_limit_bytes=vmem),
        )(*args)
    else:
        in_specs = [
            pl.BlockSpec((tm, tk), lambda i, j, k: (i, k)),
            pl.BlockSpec((tk, tn), lambda i, j, k: (k, j)),
            pl.BlockSpec((1, tn), lambda i, j, k: (0, j)),
        ]
        if has_res:
            in_specs.append(pl.BlockSpec((tm, tn), lambda i, j, k: (i, j)))
        out = pl.pallas_call(
            functools.partial(_mm_kernel_multik, apply_relu=apply_relu, has_res=has_res),
            out_shape=jax.ShapeDtypeStruct((m_pad, n_pad), out_dtype),
            grid_spec=pltpu.PrefetchScalarGridSpec(
                num_scalar_prefetch=0,
                grid=grid_mn + (k_pad // tk,),
                in_specs=in_specs,
                out_specs=pl.BlockSpec((tm, tn), lambda i, j, k: (i, j)),
                scratch_shapes=[pltpu.VMEM((tm, tn), jnp.float32)],
            ),
            compiler_params=pltpu.CompilerParams(
                dimension_semantics=("parallel", "parallel", "arbitrary"),
                vmem_limit_bytes=vmem),
        )(*args)
    return out[:M] if m_pad != M else out


# ---------------------------------------------------------------------------
# 3x3 conv (padding=1, stride 1/2) + bias + ReLU  — tap-shift Pallas kernel
# ---------------------------------------------------------------------------

def _conv3x3_kernel(x_ref, w_ref, b_ref, o_ref, *, flat_taps, apply_relu):
    # x_ref: (n_phase, n_rows, Cp)   w_ref: (9, Cp, tc)   b_ref: (1, tc)
    # o_ref: (1, P, tc) where row p = ho*Wq + wo over the padded output grid.
    P = o_ref.shape[1]
    acc = jnp.zeros((P, o_ref.shape[2]), jnp.float32)
    for t, (phase, off) in enumerate(flat_taps):
        acc = acc + jnp.dot(x_ref[phase, off:off + P, :], w_ref[t],
                            preferred_element_type=jnp.float32)
    y = acc + b_ref[...]
    if apply_relu:
        y = jnp.maximum(y, 0.0)
    o_ref[0] = y.astype(o_ref.dtype)


def conv3x3_bias_relu(y_nhwc, w9, bias, stride, *, apply_relu=True,
                      out_dtype=jnp.bfloat16):
    """3x3 conv (padding=1) + bias + ReLU, no HBM-materialised im2col.

    y_nhwc: (B,H,W,Cp) with Cp % 128 == 0 (zero-padded channels)
    w9:     (9, Cp, Cout_p), tap-major (dy*3+dx), BN scale pre-folded
    bias:   (Cout_p,)
    Returns (B, Ho, Wo, Cout_p).
    """
    B, H, W, Cp = y_nhwc.shape
    t9, Cp2, Cout_p = w9.shape
    assert t9 == 9 and Cp2 == Cp and Cp % _LANE == 0 and Cout_p % _LANE == 0
    s = stride
    Ho = (H - 1) // s + 1
    Wo = (W - 1) // s + 1
    y_nhwc = y_nhwc.astype(jnp.bfloat16)

    if s == 1:
        # Single phase: padded image flattened row-major over (H+3, W+2);
        # the extra bottom row keeps every tap's shifted window in bounds.
        xq = jnp.pad(y_nhwc, ((0, 0), (1, 2), (1, 1), (0, 0)))
        n_phase, Hq, Wq = 1, H + 3, W + 2
        xq = xq.reshape(B, Hq * Wq, Cp)
        taps = [(0, dy * Wq + dx) for dy in range(3) for dx in range(3)]
    elif s == 2:
        # Even/odd phase de-interleave so every tap is a contiguous row shift.
        ph, pw = (H + 2) % 2, (W + 2) % 2
        xp = jnp.pad(y_nhwc, ((0, 0), (1, 3 + ph), (1, 1 + pw), (0, 0)))
        Hp, Wp = H + 4 + ph, W + 2 + pw
        n_phase, Hq, Wq = 4, Hp // 2, Wp // 2
        phases = [xp[:, rh::2, rw::2, :] for rh in range(2) for rw in range(2)]
        xq = jnp.stack(phases, axis=1).reshape(B * n_phase, Hq * Wq, Cp)
        taps = [((dy % 2) * 2 + (dx % 2), (dy // 2) * Wq + (dx // 2))
                for dy in range(3) for dx in range(3)]
    else:
        raise NotImplementedError("stride must be 1 or 2")

    P = Ho * Wq                      # padded output rows (cols Wo..Wq-1 dropped)
    n_rows = Hq * Wq
    assert max(off for _, off in taps) + P <= n_rows

    tcout = 256 if Cout_p % 256 == 0 else 128

    out = pl.pallas_call(
        functools.partial(_conv3x3_kernel, flat_taps=taps, apply_relu=apply_relu),
        out_shape=jax.ShapeDtypeStruct((B, P, Cout_p), out_dtype),
        grid_spec=pltpu.PrefetchScalarGridSpec(
            num_scalar_prefetch=0,
            grid=(B, Cout_p // tcout),
            in_specs=[
                pl.BlockSpec((n_phase, n_rows, Cp), lambda b, j: (b, 0, 0)),
                pl.BlockSpec((9, Cp, tcout), lambda b, j: (0, 0, j)),
                pl.BlockSpec((1, tcout), lambda b, j: (0, j)),
            ],
            out_specs=pl.BlockSpec((1, P, tcout), lambda b, j: (b, 0, j)),
        ),
        compiler_params=pltpu.CompilerParams(
            dimension_semantics=("parallel", "parallel"),
            vmem_limit_bytes=_vmem_limit_bytes()),
    )(xq, w9.astype(jnp.bfloat16), bias.astype(jnp.float32).reshape(1, Cout_p))

    return out.reshape(B, Ho, Wq, Cout_p)[:, :, :Wo, :]


# ---------------------------------------------------------------------------
# Small JAX glue
# ---------------------------------------------------------------------------

def _avg_pool_2x2(x_nchw):
    B, C, H, W = x_nchw.shape
    Ho, Wo = H // 2, W // 2
    xt = x_nchw[:, :, :Ho * 2, :Wo * 2].reshape(B, C, Ho, 2, Wo, 2)
    return xt.mean(axis=(3, 5))


def _init_bn(key, c):
    k1, k2, k3, k4 = jax.random.split(key, 4)
    return {
        "gamma": jax.random.uniform(k1, (c,), jnp.float32, 0.5, 1.5),
        "beta": 0.1 * jax.random.normal(k2, (c,), jnp.float32),
        "mean": 0.1 * jax.random.normal(k3, (c,), jnp.float32),
        "var": jax.random.uniform(k4, (c,), jnp.float32, 0.5, 1.5),
    }


def _fold_bn(bn, conv_bias=None, eps=_BN_EPS):
    inv = bn["gamma"] / jnp.sqrt(bn["var"] + eps)
    bias = bn["beta"] - bn["mean"] * inv
    if conv_bias is not None:
        bias = bias + conv_bias * inv
    return inv, bias


# ---------------------------------------------------------------------------
# The Bottleneck module (Pallas forward)
# ---------------------------------------------------------------------------

class PallasBottleneck:
    expansion = 4

    def __init__(self, in_planes, planes, stride=1, heads=4, mhsa=False,
                 resolution=None, *, key):
        self.in_planes = in_planes
        self.planes = planes
        self.stride = stride
        self.heads = heads
        self.mhsa = mhsa
        self.resolution = resolution
        self.has_shortcut = (stride != 1) or (in_planes != self.expansion * planes)
        self.p = self._init_params(key)
        self._fwd = jax.jit(self._forward)

    def _init_params(self, key):
        in_planes, planes, heads = self.in_planes, self.planes, self.heads
        cout = self.expansion * planes
        kit = iter(jax.random.split(key, 24))
        nk = lambda: next(kit)

        def convw(k, co, ci, kh, kw):
            return jax.random.normal(k, (co, ci, kh, kw), jnp.float32) / np.sqrt(ci * kh * kw)

        p = {}
        p["w1"] = convw(nk(), planes, in_planes, 1, 1)
        p["bn1"] = _init_bn(nk(), planes)
        if not self.mhsa:
            p["w2"] = convw(nk(), planes, planes, 3, 3)
        else:
            d = planes // heads
            w_res, h_res = int(self.resolution[0]), int(self.resolution[1])
            p["wq"] = convw(nk(), planes, planes, 1, 1)
            p["bq"] = 0.1 * jax.random.normal(nk(), (planes,), jnp.float32)
            p["wk"] = convw(nk(), planes, planes, 1, 1)
            p["bk"] = 0.1 * jax.random.normal(nk(), (planes,), jnp.float32)
            p["wv"] = convw(nk(), planes, planes, 1, 1)
            p["bv"] = 0.1 * jax.random.normal(nk(), (planes,), jnp.float32)
            p["rel_h"] = jax.random.normal(nk(), (1, heads, d, 1, h_res), jnp.float32)
            p["rel_w"] = jax.random.normal(nk(), (1, heads, d, w_res, 1), jnp.float32)
        p["bn2"] = _init_bn(nk(), planes)
        p["w3"] = convw(nk(), cout, planes, 1, 1)
        p["bn3"] = _init_bn(nk(), cout)
        if self.has_shortcut:
            p["ws"] = convw(nk(), cout, in_planes, 1, 1)
            p["bs"] = 0.1 * jax.random.normal(nk(), (cout,), jnp.float32)
            p["bns"] = _init_bn(nk(), cout)
        return p

    def __call__(self, x):
        return self._fwd(x)

    def _forward(self, x):
        p = self.p
        planes, stride = self.planes, self.stride
        cout = self.expansion * planes
        B, C, H, W = x.shape
        p_pad = _round_up(planes, _LANE)
        cout_pad = _round_up(cout, _LANE)

        xh = jnp.transpose(x, (0, 2, 3, 1))                      # NHWC
        x_rows = xh.reshape(B * H * W, C)

        # conv1 (1x1) + bn1 + relu — fused Pallas matmul, bf16 operands.
        s1, b1 = _fold_bn(p["bn1"])
        w1 = p["w1"].reshape(planes, C).T * s1[None, :]
        y1 = matmul_bias_act(x_rows, w1, b1, apply_relu=True,
                             out_dtype=jnp.bfloat16)             # (B*H*W, p_pad)

        # conv2: 3x3 conv (Pallas tap-shift kernel) OR MHSA (+AvgPool).
        s2, b2 = _fold_bn(p["bn2"])
        if not self.mhsa:
            w2 = jnp.transpose(p["w2"], (2, 3, 1, 0)).reshape(9, planes, planes)
            w2 = _pad_to(w2 * s2[None, None, :], (9, p_pad, p_pad))
            y2_nhwc = conv3x3_bias_relu(y1.reshape(B, H, W, p_pad), w2,
                                        _pad_to(b2, (p_pad,)), stride)
            Ho, Wo = y2_nhwc.shape[1], y2_nhwc.shape[2]
            y2 = y2_nhwc.reshape(B * Ho * Wo, p_pad)
        else:
            att = self._mhsa(y1, B, H, W)                        # (B, planes, H, W)
            if stride == 2:
                att = _avg_pool_2x2(att)
            Ho, Wo = att.shape[2], att.shape[3]
            y2h = jnp.transpose(att, (0, 2, 3, 1)).reshape(B * Ho * Wo, planes)
            # TODO(synk): bn2+relu on the MHSA branch stays in plain JAX (the attention
            #             core itself is plain JAX, see _mhsa).
            y2 = jnp.maximum(y2h * s2[None, :] + b2[None, :], 0.0)

        # Shortcut path.
        if self.has_shortcut:
            ss, bs = _fold_bn(p["bns"], conv_bias=p["bs"])
            ws = p["ws"].reshape(cout, C).T * ss[None, :]
            if stride != 1:
                # TODO(synk): the ::stride subsample is a JAX gather; it could be folded
                #             into the projection kernel's DMA instead of an HBM copy.
                xs = xh[:, ::stride, ::stride, :].reshape(B * Ho * Wo, C)
            else:
                xs = x_rows
            sc = matmul_bias_act(xs, ws, bs, apply_relu=False,
                                 out_dtype=jnp.float32)          # (rows, cout_pad)
        else:
            sc = _pad_to(x_rows.astype(jnp.float32), (B * H * W, cout_pad))

        # conv3 (1x1) + bn3 + residual add + relu — single fused Pallas pass.
        s3, b3 = _fold_bn(p["bn3"])
        w3 = p["w3"].reshape(cout, planes).T * s3[None, :]       # (planes, cout)
        w3 = _pad_to(w3, (y2.shape[1], cout))
        y3 = matmul_bias_act(y2, w3, b3, residual=sc, apply_relu=True,
                             out_dtype=x.dtype)                  # (rows, cout_pad)

        out = y3[:, :cout].reshape(B, Ho, Wo, cout)
        return jnp.transpose(out, (0, 3, 1, 2))

    def _mhsa(self, y1_rows, B, H, W):
        """y1_rows: (B*H*W, p_pad) bf16 with zero-padded channels."""
        p = self.p
        planes, heads = self.planes, self.heads
        d = planes // heads
        HW = H * W
        kdim = y1_rows.shape[1]

        # Fused q/k/v projection: one matmul over [wq | wk | wv].
        wq = p["wq"].reshape(planes, planes).T
        wk = p["wk"].reshape(planes, planes).T
        wv = p["wv"].reshape(planes, planes).T
        w_qkv = _pad_to(jnp.concatenate([wq, wk, wv], axis=1), (kdim, 3 * planes))
        b_qkv = jnp.concatenate([p["bq"], p["bk"], p["bv"]])
        qkv = matmul_bias_act(y1_rows, w_qkv, b_qkv, apply_relu=False,
                              out_dtype=jnp.float32)

        def to_bhdn(t):   # PyTorch .view(B, heads, d, H*W) on NCHW data
            return jnp.transpose(t.reshape(B, H, W, planes),
                                 (0, 3, 1, 2)).reshape(B, heads, d, HW)

        q = to_bhdn(qkv[:, 0:planes])
        k = to_bhdn(qkv[:, planes:2 * planes])
        v = to_bhdn(qkv[:, 2 * planes:3 * planes])

        rel = (p["rel_h"] + p["rel_w"]).reshape(heads, d, HW)
        # TODO(synk): the attention core (scores + softmax + PV) stays in plain JAX; a
        #             flash-attention Pallas kernel would avoid materialising the
        #             (B, heads, HW, HW) score tensor for real BoTNet resolutions.
        content_content = jnp.einsum("bhdn,bhdm->bhnm", q, k)
        content_position = jnp.einsum("hdn,bhdm->bhnm", rel, q)
        att = jax.nn.softmax(content_content + content_position, axis=-1)
        out = jnp.einsum("bhdm,bhnm->bhdn", v, att)
        return out.reshape(B, planes, H, W)


# ---------------------------------------------------------------------------
# Pure-JAX reference (mirrors the PyTorch forward with lax.conv)
# ---------------------------------------------------------------------------

def _bn_ref(y, bn, eps=_BN_EPS):
    inv = bn["gamma"] / jnp.sqrt(bn["var"] + eps)
    return y * inv[None, :, None, None] + (bn["beta"] - bn["mean"] * inv)[None, :, None, None]


def _conv_ref(y, w, stride=1, padding=0, bias=None):
    out = jax.lax.conv_general_dilated(
        y, w, window_strides=(stride, stride),
        padding=[(padding, padding), (padding, padding)],
        dimension_numbers=("NCHW", "OIHW", "NCHW"))
    if bias is not None:
        out = out + bias[None, :, None, None]
    return out


def _ref_mhsa(x, module):
    p = module.p
    B, C, H, W = x.shape
    heads, d, HW = module.heads, C // module.heads, H * W
    q = _conv_ref(x, p["wq"], bias=p["bq"]).reshape(B, heads, d, HW)
    k = _conv_ref(x, p["wk"], bias=p["bk"]).reshape(B, heads, d, HW)
    v = _conv_ref(x, p["wv"], bias=p["bv"]).reshape(B, heads, d, HW)
    rel = (p["rel_h"] + p["rel_w"]).reshape(heads, d, HW)
    energy = jnp.einsum("bhdn,bhdm->bhnm", q, k) + jnp.einsum("hdn,bhdm->bhnm", rel, q)
    att = jax.nn.softmax(energy, axis=-1)
    return jnp.einsum("bhdm,bhnm->bhdn", v, att).reshape(B, C, H, W)


def _ref_bottleneck(x, module):
    p = module.p
    out = jax.nn.relu(_bn_ref(_conv_ref(x, p["w1"]), p["bn1"]))
    if not module.mhsa:
        out = _conv_ref(out, p["w2"], stride=module.stride, padding=1)
    else:
        out = _ref_mhsa(out, module)
        if module.stride == 2:
            out = _avg_pool_2x2(out)
    out = jax.nn.relu(_bn_ref(out, p["bn2"]))
    out = _bn_ref(_conv_ref(out, p["w3"]), p["bn3"])
    if module.has_shortcut:
        sc = _bn_ref(_conv_ref(x, p["ws"], stride=module.stride, bias=p["bs"]), p["bns"])
    else:
        sc = x
    return jax.nn.relu(out + sc)


# ---------------------------------------------------------------------------
# Smoke tests
# ---------------------------------------------------------------------------

if __name__ == "__main__":
    root = jax.random.PRNGKey(0)
    km_a, km_b, km_c, kx_a, kx_b, kx_c = jax.random.split(root, 6)

    def _check(mod, x, tol=5e-2):
        out = jax.block_until_ready(mod(x))
        ref = jax.block_until_ready(_ref_bottleneck(x, mod))
        np.testing.assert_allclose(np.asarray(out), np.asarray(ref), rtol=tol, atol=tol)

    # A: plain conv path, identity shortcut (stride=1, in_planes == 4*planes)
    x_a = jax.random.normal(kx_a, (2, 16, 16, 16), jnp.float32)
    _check(PallasBottleneck(16, 4, stride=1, key=km_a), x_a)

    # B: plain conv path, stride-2 downsample + projection shortcut
    x_b = jax.random.normal(kx_b, (2, 8, 16, 16), jnp.float32)
    _check(PallasBottleneck(8, 8, stride=2, key=km_b), x_b)

    # C: MHSA path (BoTNet block) with stride-2 AvgPool + projection shortcut
    x_c = jax.random.normal(kx_c, (2, 8, 16, 16), jnp.float32)
    _check(PallasBottleneck(8, 8, stride=2, heads=4, mhsa=True,
                            resolution=(16, 16), key=km_c), x_c)

    print("KERNEL_OK")
</pallas_src>

<mosaic_0001>
module attributes {stable_mosaic.version = 11 : i64} {
  func.func @_mm_kernel_1k(%arg0: i32, %arg1: i32, %arg2: memref<256x16xbf16, #tpu.memory_space<vmem>>, %arg3: memref<16x128xbf16, #tpu.memory_space<vmem>>, %arg4: memref<1x128xf32, #tpu.memory_space<vmem>>, %arg5: memref<256x128xbf16, #tpu.memory_space<vmem>>) attributes {dimension_semantics = [#tpu.dimension_semantics<parallel>, #tpu.dimension_semantics<parallel>], iteration_bounds = array<i64: 2, 1>, scalar_prefetch = 0 : i64, scratch_operands = 0 : i64, tpu.core_type = #tpu.core_type<tc>, window_params = [{transform_indices = @transform_0, window_bounds = array<i64: 256, 16>}, {transform_indices = @transform_1, window_bounds = array<i64: 16, 128>}, {transform_indices = @transform_2, window_bounds = array<i64: 1, 128>}, {transform_indices = @transform_3, window_bounds = array<i64: 256, 128>}]} {
    %c0 = arith.constant 0 : index
    %c0_0 = arith.constant 0 : index
    %0 = vector.load %arg2[%c0, %c0_0] : memref<256x16xbf16, #tpu.memory_space<vmem>>, vector<256x16xbf16>
    %c0_1 = arith.constant 0 : index
    %c0_2 = arith.constant 0 : index
    %1 = vector.load %arg3[%c0_1, %c0_2] : memref<16x128xbf16, #tpu.memory_space<vmem>>, vector<16x128xbf16>
    %cst = arith.constant dense<0.000000e+00> : vector<256x128xf32>
    %2 = tpu.matmul %0, %1, %cst {dimension_numbers = #tpu.dot_dimension_numbers<[1], [0], [0], [1], [0, 0, 1, 1], [], []>} : vector<256x16xbf16>, vector<16x128xbf16>, vector<256x128xf32> -> vector<256x128xf32>
    %c0_3 = arith.constant 0 : index
    %c0_4 = arith.constant 0 : index
    %3 = vector.load %arg4[%c0_3, %c0_4] : memref<1x128xf32, #tpu.memory_space<vmem>>, vector<1x128xf32>
    %4 = vector.broadcast %3 : vector<1x128xf32> to vector<256x128xf32>
    %5 = arith.addf %2, %4 : vector<256x128xf32>
    %cst_5 = arith.constant 0.000000e+00 : f32
    %6 = vector.broadcast %cst_5 : f32 to vector<256x128xf32>
    %7 = arith.maximumf %5, %6 : vector<256x128xf32>
    %8 = arith.truncf %7 : vector<256x128xf32> to vector<256x128xbf16>
    %c0_6 = arith.constant 0 : index
    %c0_7 = arith.constant 0 : index
    %9 = vector.load %arg5[%c0_6, %c0_7] : memref<256x128xbf16, #tpu.memory_space<vmem>>, vector<256x128xbf16>
    tpu.vector_store %arg5[%c0_6, %c0_7], %8 {strides = array<i32>} : memref<256x128xbf16, #tpu.memory_space<vmem>>, vector<256x128xbf16>,
    return
  }
  func.func @transform_0(%arg0: i32, %arg1: i32) -> (i32, i32) {
    %c0_i32 = arith.constant 0 : i32
    %c0_i32_0 = arith.constant 0 : i32
    return %arg0, %c0_i32 : i32, i32
  }
  func.func @transform_1(%arg0: i32, %arg1: i32) -> (i32, i32) {
    %c0_i32 = arith.constant 0 : i32
    %c0_i32_0 = arith.constant 0 : i32
    return %c0_i32, %arg1 : i32, i32
  }
  func.func @transform_2(%arg0: i32, %arg1: i32) -> (i32, i32) {
    %c0_i32 = arith.constant 0 : i32
    %c0_i32_0 = arith.constant 0 : i32
    return %c0_i32, %arg1 : i32, i32
  }
  func.func @transform_3(%arg0: i32, %arg1: i32) -> (i32, i32) {
    %c0_i32 = arith.constant 0 : i32
    return %arg0, %arg1 : i32, i32
  }
}

module attributes {stable_mosaic.version = 11 : i64} {
  func.func @_conv3x3_kernel(%arg0: i32, %arg1: i32, %arg2: memref<1x342x128xbf16, #tpu.memory_space<vmem>>, %arg3: memref<9x128x128xbf16, #tpu.memory_space<vmem>>, %arg4: memref<1x128xf32, #tpu.memory_space<vmem>>, %arg5: memref<1x288x128xbf16, #tpu.memory_space<vmem>>) attributes {dimension_semantics = [#tpu.dimension_semantics<parallel>, #tpu.dimension_semantics<parallel>], iteration_bounds = array<i64: 2, 1>, scalar_prefetch = 0 : i64, scratch_operands = 0 : i64, tpu.core_type = #tpu.core_type<tc>, window_params = [{transform_indices = @transform_0, window_bounds = array<i64: 1, 342, 128>}, {transform_indices = @transform_1, window_bounds = array<i64: 9, 128, 128>}, {transform_indices = @transform_2, window_bounds = array<i64: 1, 128>}, {transform_indices = @transform_3, window_bounds = array<i64: 1, 288, 128>}]} {
    %cst = arith.constant 0.000000e+00 : f32
    %0 = vector.broadcast %cst : f32 to vector<288x128xf32>
    %c0 = arith.constant 0 : index
    %c0_0 = arith.constant 0 : index
    %c0_1 = arith.constant 0 : index
    %1 = vector.load %arg2[%c0, %c0_0, %c0_1] : memref<1x342x128xbf16, #tpu.memory_space<vmem>>, vector<1x288x128xbf16>
    %2 = vector.shape_cast %1 : vector<1x288x128xbf16> to vector<288x128xbf16>
    %c0_2 = arith.constant 0 : index
    %c0_3 = arith.constant 0 : index
    %c0_4 = arith.constant 0 : index
    %3 = vector.load %arg3[%c0_2, %c0_3, %c0_4] : memref<9x128x128xbf16, #tpu.memory_space<vmem>>, vector<1x128x128xbf16>
    %4 = vector.shape_cast %3 : vector<1x128x128xbf16> to vector<128x128xbf16>
    %cst_5 = arith.constant dense<0.000000e+00> : vector<288x128xf32>
    %5 = tpu.matmul %2, %4, %cst_5 {dimension_numbers = #tpu.dot_dimension_numbers<[1], [0], [0], [1], [0, 0, 1, 1], [], []>} : vector<288x128xbf16>, vector<128x128xbf16>, vector<288x128xf32> -> vector<288x128xf32>
    %6 = arith.addf %0, %5 : vector<288x128xf32>
    %c0_6 = arith.constant 0 : index
    %c1 = arith.constant 1 : index
    %c0_7 = arith.constant 0 : index
    %7 = vector.load %arg2[%c0_6, %c1, %c0_7] : memref<1x342x128xbf16, #tpu.memory_space<vmem>>, vector<1x288x128xbf16>
    %8 = vector.shape_cast %7 : vector<1x288x128xbf16> to vector<288x128xbf16>
    %c1_8 = arith.constant 1 : index
    %c0_9 = arith.constant 0 : index
    %c0_10 = arith.constant 0 : index
    %9 = vector.load %arg3[%c1_8, %c0_9, %c0_10] : memref<9x128x128xbf16, #tpu.memory_space<vmem>>, vector<1x128x128xbf16>
    %10 = vector.shape_cast %9 : vector<1x128x128xbf16> to vector<128x128xbf16>
    %cst_11 = arith.constant dense<0.000000e+00> : vector<288x128xf32>
    %11 = tpu.matmul %8, %10, %cst_11 {dimension_numbers = #tpu.dot_dimension_numbers<[1], [0], [0], [1], [0, 0, 1, 1], [], []>} : vector<288x128xbf16>, vector<128x128xbf16>, vector<288x128xf32> -> vector<288x128xf32>
    %12 = arith.addf %6, %11 : vector<288x128xf32>
    %c0_12 = arith.constant 0 : index
    %c2 = arith.constant 2 : index
    %c0_13 = arith.constant 0 : index
    %13 = vector.load %arg2[%c0_12, %c2, %c0_13] : memref<1x342x128xbf16, #tpu.memory_space<vmem>>, vector<1x288x128xbf16>
    %14 = vector.shape_cast %13 : vector<1x288x128xbf16> to vector<288x128xbf16>
    %c2_14 = arith.constant 2 : index
    %c0_15 = arith.constant 0 : index
    %c0_16 = arith.constant 0 : index
    %15 = vector.load %arg3[%c2_14, %c0_15, %c0_16] : memref<9x128x128xbf16, #tpu.memory_space<vmem>>, vector<1x128x128xbf16>
    %16 = vector.shape_cast %15 : vector<1x128x128xbf16> to vector<128x128xbf16>
    %cst_17 = arith.constant dense<0.000000e+00> : vector<288x128xf32>
    %17 = tpu.matmul %14, %16, %cst_17 {dimension_numbers = #tpu.dot_dimension_numbers<[1], [0], [0], [1], [0, 0, 1, 1], [], []>} : vector<288x128xbf16>, vector<128x128xbf16>, vector<288x128xf32> -> vector<288x128xf32>
    %18 = arith.addf %12, %17 : vector<288x128xf32>
    %c0_18 = arith.constant 0 : index
    %c18 = arith.constant 18 : index
    %c0_19 = arith.constant 0 : index
    %19 = vector.load %arg2[%c0_18, %c18, %c0_19] : memref<1x342x128xbf16, #tpu.memory_space<vmem>>, vector<1x288x128xbf16>
    %20 = vector.shape_cast %19 : vector<1x288x128xbf16> to vector<288x128xbf16>
    %c3 = arith.constant 3 : index
    %c0_20 = arith.constant 0 : index
    %c0_21 = arith.constant 0 : index
    %21 = vector.load %arg3[%c3, %c0_20, %c0_21] : memref<9x128x128xbf16, #tpu.memory_space<vmem>>, vector<1x128x128xbf16>
    %22 = vector.shape_cast %21 : vector<1x128x128xbf16> to vector<128x128xbf16>
    %cst_22 = arith.constant dense<0.000000e+00> : vector<288x128xf32>
    %23 = tpu.matmul %20, %22, %cst_22 {dimension_numbers = #tpu.dot_dimension_numbers<[1], [0], [0], [1], [0, 0, 1, 1], [], []>} : vector<288x128xbf16>, vector<128x128xbf16>, vector<288x128xf32> -> vector<288x128xf32>
    %24 = arith.addf %18, %23 : vector<288x128xf32>
    %c0_23 = arith.constant 0 : index
    %c19 = arith.constant 19 : index
    %c0_24 = arith.constant 0 : index
    %25 = vector.load %arg2[%c0_23, %c19, %c0_24] : memref<1x342x128xbf16, #tpu.memory_space<vmem>>, vector<1x288x128xbf16>
    %26 = vector.shape_cast %25 : vector<1x288x128xbf16> to vector<288x128xbf16>
    %c4 = arith.constant 4 : index
    %c0_25 = arith.constant 0 : index
    %c0_26 = arith.constant 0 : index
    %27 = vector.load %arg3[%c4, %c0_25, %c0_26] : memref<9x128x128xbf16, #tpu.memory_space<vmem>>, vector<1x128x128xbf16>
    %28 = vector.shape_cast %27 : vector<1x128x128xbf16> to vector<128x128xbf16>
    %cst_27 = arith.constant dense<0.000000e+00> : vector<288x128xf32>
    %29 = tpu.matmul %26, %28, %cst_27 {dimension_numbers = #tpu.dot_dimension_numbers<[1], [0], [0], [1], [0, 0, 1, 1], [], []>} : vector<288x128xbf16>, vector<128x128xbf16>, vector<288x128xf32> -> vector<288x128xf32>
    %30 = arith.addf %24, %29 : vector<288x128xf32>
    %c0_28 = arith.constant 0 : index
    %c20 = arith.constant 20 : index
    %c0_29 = arith.constant 0 : index
    %31 = vector.load %arg2[%c0_28, %c20, %c0_29] : memref<1x342x128xbf16, #tpu.memory_space<vmem>>, vector<1x288x128xbf16>
    %32 = vector.shape_cast %31 : vector<1x288x128xbf16> to vector<288x128xbf16>
    %c5 = arith.constant 5 : index
    %c0_30 = arith.constant 0 : index
    %c0_31 = arith.constant 0 : index
    %33 = vector.load %arg3[%c5, %c0_30, %c0_31] : memref<9x128x128xbf16, #tpu.memory_space<vmem>>, vector<1x128x128xbf16>
    %34 = vector.shape_cast %33 : vector<1x128x128xbf16> to vector<128x128xbf16>
    %cst_32 = arith.constant dense<0.000000e+00> : vector<288x128xf32>
    %35 = tpu.matmul %32, %34, %cst_32 {dimension_numbers = #tpu.dot_dimension_numbers<[1], [0], [0], [1], [0, 0, 1, 1], [], []>} : vector<288x128xbf16>, vector<128x128xbf16>, vector<288x128xf32> -> vector<288x128xf32>
    %36 = arith.addf %30, %35 : vector<288x128xf32>
    %c0_33 = arith.constant 0 : index
    %c36 = arith.constant 36 : index
    %c0_34 = arith.constant 0 : index
    %37 = vector.load %arg2[%c0_33, %c36, %c0_34] : memref<1x342x128xbf16, #tpu.memory_space<vmem>>, vector<1x288x128xbf16>
    %38 = vector.shape_cast %37 : vector<1x288x128xbf16> to vector<288x128xbf16>
    %c6 = arith.constant 6 : index
    %c0_35 = arith.constant 0 : index
    %c0_36 = arith.constant 0 : index
    %39 = vector.load %arg3[%c6, %c0_35, %c0_36] : memref<9x128x128xbf16, #tpu.memory_space<vmem>>, vector<1x128x128xbf16>
    %40 = vector.shape_cast %39 : vector<1x128x128xbf16> to vector<128x128xbf16>
    %cst_37 = arith.constant dense<0.000000e+00> : vector<288x128xf32>
    %41 = tpu.matmul %38, %40, %cst_37 {dimension_numbers = #tpu.dot_dimension_numbers<[1], [0], [0], [1], [0, 0, 1, 1], [], []>} : vector<288x128xbf16>, vector<128x128xbf16>, vector<288x128xf32> -> vector<288x128xf32>
    %42 = arith.addf %36, %41 : vector<288x128xf32>
    %c0_38 = arith.constant 0 : index
    %c37 = arith.constant 37 : index
    %c0_39 = arith.constant 0 : index
    %43 = vector.load %arg2[%c0_38, %c37, %c0_39] : memref<1x342x128xbf16, #tpu.memory_space<vmem>>, vector<1x288x128xbf16>
    %44 = vector.shape_cast %43 : vector<1x288x128xbf16> to vector<288x128xbf16>
    %c7 = arith.constant 7 : index
    %c0_40 = arith.constant 0 : index
    %c0_41 = arith.constant 0 : index
    %45 = vector.load %arg3[%c7, %c0_40, %c0_41] : memref<9x128x128xbf16, #tpu.memory_space<vmem>>, vector<1x128x128xbf16>
    %46 = vector.shape_cast %45 : vector<1x128x128xbf16> to vector<128x128xbf16>
    %cst_42 = arith.constant dense<0.000000e+00> : vector<288x128xf32>
    %47 = tpu.matmul %44, %46, %cst_42 {dimension_numbers = #tpu.dot_dimension_numbers<[1], [0], [0], [1], [0, 0, 1, 1], [], []>} : vector<288x128xbf16>, vector<128x128xbf16>, vector<288x128xf32> -> vector<288x128xf32>
    %48 = arith.addf %42, %47 : vector<288x128xf32>
    %c0_43 = arith.constant 0 : index
    %c38 = arith.constant 38 : index
    %c0_44 = arith.constant 0 : index
    %49 = vector.load %arg2[%c0_43, %c38, %c0_44] : memref<1x342x128xbf16, #tpu.memory_space<vmem>>, vector<1x288x128xbf16>
    %50 = vector.shape_cast %49 : vector<1x288x128xbf16> to vector<288x128xbf16>
    %c8 = arith.constant 8 : index
    %c0_45 = arith.constant 0 : index
    %c0_46 = arith.constant 0 : index
    %51 = vector.load %arg3[%c8, %c0_45, %c0_46] : memref<9x128x128xbf16, #tpu.memory_space<vmem>>, vector<1x128x128xbf16>
    %52 = vector.shape_cast %51 : vector<1x128x128xbf16> to vector<128x128xbf16>
    %cst_47 = arith.constant dense<0.000000e+00> : vector<288x128xf32>
    %53 = tpu.matmul %50, %52, %cst_47 {dimension_numbers = #tpu.dot_dimension_numbers<[1], [0], [0], [1], [0, 0, 1, 1], [], []>} : vector<288x128xbf16>, vector<128x128xbf16>, vector<288x128xf32> -> vector<288x128xf32>
    %54 = arith.addf %48, %53 : vector<288x128xf32>
    %c0_48 = arith.constant 0 : index
    %c0_49 = arith.constant 0 : index
    %55 = vector.load %arg4[%c0_48, %c0_49] : memref<1x128xf32, #tpu.memory_space<vmem>>, vector<1x128xf32>
    %56 = vector.broadcast %55 : vector<1x128xf32> to vector<288x128xf32>
    %57 = arith.addf %54, %56 : vector<288x128xf32>
    %cst_50 = arith.constant 0.000000e+00 : f32
    %58 = vector.broadcast %cst_50 : f32 to vector<288x128xf32>
    %59 = arith.maximumf %57, %58 : vector<288x128xf32>
    %60 = arith.truncf %59 : vector<288x128xf32> to vector<288x128xbf16>
    %c0_51 = arith.constant 0 : index
    %c0_52 = arith.constant 0 : index
    %c0_53 = arith.constant 0 : index
    %61 = vector.load %arg5[%c0_51, %c0_52, %c0_53] : memref<1x288x128xbf16, #tpu.memory_space<vmem>>, vector<1x288x128xbf16>
    %62 = vector.shape_cast %61 : vector<1x288x128xbf16> to vector<288x128xbf16>
    %63 = vector.shape_cast %60 : vector<288x128xbf16> to vector<1x288x128xbf16>
    tpu.vector_store %arg5[%c0_51, %c0_52, %c0_53], %63 {strides = array<i32>} : memref<1x288x128xbf16, #tpu.memory_space<vmem>>, vector<1x288x128xbf16>,
    return
  }
  func.func @transform_0(%arg0: i32, %arg1: i32) -> (i32, i32, i32) {
    %c0_i32 = arith.constant 0 : i32
    %c0_i32_0 = arith.constant 0 : i32
    %c0_i32_1 = arith.constant 0 : i32
    return %arg0, %c0_i32, %c0_i32_0 : i32, i32, i32
  }
  func.func @transform_1(%arg0: i32, %arg1: i32) -> (i32, i32, i32) {
    %c0_i32 = arith.constant 0 : i32
    %c0_i32_0 = arith.constant 0 : i32
    %c0_i32_1 = arith.constant 0 : i32
    return %c0_i32, %c0_i32_0, %arg1 : i32, i32, i32
  }
  func.func @transform_2(%arg0: i32, %arg1: i32) -> (i32, i32) {
    %c0_i32 = arith.constant 0 : i32
    %c0_i32_0 = arith.constant 0 : i32
    return %c0_i32, %arg1 : i32, i32
  }
  func.func @transform_3(%arg0: i32, %arg1: i32) -> (i32, i32, i32) {
    %c0_i32 = arith.constant 0 : i32
    %c0_i32_0 = arith.constant 0 : i32
    return %arg0, %c0_i32, %arg1 : i32, i32, i32
  }
}

module attributes {stable_mosaic.version = 11 : i64} {
  func.func @_mm_kernel_1k(%arg0: i32, %arg1: i32, %arg2: memref<256x128xbf16, #tpu.memory_space<vmem>>, %arg3: memref<128x128xbf16, #tpu.memory_space<vmem>>, %arg4: memref<1x128xf32, #tpu.memory_space<vmem>>, %arg5: memref<256x128xf32, #tpu.memory_space<vmem>>, %arg6: memref<256x128xf32, #tpu.memory_space<vmem>>) attributes {dimension_semantics = [#tpu.dimension_semantics<parallel>, #tpu.dimension_semantics<parallel>], iteration_bounds = array<i64: 2, 1>, scalar_prefetch = 0 : i64, scratch_operands = 0 : i64, tpu.core_type = #tpu.core_type<tc>, window_params = [{transform_indices = @transform_0, window_bounds = array<i64: 256, 128>}, {transform_indices = @transform_1, window_bounds = array<i64: 128, 128>}, {transform_indices = @transform_2, window_bounds = array<i64: 1, 128>}, {transform_indices = @transform_3, window_bounds = array<i64: 256, 128>}, {transform_indices = @transform_4, window_bounds = array<i64: 256, 128>}]} {
    %c0 = arith.constant 0 : index
    %c0_0 = arith.constant 0 : index
    %0 = vector.load %arg2[%c0, %c0_0] : memref<256x128xbf16, #tpu.memory_space<vmem>>, vector<256x128xbf16>
    %c0_1 = arith.constant 0 : index
    %c0_2 = arith.constant 0 : index
    %1 = vector.load %arg3[%c0_1, %c0_2] : memref<128x128xbf16, #tpu.memory_space<vmem>>, vector<128x128xbf16>
    %cst = arith.constant dense<0.000000e+00> : vector<256x128xf32>
    %2 = tpu.matmul %0, %1, %cst {dimension_numbers = #tpu.dot_dimension_numbers<[1], [0], [0], [1], [0, 0, 1, 1], [], []>} : vector<256x128xbf16>, vector<128x128xbf16>, vector<256x128xf32> -> vector<256x128xf32>
    %c0_3 = arith.constant 0 : index
    %c0_4 = arith.constant 0 : index
    %3 = vector.load %arg4[%c0_3, %c0_4] : memref<1x128xf32, #tpu.memory_space<vmem>>, vector<1x128xf32>
    %4 = vector.broadcast %3 : vector<1x128xf32> to vector<256x128xf32>
    %5 = arith.addf %2, %4 : vector<256x128xf32>
    %c0_5 = arith.constant 0 : index
    %c0_6 = arith.constant 0 : index
    %6 = vector.load %arg5[%c0_5, %c0_6] : memref<256x128xf32, #tpu.memory_space<vmem>>, vector<256x128xf32>
    %7 = arith.addf %5, %6 : vector<256x128xf32>
    %cst_7 = arith.constant 0.000000e+00 : f32
    %8 = vector.broadcast %cst_7 : f32 to vector<256x128xf32>
    %9 = arith.maximumf %7, %8 : vector<256x128xf32>
    %c0_8 = arith.constant 0 : index
    %c0_9 = arith.constant 0 : index
    %10 = vector.load %arg6[%c0_8, %c0_9] : memref<256x128xf32, #tpu.memory_space<vmem>>, vector<256x128xf32>
    tpu.vector_store %arg6[%c0_8, %c0_9], %9 {strides = array<i32>} : memref<256x128xf32, #tpu.memory_space<vmem>>, vector<256x128xf32>,
    return
  }
  func.func @transform_0(%arg0: i32, %arg1: i32) -> (i32, i32) {
    %c0_i32 = arith.constant 0 : i32
    %c0_i32_0 = arith.constant 0 : i32
    return %arg0, %c0_i32 : i32, i32
  }
  func.func @transform_1(%arg0: i32, %arg1: i32) -> (i32, i32) {
    %c0_i32 = arith.constant 0 : i32
    %c0_i32_0 = arith.constant 0 : i32
    return %c0_i32, %arg1 : i32, i32
  }
  func.func @transform_2(%arg0: i32, %arg1: i32) -> (i32, i32) {
    %c0_i32 = arith.constant 0 : i32
    %c0_i32_0 = arith.constant 0 : i32
    return %c0_i32, %arg1 : i32, i32
  }
  func.func @transform_3(%arg0: i32, %arg1: i32) -> (i32, i32) {
    %c0_i32 = arith.constant 0 : i32
    return %arg0, %arg1 : i32, i32
  }
  func.func @transform_4(%arg0: i32, %arg1: i32) -> (i32, i32) {
    %c0_i32 = arith.constant 0 : i32
    return %arg0, %arg1 : i32, i32
  }
}

</mosaic_0001>

<llo_original>
// kernel: _forward.3
$region0: #{_forward.3}
  #allocation0 [shape = 'u32[]', space=smem, size = 0x4, offset = 0x4, fixed_abs, tag = 'smem constant byte address 0x4 - core index']
  #allocation1 [shape = 'u32[144,128]{1,0:T(1,128)}', space=vmem, size = 0x12000, scoped, tag = 'internal scratch']
  %s0 = inlined_call_operand.vmem [shape: bf16[512,16], index: 0, kind: input, shape index: {}]
  %s1 = inlined_call_operand.vmem [shape: bf16[16,128], index: 1, kind: input, shape index: {}]
  %s2 = inlined_call_operand.vmem [shape: f32[1,128], index: 2, kind: input, shape index: {}]
  %s3 = inlined_call_operand.vmem [shape: bf16[512,128], index: 3, kind: output, shape index: {}]
  %s4 = sld [smem:[#allocation0]]
  $region45: #{_forward.3} parent=0
    _
  %s6 = ssub.s32 1, %s4
  %s7 = scalar_select 0, %s6, %s4
  loop: start=0, step=1, limit=4
  $region2: #{_forward.3} parent=0 // loop_pre_header
    _
  $region3: #{_forward.3} parent=0 // loop_header
    %s9 = sphi 0, %s13
    %p10 = scmp.ge.s32.totalorder %s9, 4
    %s16 = sphi 0, %s28
    %s17 = sphi 0, %s24
    %s18 = sphi 0, %s16
    %s19 = sphi 0, %s17
    %s20 = sphi 0, %s18
    %s21 = sphi 0, %s19
    %s31 = sphi 0, %s33
    %s34 = sphi 0, %s31
    %s35 = sphi 0, %s34
    %s51 = sphi 0, %s35
    %s57 = sphi 0, %s59
    %s60 = sphi 0, %s57
    %s61 = sphi 0, %s60
    %s77 = sphi 0, %s61
    %s83 = sphi 0, %s85
    %s86 = sphi 0, %s83
    %s87 = sphi 0, %s86
    %s103 = sphi 0, %s87
    %s111 = sphi 0, %s113
    %s114 = sphi 0, %s111
    %s115 = sphi 0, %s114
    %s131 = sphi 0, %s115
  $region4: #{_forward.3} parent=0 // loop_header_branch
    %12 = sbr.rel (%p10) target = $region8
  $region5: #{_forward.3} parent=0 // loop_body
    %s14 = ssub.s32 %s9, 1
    %s15 = ssub.s32 %s9, 2
    %s22 = sadd.s32 1, %s17
    %p23 = scmp.ge.s32.totalorder %s22, 1
    %s24 = scalar_select %p23, 0, %s22
    %s25 = sadd.s32 1, %s16
    %s26 = scalar_select %p23, %s25, %s16
    %p27 = scmp.ge.s32.totalorder %s26, 2
    %s28 = scalar_select %p27, 0, %s26
    %s29 = ssub.s32 %s16, %s28
    %p30 = scmp.eq.s32.totalorder %s29, 0
    %s32 = sadd.s32 %s31, 1
    %s33 = scalar_select %p30, %s31, %s32
    %p36 = pneg %p30
    %p37 = scmp.eq.s32.totalorder %s9, 1
    %p38 = por %p36, %p37
    %p39 = scmp.ne.s32.totalorder %s31, %s34
    %p40 = scmp.eq.s32.totalorder %s9, 0
    %p41 = por %p39, %p40
    %p42 = scmp.ne.s32.totalorder %s31, %s34
    %p43 = scmp.eq.s32.totalorder %s14, 1
    %p44 = por %p42, %p43
    %p45 = scmp.ne.s32.totalorder %s34, %s35
    %p46 = scmp.eq.s32.totalorder %s14, 0
    %p47 = por %p45, %p46
    %p48 = scmp.ne.s32.totalorder %s34, %s35
    %p49 = scmp.eq.s32.totalorder %s15, 1
    %p50 = por %p48, %p49
    %p52 = scmp.ne.s32.totalorder %s35, %s51
    %p53 = scmp.eq.s32.totalorder %s15, 0
    %p54 = por %p52, %p53
    %s55 = ssub.s32 %s17, %s24
    %p56 = scmp.eq.s32.totalorder %s55, 0
    %s58 = sadd.s32 %s57, 1
    %s59 = scalar_select %p56, %s57, %s58
    %p62 = pneg %p56
    %p63 = scmp.eq.s32.totalorder %s9, 1
    %p64 = por %p62, %p63
    %p65 = scmp.ne.s32.totalorder %s57, %s60
    %p66 = scmp.eq.s32.totalorder %s9, 0
    %p67 = por %p65, %p66
    %p68 = scmp.ne.s32.totalorder %s57, %s60
    %p69 = scmp.eq.s32.totalorder %s14, 1
    %p70 = por %p68, %p69
    %p71 = scmp.ne.s32.totalorder %s60, %s61
    %p72 = scmp.eq.s32.totalorder %s14, 0
    %p73 = por %p71, %p72
    %p74 = scmp.ne.s32.totalorder %s60, %s61
    %p75 = scmp.eq.s32.totalorder %s15, 1
    %p76 = por %p74, %p75
    %p78 = scmp.ne.s32.totalorder %s61, %s77
    %p79 = scmp.eq.s32.totalorder %s15, 0
    %p80 = por %p78, %p79
    %s81 = ssub.s32 %s17, %s24
    %p82 = scmp.eq.s32.totalorder %s81, 0
    %s84 = sadd.s32 %s83, 1
    %s85 = scalar_select %p82, %s83, %s84
    %p88 = pneg %p82
    %p89 = scmp.eq.s32.totalorder %s9, 1
    %p90 = por %p88, %p89
    %p91 = scmp.ne.s32.totalorder %s83, %s86
    %p92 = scmp.eq.s32.totalorder %s9, 0
    %p93 = por %p91, %p92
    %p94 = scmp.ne.s32.totalorder %s83, %s86
    %p95 = scmp.eq.s32.totalorder %s14, 1
    %p96 = por %p94, %p95
    %p97 = scmp.ne.s32.totalorder %s86, %s87
    %p98 = scmp.eq.s32.totalorder %s14, 0
    %p99 = por %p97, %p98
    %p100 = scmp.ne.s32.totalorder %s86, %s87
    %p101 = scmp.eq.s32.totalorder %s15, 1
    %p102 = por %p100, %p101
    %p104 = scmp.ne.s32.totalorder %s87, %s103
    %p105 = scmp.eq.s32.totalorder %s15, 0
    %p106 = por %p104, %p105
    %s107 = ssub.s32 %s16, %s28
    %s108 = ssub.s32 %s17, %s24
    %s109 = sor.u32 %s107, %s108
    %p110 = scmp.eq.s32.totalorder %s109, 0
    %s112 = sadd.s32 %s111, 1
    %s113 = scalar_select %p110, %s111, %s112
    %p116 = pneg %p110
    %p117 = scmp.eq.s32.totalorder %s9, 1
    %p118 = por %p116, %p117
    %p119 = scmp.ne.s32.totalorder %s111, %s114
    %p120 = scmp.eq.s32.totalorder %s9, 0
    %p121 = por %p119, %p120
    %p122 = scmp.ne.s32.totalorder %s111, %s114
    %p123 = scmp.eq.s32.totalorder %s14, 1
    %p124 = por %p122, %p123
    %p125 = scmp.ne.s32.totalorder %s114, %s115
    %p126 = scmp.eq.s32.totalorder %s14, 0
    %p127 = por %p125, %p126
    %p128 = scmp.ne.s32.totalorder %s114, %s115
    %p129 = scmp.eq.s32.totalorder %s15, 1
    %p130 = por %p128, %p129
    %p132 = scmp.ne.s32.totalorder %s115, %s131
    %p133 = scmp.eq.s32.totalorder %s15, 0
    %p134 = por %p132, %p133
    %p135 = scmp.le.s32.totalorder 1, %s9
    %p136 = scmp.lt.s32.totalorder %s9, 3
    %p137 = pnand %p135, %p136
    %p138 = pneg %p137
    // Predicated region
    $region9: #{_forward.3} parent=5 // pred_check
      _
    $region10: #{_forward.3} parent=5 // pred_check_branch
      %140 = sbr.rel (%p137) target = $region12
    $region11: #{_forward.3} parent=5 // pred_region
      %s141 = ssub.s32 %s9, 1
      // Predicated region
      $region13: #{_forward.3} parent=11 // pred_check
        %p142 = pneg %p73
      $region14: #{_forward.3} parent=11 // pred_check_branch
        %144 = sbr.rel (%p142) target = $region16
      $region15: #{_forward.3} parent=11 // pred_region
        %p145 = scmp.lt.s32.totalorder %s19, 0
        %s146 = scalar_select %p145, %s19, 0
        %s147 = smul.addr %s146, 4
        %s148 = scalar_lea.vmem %s1, %s147
      $region16: #{_forward.3} parent=11 // pred_fallthru
        _
      // Predicated region
      $region17: #{_forward.3} parent=11 // pred_check
        %p149 = pneg %p99
      $region18: #{_forward.3} parent=11 // pred_check_branch
        %151 = sbr.rel (%p149) target = $region20
      $region19: #{_forward.3} parent=11 // pred_region
        %p152 = scmp.lt.s32.totalorder %s19, 0
        %s153 = scalar_select %p152, %s19, 0
        %s154 = scalar_lea.vmem %s2, %s153
      $region20: #{_forward.3} parent=11 // pred_fallthru
        _
    $region12: #{_forward.3} parent=5 // pred_fallthru
      _
    %p155 = scmp.lt.s32.totalorder %s9, 2
    // Predicated region
    $region21: #{_forward.3} parent=5 // pred_check
      %p156 = pneg %p155
    $region22: #{_forward.3} parent=5 // pred_check_branch
      %158 = sbr.rel (%p156) target = $region24
    $region23: #{_forward.3} parent=5 // pred_region
      // Predicated region
      $region25: #{_forward.3} parent=23 // pred_check
        %p159 = pneg %p41
      $region26: #{_forward.3} parent=23 // pred_check_branch
        %161 = sbr.rel (%p159) target = $region28
      $region27: #{_forward.3} parent=23 // pred_region
        %s162 = smul.u32 32, %s16
        %p163 = scmp.lt.s32.totalorder %s162, 63
        %s164 = scalar_select %p163, %s162, 63
        %s165 = smul.addr %s164, 4
        %s166 = scalar_lea.vmem %s0, %s165
        %s167 = smul.u32 32, %s16
      $region28: #{_forward.3} parent=23 // pred_fallthru
        _
    $region24: #{_forward.3} parent=5 // pred_fallthru
      _
    %p168 = scmp.le.s32.totalorder 1, %s9
    %p169 = scmp.lt.s32.totalorder %s9, 3
    %p170 = pnand %p168, %p169
    %p171 = pneg %p170
    // Predicated region
    $region29: #{_forward.3} parent=5 // pred_check
      _
    $region30: #{_forward.3} parent=5 // pred_check_branch
      %173 = sbr.rel (%p170) target = $region32
    $region31: #{_forward.3} parent=5 // pred_region
      %s174 = ssub.s32 %s9, 1
      %s175 = smul.u32 32, %s18
      %p176 = scmp.lt.s32.totalorder %s175, 63
      %s177 = scalar_select %p176, %s175, 63
      %s178 = smul.addr %s177, 4
      %s179 = scalar_lea.vmem %s0, %s178
      %p180 = pneg %p47
      %p181 = pneg %p44
      %p182 = scmp.lt.s32.totalorder %s19, 0
      %s183 = scalar_select %p182, %s19, 0
      %s184 = smul.addr %s183, 4
      %s185 = scalar_lea.vmem %s1, %s184
      %p186 = pneg %p73
      %p187 = pneg %p70
      %p188 = scmp.lt.s32.totalorder %s19, 0
      %s189 = scalar_select %p188, %s19, 0
      %s190 = scalar_lea.vmem %s2, %s189
      %p191 = pneg %p99
      %p192 = pneg %p96
      %p193 = pneg %p127
      %p194 = pneg %p124
      %s195 = smul.u32 32, %s18
      %p196 = scmp.lt.s32.totalorder %s195, 63
      %s197 = scalar_select %p196, %s195, 63
      %p198 = scmp.lt.s32.totalorder %s19, 0
      %s199 = scalar_select %p198, %s19, 0
      %s200 = sadd.s32 %s199, %s197
      %s201 = smul.addr %s200, 4
      %s202 = scalar_lea.vmem %s3, %s201
      %s203 = smul.u32 32, %s18
      %p204 = scmp.lt.s32.totalorder %s203, 63
      %s205 = scalar_select %p204, %s203, 63
      %s206 = smul.addr %s205, 4
      %s207 = scalar_lea.vmem %s0, %s206
      %s208 = smul.u32 32, %s18
      %p209 = scmp.lt.s32.totalorder %s19, 0
      %s210 = scalar_select %p209, %s19, 0
      %s211 = smul.addr %s210, 4
      %s212 = scalar_lea.vmem %s1, %s211
      %p213 = scmp.lt.s32.totalorder %s19, 0
      %s214 = scalar_select %p213, %s19, 0
      %s215 = scalar_lea.vmem %s2, %s214
      %s216 = smul.u32 32, %s18
      %p217 = scmp.lt.s32.totalorder %s216, 63
      %s218 = scalar_select %p217, %s216, 63
      %p219 = scmp.lt.s32.totalorder %s19, 0
      %s220 = scalar_select %p219, %s19, 0
      %s221 = sadd.s32 %s220, %s218
      %s222 = smul.addr %s221, 4
      %s223 = scalar_lea.vmem %s3, %s222
      %s224 = smul.u32 32, %s18
      %v226 = vld [vmem:[%s207] sm:$0xf]
      %v227 = vld [vmem:[%s207 + $0x4] sm:$0xf]
      %v228 = vld [vmem:[%s207 + $0x8] sm:$0xf]
      %v229 = vld [vmem:[%s207 + $0xc] sm:$0xf]
      %v230 = vld [vmem:[%s207 + $0x10] sm:$0xf]
      %v231 = vld [vmem:[%s207 + $0x14] sm:$0xf]
      %v232 = vld [vmem:[%s207 + $0x18] sm:$0xf]
      %v233 = vld [vmem:[%s207 + $0x1c] sm:$0xf]
      %v234 = vld [vmem:[%s207 + $0x20] sm:$0xf]
      %v235 = vld [vmem:[%s207 + $0x24] sm:$0xf]
      %v236 = vld [vmem:[%s207 + $0x28] sm:$0xf]
      %v237 = vld [vmem:[%s207 + $0x2c] sm:$0xf]
      %v238 = vld [vmem:[%s207 + $0x30] sm:$0xf]
      %v239 = vld [vmem:[%s207 + $0x34] sm:$0xf]
      %v240 = vld [vmem:[%s207 + $0x38] sm:$0xf]
      %v241 = vld [vmem:[%s207 + $0x3c] sm:$0xf]
      %v242 = vld [vmem:[%s207 + $0x40] sm:$0xf]
      %v243 = vld [vmem:[%s207 + $0x44] sm:$0xf]
      %v244 = vld [vmem:[%s207 + $0x48] sm:$0xf]
      %v245 = vld [vmem:[%s207 + $0x4c] sm:$0xf]
      %v246 = vld [vmem:[%s207 + $0x50] sm:$0xf]
      %v247 = vld [vmem:[%s207 + $0x54] sm:$0xf]
      %v248 = vld [vmem:[%s207 + $0x58] sm:$0xf]
      %v249 = vld [vmem:[%s207 + $0x5c] sm:$0xf]
      %v250 = vld [vmem:[%s207 + $0x60] sm:$0xf]
      %v251 = vld [vmem:[%s207 + $0x64] sm:$0xf]
      %v252 = vld [vmem:[%s207 + $0x68] sm:$0xf]
      %v253 = vld [vmem:[%s207 + $0x6c] sm:$0xf]
      %v254 = vld [vmem:[%s207 + $0x70] sm:$0xf]
      %v255 = vld [vmem:[%s207 + $0x74] sm:$0xf]
      %v256 = vld [vmem:[%s207 + $0x78] sm:$0xf]
      %v257 = vld [vmem:[%s207 + $0x7c] sm:$0xf]
      %v258 = vld [vmem:[%s212] sm:$0xf]
      %v259 = vld [vmem:[%s212 + $0x4] sm:$0xf]
      %v260 = vld [vmem:[%s215] sm:$0x1]
      %v262 = vlaneseq
      %v263 = vshrl.u32 %v262, 7
      %v264 = vsub.s32 0, %v263
      %v265 = vrot.slane %v260, %v264
      %v299 = vunpack.c.l.b16 %v226
      %v300 = vunpack.c.l.b16 %v227
      %v301 = vunpack.c.l.b16 %v228
      %v302 = vunpack.c.l.b16 %v229
      %v303 = vunpack.c.l.b16 %v230
      %v304 = vunpack.c.l.b16 %v231
      %v305 = vunpack.c.l.b16 %v232
      %v306 = vunpack.c.l.b16 %v233
      %v307 = vunpack.c.l.b16 %v234
      %v308 = vunpack.c.l.b16 %v235
      %v309 = vunpack.c.l.b16 %v236
      %v310 = vunpack.c.l.b16 %v237
      %v311 = vunpack.c.l.b16 %v238
      %v312 = vunpack.c.l.b16 %v239
      %v313 = vunpack.c.l.b16 %v240
      %v314 = vunpack.c.l.b16 %v241
      %v315 = vunpack.c.l.b16 %v242
      %v316 = vunpack.c.l.b16 %v243
      %v317 = vunpack.c.l.b16 %v244
      %v318 = vunpack.c.l.b16 %v245
      %v319 = vunpack.c.l.b16 %v246
      %v320 = vunpack.c.l.b16 %v247
      %v321 = vunpack.c.l.b16 %v248
      %v322 = vunpack.c.l.b16 %v249
      %v323 = vunpack.c.l.b16 %v250
      %v324 = vunpack.c.l.b16 %v251
      %v325 = vunpack.c.l.b16 %v252
      %v326 = vunpack.c.l.b16 %v253
      %v327 = vunpack.c.l.b16 %v254
      %v328 = vunpack.c.l.b16 %v255
      %v329 = vunpack.c.l.b16 %v256
      %v330 = vunpack.c.l.b16 %v257
      %v331 = vpack.c.b16 %v300, %v299
      %v332 = vpack.c.b16 %v302, %v301
      %v333 = vpack.c.b16 %v304, %v303
      %v334 = vpack.c.b16 %v306, %v305
      %v335 = vpack.c.b16 %v308, %v307
      %v336 = vpack.c.b16 %v310, %v309
      %v337 = vpack.c.b16 %v312, %v311
      %v338 = vpack.c.b16 %v314, %v313
      %v339 = vpack.c.b16 %v316, %v315
      %v340 = vpack.c.b16 %v318, %v317
      %v341 = vpack.c.b16 %v320, %v319
      %v342 = vpack.c.b16 %v322, %v321
      %v343 = vpack.c.b16 %v324, %v323
      %v344 = vpack.c.b16 %v326, %v325
      %v345 = vpack.c.b16 %v328, %v327
      %v346 = vpack.c.b16 %v330, %v329
      %v349 = vunpack.c.l.b16 %v258
      %v350 = vunpack.c.l.b16 %v259
      %v351 = vpack.c.b16 %v350, %v349
      %vm353 = vcmask 130048
      %v355 = vsel %vm353, %v331, 0
      %v358 = vsel %vm353, %v332, 0
      %v361 = vsel %vm353, %v333, 0
      %v364 = vsel %vm353, %v334, 0
      %v367 = vsel %vm353, %v335, 0
      %v370 = vsel %vm353, %v336, 0
      %v373 = vsel %vm353, %v337, 0
      %v376 = vsel %vm353, %v338, 0
      %v379 = vsel %vm353, %v339, 0
      %v382 = vsel %vm353, %v340, 0
      %v385 = vsel %vm353, %v341, 0
      %v388 = vsel %vm353, %v342, 0
      %v391 = vsel %vm353, %v343, 0
      %v394 = vsel %vm353, %v344, 0
      %v397 = vsel %vm353, %v345, 0
      %v400 = vsel %vm353, %v346, 0
      %402 = vmatprep.subr.bf16.mxu0 0
      %403 = vmatpush1.bf16.msra.mxu0 %v351
      %404 = vmatprep.subr.bf16.mxu0 0
      %405 = vmatpush1.bf16.msra.mxu0 0
      %406 = vmatprep.subr.bf16.mxu0 0
      %407 = vmatpush1.bf16.msra.mxu0 0
      %408 = vmatprep.subr.bf16.mxu0 0
      %409 = vmatpush1.bf16.msra.mxu0 0
      %410 = vmatprep.subr.bf16.mxu0 0
      %411 = vmatpush1.bf16.msra.mxu0 0
      %412 = vmatprep.subr.bf16.mxu0 0
      %413 = vmatpush1.bf16.msra.mxu0 0
      %414 = vmatprep.subr.bf16.mxu0 0
      %415 = vmatpush1.bf16.msra.mxu0 0
      %416 = vmatprep.subr.bf16.mxu0 0
      %417 = vmatpush1.bf16.msra.mxu0 0
      %418 = vmatprep.subr.bf16.mxu0 0
      %419 = vmatpush1.bf16.msra.mxu0 0
      %420 = vmatprep.subr.bf16.mxu0 0
      %421 = vmatpush1.bf16.msra.mxu0 0
      %422 = vmatprep.subr.bf16.mxu0 0
      %423 = vmatpush1.bf16.msra.mxu0 0
      %424 = vmatprep.subr.bf16.mxu0 0
      %425 = vmatpush1.bf16.msra.mxu0 0
      %426 = vmatprep.subr.bf16.mxu0 0
      %427 = vmatpush1.bf16.msra.mxu0 0
      %428 = vmatprep.subr.bf16.mxu0 0
      %429 = vmatpush1.bf16.msra.mxu0 0
      %430 = vmatprep.subr.bf16.mxu0 0
      %431 = vmatpush1.bf16.msra.mxu0 0
      %432 = vmatprep.subr.bf16.mxu0 0
      %433 = vmatpush1.bf16.msra.mxu0 0
      %434 = vmatprep.mubr.bf16.mxu0 0
      %435 = vmatmul.mubr.bf16.gmra.mrb[0].mxu0 %v355
      %v436 = vpop.f32.mrb[0].mxu0
      %v437 = vadd.f32 %v265, %v436
      %v438 = vpop.f32.mrb[0].mxu0
      %v439 = vpop.f32.mrb[0].mxu0
      %v440 = vadd.f32 %v265, %v439
      %v441 = vpop.f32.mrb[0].mxu0
      %442 = vmatprep.mubr.bf16.mxu0 0
      %443 = vmatmul.mubr.bf16.gmra.mrb[0].mxu0 %v358
      %v444 = vpop.f32.mrb[0].mxu0
      %v445 = vadd.f32 %v265, %v444
      %v446 = vpop.f32.mrb[0].mxu0
      %v447 = vpop.f32.mrb[0].mxu0
      %v448 = vadd.f32 %v265, %v447
      %v449 = vpop.f32.mrb[0].mxu0
      %450 = vmatprep.mubr.bf16.mxu0 0
      %451 = vmatmul.mubr.bf16.gmra.mrb[0].mxu0 %v361
      %v452 = vpop.f32.mrb[0].mxu0
      %v453 = vadd.f32 %v265, %v452
      %v454 = vpop.f32.mrb[0].mxu0
      %v455 = vpop.f32.mrb[0].mxu0
      %v456 = vadd.f32 %v265, %v455
      %v457 = vpop.f32.mrb[0].mxu0
      %458 = vmatprep.mubr.bf16.mxu0 0
      %459 = vmatmul.mubr.bf16.gmra.mrb[0].mxu0 %v364
      %v460 = vpop.f32.mrb[0].mxu0
      %v461 = vadd.f32 %v265, %v460
      %v462 = vpop.f32.mrb[0].mxu0
      %v463 = vpop.f32.mrb[0].mxu0
      %v464 = vadd.f32 %v265, %v463
      %v465 = vpop.f32.mrb[0].mxu0
      %466 = vmatprep.mubr.bf16.mxu0 0
      %467 = vmatmul.mubr.bf16.gmra.mrb[0].mxu0 %v367
      %v468 = vpop.f32.mrb[0].mxu0
      %v469 = vadd.f32 %v265, %v468
      %v470 = vpop.f32.mrb[0].mxu0
      %v471 = vpop.f32.mrb[0].mxu0
      %v472 = vadd.f32 %v265, %v471
      %v473 = vpop.f32.mrb[0].mxu0
      %474 = vmatprep.mubr.bf16.mxu0 0
      %475 = vmatmul.mubr.bf16.gmra.mrb[0].mxu0 %v370
      %v476 = vpop.f32.mrb[0].mxu0
      %v477 = vadd.f32 %v265, %v476
      %v478 = vpop.f32.mrb[0].mxu0
      %v479 = vpop.f32.mrb[0].mxu0
      %v480 = vadd.f32 %v265, %v479
      %v481 = vpop.f32.mrb[0].mxu0
      %482 = vmatprep.mubr.bf16.mxu0 0
      %483 = vmatmul.mubr.bf16.gmra.mrb[0].mxu0 %v373
      %v484 = vpop.f32.mrb[0].mxu0
      %v485 = vadd.f32 %v265, %v484
      %v486 = vpop.f32.mrb[0].mxu0
      %v487 = vpop.f32.mrb[0].mxu0
      %v488 = vadd.f32 %v265, %v487
      %v489 = vpop.f32.mrb[0].mxu0
      %490 = vmatprep.mubr.bf16.mxu0 0
      %491 = vmatmul.mubr.bf16.gmra.mrb[0].mxu0 %v376
      %v492 = vpop.f32.mrb[0].mxu0
      %v493 = vadd.f32 %v265, %v492
      %v494 = vpop.f32.mrb[0].mxu0
      %v495 = vpop.f32.mrb[0].mxu0
      %v496 = vadd.f32 %v265, %v495
      %v497 = vpop.f32.mrb[0].mxu0
      %498 = vmatprep.mubr.bf16.mxu0 0
      %499 = vmatmul.mubr.bf16.gmra.mrb[0].mxu0 %v379
      %v500 = vpop.f32.mrb[0].mxu0
      %v501 = vadd.f32 %v265, %v500
      %v502 = vpop.f32.mrb[0].mxu0
      %v503 = vpop.f32.mrb[0].mxu0
      %v504 = vadd.f32 %v265, %v503
      %v505 = vpop.f32.mrb[0].mxu0
      %506 = vmatprep.mubr.bf16.mxu0 0
      %507 = vmatmul.mubr.bf16.gmra.mrb[0].mxu0 %v382
      %v508 = vpop.f32.mrb[0].mxu0
      %v509 = vadd.f32 %v265, %v508
      %v510 = vpop.f32.mrb[0].mxu0
      %v511 = vpop.f32.mrb[0].mxu0
      %v512 = vadd.f32 %v265, %v511
      %v513 = vpop.f32.mrb[0].mxu0
      %514 = vmatprep.mubr.bf16.mxu0 0
      %515 = vmatmul.mubr.bf16.gmra.mrb[0].mxu0 %v385
      %v516 = vpop.f32.mrb[0].mxu0
      %v517 = vadd.f32 %v265, %v516
      %v518 = vpop.f32.mrb[0].mxu0
      %v519 = vpop.f32.mrb[0].mxu0
      %v520 = vadd.f32 %v265, %v519
      %v521 = vpop.f32.mrb[0].mxu0
      %522 = vmatprep.mubr.bf16.mxu0 0
      %523 = vmatmul.mubr.bf16.gmra.mrb[0].mxu0 %v388
      %v524 = vpop.f32.mrb[0].mxu0
      %v525 = vadd.f32 %v265, %v524
      %v526 = vpop.f32.mrb[0].mxu0
      %v527 = vpop.f32.mrb[0].mxu0
      %v528 = vadd.f32 %v265, %v527
      %v529 = vpop.f32.mrb[0].mxu0
      %530 = vmatprep.mubr.bf16.mxu0 0
      %531 = vmatmul.mubr.bf16.gmra.mrb[0].mxu0 %v391
      %v532 = vpop.f32.mrb[0].mxu0
      %v533 = vadd.f32 %v265, %v532
      %v534 = vpop.f32.mrb[0].mxu0
      %v535 = vpop.f32.mrb[0].mxu0
      %v536 = vadd.f32 %v265, %v535
      %v537 = vpop.f32.mrb[0].mxu0
      %538 = vmatprep.mubr.bf16.mxu0 0
      %539 = vmatmul.mubr.bf16.gmra.mrb[0].mxu0 %v394
      %v540 = vpop.f32.mrb[0].mxu0
      %v541 = vadd.f32 %v265, %v540
      %v542 = vpop.f32.mrb[0].mxu0
      %v543 = vpop.f32.mrb[0].mxu0
      %v544 = vadd.f32 %v265, %v543
      %v545 = vpop.f32.mrb[0].mxu0
      %546 = vmatprep.mubr.bf16.mxu0 0
      %547 = vmatmul.mubr.bf16.gmra.mrb[0].mxu0 %v397
      %v548 = vpop.f32.mrb[0].mxu0
      %v549 = vadd.f32 %v265, %v548
      %v550 = vpop.f32.mrb[0].mxu0
      %v551 = vpop.f32.mrb[0].mxu0
      %v552 = vadd.f32 %v265, %v551
      %v553 = vpop.f32.mrb[0].mxu0
      %554 = vmatprep.mubr.bf16.mxu0 0
      %555 = vmatmul.mubr.bf16.gmra.mrb[0].mxu0 %v400
      %v556 = vpop.f32.mrb[0].mxu0
      %v557 = vadd.f32 %v265, %v556
      %v558 = vpop.f32.mrb[0].mxu0
      %v559 = vpop.f32.mrb[0].mxu0
      %v560 = vadd.f32 %v265, %v559
      %v561 = vpop.f32.mrb[0].mxu0
      %562 = vdwg.mxu0
      %v563 = vmax.f32 %v437, 0.0
      %v564 = vmax.f32 %v440, 0.0
      %v565 = vmax.f32 %v445, 0.0
      %v566 = vmax.f32 %v448, 0.0
      %v567 = vmax.f32 %v453, 0.0
      %v568 = vmax.f32 %v456, 0.0
      %v569 = vmax.f32 %v461, 0.0
      %v570 = vmax.f32 %v464, 0.0
      %v571 = vmax.f32 %v469, 0.0
      %v572 = vmax.f32 %v472, 0.0
      %v573 = vmax.f32 %v477, 0.0
      %v574 = vmax.f32 %v480, 0.0
      %v575 = vmax.f32 %v485, 0.0
      %v576 = vmax.f32 %v488, 0.0
      %v577 = vmax.f32 %v493, 0.0
      %v578 = vmax.f32 %v496, 0.0
      %v579 = vmax.f32 %v501, 0.0
      %v580 = vmax.f32 %v504, 0.0
      %v581 = vmax.f32 %v509, 0.0
      %v582 = vmax.f32 %v512, 0.0
      %v583 = vmax.f32 %v517, 0.0
      %v584 = vmax.f32 %v520, 0.0
      %v585 = vmax.f32 %v525, 0.0
      %v586 = vmax.f32 %v528, 0.0
      %v587 = vmax.f32 %v533, 0.0
      %v588 = vmax.f32 %v536, 0.0
      %v589 = vmax.f32 %v541, 0.0
      %v590 = vmax.f32 %v544, 0.0
      %v591 = vmax.f32 %v549, 0.0
      %v592 = vmax.f32 %v552, 0.0
      %v593 = vmax.f32 %v557, 0.0
      %v594 = vmax.f32 %v560, 0.0
      %v595 = vpack.c.bf16 %v564, %v563
      %v596 = vpack.c.bf16 %v566, %v565
      %v597 = vpack.c.bf16 %v568, %v567
      %v598 = vpack.c.bf16 %v570, %v569
      %v599 = vpack.c.bf16 %v572, %v571
      %v600 = vpack.c.bf16 %v574, %v573
      %v601 = vpack.c.bf16 %v576, %v575
      %v602 = vpack.c.bf16 %v578, %v577
      %v603 = vpack.c.bf16 %v580, %v579
      %v604 = vpack.c.bf16 %v582, %v581
      %v605 = vpack.c.bf16 %v584, %v583
      %v606 = vpack.c.bf16 %v586, %v585
      %v607 = vpack.c.bf16 %v588, %v587
      %v608 = vpack.c.bf16 %v590, %v589
      %v609 = vpack.c.bf16 %v592, %v591
      %v610 = vpack.c.bf16 %v594, %v593
      %v627 = vunpack.c.l.b16 %v595
      %v628 = vunpack.c.h.b16 %v595
      %v629 = vunpack.c.l.b16 %v596
      %v630 = vunpack.c.h.b16 %v596
      %v631 = vunpack.c.l.b16 %v597
      %v632 = vunpack.c.h.b16 %v597
      %v633 = vunpack.c.l.b16 %v598
      %v634 = vunpack.c.h.b16 %v598
      %v635 = vunpack.c.l.b16 %v599
      %v636 = vunpack.c.h.b16 %v599
      %v637 = vunpack.c.l.b16 %v600
      %v638 = vunpack.c.h.b16 %v600
      %v639 = vunpack.c.l.b16 %v601
      %v640 = vunpack.c.h.b16 %v601
      %v641 = vunpack.c.l.b16 %v602
      %v642 = vunpack.c.h.b16 %v602
      %v643 = vunpack.c.l.b16 %v603
      %v644 = vunpack.c.h.b16 %v603
      %v645 = vunpack.c.l.b16 %v604
      %v646 = vunpack.c.h.b16 %v604
      %v647 = vunpack.c.l.b16 %v605
      %v648 = vunpack.c.h.b16 %v605
      %v649 = vunpack.c.l.b16 %v606
      %v650 = vunpack.c.h.b16 %v606
      %v651 = vunpack.c.l.b16 %v607
      %v652 = vunpack.c.h.b16 %v607
      %v653 = vunpack.c.l.b16 %v608
      %v654 = vunpack.c.h.b16 %v608
      %v655 = vunpack.c.l.b16 %v609
      %v656 = vunpack.c.h.b16 %v609
      %v657 = vunpack.c.l.b16 %v610
      %v658 = vunpack.c.h.b16 %v610
      %v659 = vpack.c.b16 %v627, %v627
      %v660 = vpack.c.b16 %v628, %v628
      %v661 = vpack.c.b16 %v629, %v629
      %v662 = vpack.c.b16 %v630, %v630
      %v663 = vpack.c.b16 %v631, %v631
      %v664 = vpack.c.b16 %v632, %v632
      %v665 = vpack.c.b16 %v633, %v633
      %v666 = vpack.c.b16 %v634, %v634
      %v667 = vpack.c.b16 %v635, %v635
      %v668 = vpack.c.b16 %v636, %v636
      %v669 = vpack.c.b16 %v637, %v637
      %v670 = vpack.c.b16 %v638, %v638
      %v671 = vpack.c.b16 %v639, %v639
      %v672 = vpack.c.b16 %v640, %v640
      %v673 = vpack.c.b16 %v641, %v641
      %v674 = vpack.c.b16 %v642, %v642
      %v675 = vpack.c.b16 %v643, %v643
      %v676 = vpack.c.b16 %v644, %v644
      %v677 = vpack.c.b16 %v645, %v645
      %v678 = vpack.c.b16 %v646, %v646
      %v679 = vpack.c.b16 %v647, %v647
      %v680 = vpack.c.b16 %v648, %v648
      %v681 = vpack.c.b16 %v649, %v649
      %v682 = vpack.c.b16 %v650, %v650
      %v683 = vpack.c.b16 %v651, %v651
      %v684 = vpack.c.b16 %v652, %v652
      %v685 = vpack.c.b16 %v653, %v653
      %v686 = vpack.c.b16 %v654, %v654
      %v687 = vpack.c.b16 %v655, %v655
      %v688 = vpack.c.b16 %v656, %v656
      %v689 = vpack.c.b16 %v657, %v657
      %v690 = vpack.c.b16 %v658, %v658
      %723 = vst [vmem:[%s223] sm:$0xf] %v659
      %724 = vst [vmem:[%s223 + $0x4] sm:$0xf] %v660
      %725 = vst [vmem:[%s223 + $0x8] sm:$0xf] %v661
      %726 = vst [vmem:[%s223 + $0xc] sm:$0xf] %v662
      %727 = vst [vmem:[%s223 + $0x10] sm:$0xf] %v663
      %728 = vst [vmem:[%s223 + $0x14] sm:$0xf] %v664
      %729 = vst [vmem:[%s223 + $0x18] sm:$0xf] %v665
      %730 = vst [vmem:[%s223 + $0x1c] sm:$0xf] %v666
      %731 = vst [vmem:[%s223 + $0x20] sm:$0xf] %v667
      %732 = vst [vmem:[%s223 + $0x24] sm:$0xf] %v668
      %733 = vst [vmem:[%s223 + $0x28] sm:$0xf] %v669
      %734 = vst [vmem:[%s223 + $0x2c] sm:$0xf] %v670
      %735 = vst [vmem:[%s223 + $0x30] sm:$0xf] %v671
      %736 = vst [vmem:[%s223 + $0x34] sm:$0xf] %v672
      %737 = vst [vmem:[%s223 + $0x38] sm:$0xf] %v673
      %738 = vst [vmem:[%s223 + $0x3c] sm:$0xf] %v674
      %739 = vst [vmem:[%s223 + $0x40] sm:$0xf] %v675
      %740 = vst [vmem:[%s223 + $0x44] sm:$0xf] %v676
      %741 = vst [vmem:[%s223 + $0x48] sm:$0xf] %v677
      %742 = vst [vmem:[%s223 + $0x4c] sm:$0xf] %v678
      %743 = vst [vmem:[%s223 + $0x50] sm:$0xf] %v679
      %744 = vst [vmem:[%s223 + $0x54] sm:$0xf] %v680
      %745 = vst [vmem:[%s223 + $0x58] sm:$0xf] %v681
      %746 = vst [vmem:[%s223 + $0x5c] sm:$0xf] %v682
      %747 = vst [vmem:[%s223 + $0x60] sm:$0xf] %v683
      %748 = vst [vmem:[%s223 + $0x64] sm:$0xf] %v684
      %749 = vst [vmem:[%s223 + $0x68] sm:$0xf] %v685
      %750 = vst [vmem:[%s223 + $0x6c] sm:$0xf] %v686
      %751 = vst [vmem:[%s223 + $0x70] sm:$0xf] %v687
      %752 = vst [vmem:[%s223 + $0x74] sm:$0xf] %v688
      %753 = vst [vmem:[%s223 + $0x78] sm:$0xf] %v689
      %754 = vst [vmem:[%s223 + $0x7c] sm:$0xf] %v690
      %s755 = smul.u32 32, %s18
      %p756 = scmp.lt.s32.totalorder %s755, 63
      %s757 = scalar_select %p756, %s755, 63
      %p758 = scmp.lt.s32.totalorder %s19, 0
      %s759 = scalar_select %p758, %s19, 0
      %s760 = sadd.s32 %s759, %s757
      %s761 = smul.addr %s760, 4
      %s762 = scalar_lea.vmem %s3, %s761
      // Predicated region
      $region33: #{_forward.3} parent=31 // pred_check
        %p763 = pneg %p124
      $region34: #{_forward.3} parent=31 // pred_check_branch
        %765 = sbr.rel (%p763) target = $region36
      $region35: #{_forward.3} parent=31 // pred_region
        %s766 = smul.u32 32, %s18
      $region36: #{_forward.3} parent=31 // pred_fallthru
        _
    $region32: #{_forward.3} parent=5 // pred_fallthru
      _
    %p767 = scmp.le.s32.totalorder 2, %s9
    // Predicated region
    $region37: #{_forward.3} parent=5 // pred_check
      %p768 = pneg %p767
    $region38: #{_forward.3} parent=5 // pred_check_branch
      %770 = sbr.rel (%p768) target = $region40
    $region39: #{_forward.3} parent=5 // pred_region
      %s771 = ssub.s32 %s9, 2
      // Predicated region
      $region41: #{_forward.3} parent=39 // pred_check
        %p772 = pneg %p130
      $region42: #{_forward.3} parent=39 // pred_check_branch
        %774 = sbr.rel (%p772) target = $region44
      $region43: #{_forward.3} parent=39 // pred_region
        %s775 = smul.u32 32, %s20
        %p776 = scmp.lt.s32.totalorder %s775, 63
        %s777 = scalar_select %p776, %s775, 63
        %p778 = scmp.lt.s32.totalorder %s21, 0
        %s779 = scalar_select %p778, %s21, 0
        %s780 = sadd.s32 %s779, %s777
        %s781 = smul.addr %s780, 4
        %s782 = scalar_lea.vmem %s3, %s781
      $region44: #{_forward.3} parent=39 // pred_fallthru
        _
    $region40: #{_forward.3} parent=5 // pred_fallthru
      _
  $region6: #{_forward.3} parent=0 // loop_footer
    %s13 = sadd.s32 1, %s9
  $region7: #{_forward.3} parent=0 // loop_footer_branch
    %8 = sbr.rel target = $region3
  $region8: #{_forward.3} parent=0 // loop_exit
    _

// kernel: _forward.5
$region0: #{_forward.5}
  #allocation0 [shape = 'u32[]', space=smem, size = 0x4, offset = 0x4, fixed_abs, tag = 'smem constant byte address 0x4 - core index']
  #allocation1 [shape = 'u32[144,128]{1,0:T(1,128)}', space=vmem, size = 0x12000, scoped, tag = 'internal scratch']
  %s0 = inlined_call_operand.vmem [shape: bf16[512,128], index: 0, kind: input, shape index: {}]
  %s1 = inlined_call_operand.vmem [shape: bf16[128,128], index: 1, kind: input, shape index: {}]
  %s2 = inlined_call_operand.vmem [shape: f32[1,128], index: 2, kind: input, shape index: {}]
  %s3 = inlined_call_operand.vmem [shape: f32[512,128], index: 3, kind: input, shape index: {}]
  %s4 = inlined_call_operand.vmem [shape: f32[512,128], index: 4, kind: output, shape index: {}]
  %s5 = sld [smem:[#allocation0]]
  $region49: #{_forward.5} parent=0
    _
  %s7 = ssub.s32 1, %s5
  %s8 = scalar_select 0, %s7, %s5
  loop: start=0, step=1, limit=4
  $region2: #{_forward.5} parent=0 // loop_pre_header
    _
  $region3: #{_forward.5} parent=0 // loop_header
    %s10 = sphi 0, %s14
    %p11 = scmp.ge.s32.totalorder %s10, 4
    %s17 = sphi 0, %s29
    %s18 = sphi 0, %s25
    %s19 = sphi 0, %s17
    %s20 = sphi 0, %s18
    %s21 = sphi 0, %s19
    %s22 = sphi 0, %s20
    %s32 = sphi 0, %s34
    %s35 = sphi 0, %s32
    %s36 = sphi 0, %s35
    %s52 = sphi 0, %s36
    %s58 = sphi 0, %s60
    %s61 = sphi 0, %s58
    %s62 = sphi 0, %s61
    %s78 = sphi 0, %s62
    %s84 = sphi 0, %s86
    %s87 = sphi 0, %s84
    %s88 = sphi 0, %s87
    %s104 = sphi 0, %s88
    %s112 = sphi 0, %s114
    %s115 = sphi 0, %s112
    %s116 = sphi 0, %s115
    %s132 = sphi 0, %s116
    %s140 = sphi 0, %s142
    %s143 = sphi 0, %s140
    %s144 = sphi 0, %s143
    %s160 = sphi 0, %s144
  $region4: #{_forward.5} parent=0 // loop_header_branch
    %13 = sbr.rel (%p11) target = $region8
  $region5: #{_forward.5} parent=0 // loop_body
    %s15 = ssub.s32 %s10, 1
    %s16 = ssub.s32 %s10, 2
    %s23 = sadd.s32 1, %s18
    %p24 = scmp.ge.s32.totalorder %s23, 1
    %s25 = scalar_select %p24, 0, %s23
    %s26 = sadd.s32 1, %s17
    %s27 = scalar_select %p24, %s26, %s17
    %p28 = scmp.ge.s32.totalorder %s27, 2
    %s29 = scalar_select %p28, 0, %s27
    %s30 = ssub.s32 %s17, %s29
    %p31 = scmp.eq.s32.totalorder %s30, 0
    %s33 = sadd.s32 %s32, 1
    %s34 = scalar_select %p31, %s32, %s33
    %p37 = pneg %p31
    %p38 = scmp.eq.s32.totalorder %s10, 1
    %p39 = por %p37, %p38
    %p40 = scmp.ne.s32.totalorder %s32, %s35
    %p41 = scmp.eq.s32.totalorder %s10, 0
    %p42 = por %p40, %p41
    %p43 = scmp.ne.s32.totalorder %s32, %s35
    %p44 = scmp.eq.s32.totalorder %s15, 1
    %p45 = por %p43, %p44
    %p46 = scmp.ne.s32.totalorder %s35, %s36
    %p47 = scmp.eq.s32.totalorder %s15, 0
    %p48 = por %p46, %p47
    %p49 = scmp.ne.s32.totalorder %s35, %s36
    %p50 = scmp.eq.s32.totalorder %s16, 1
    %p51 = por %p49, %p50
    %p53 = scmp.ne.s32.totalorder %s36, %s52
    %p54 = scmp.eq.s32.totalorder %s16, 0
    %p55 = por %p53, %p54
    %s56 = ssub.s32 %s18, %s25
    %p57 = scmp.eq.s32.totalorder %s56, 0
    %s59 = sadd.s32 %s58, 1
    %s60 = scalar_select %p57, %s58, %s59
    %p63 = pneg %p57
    %p64 = scmp.eq.s32.totalorder %s10, 1
    %p65 = por %p63, %p64
    %p66 = scmp.ne.s32.totalorder %s58, %s61
    %p67 = scmp.eq.s32.totalorder %s10, 0
    %p68 = por %p66, %p67
    %p69 = scmp.ne.s32.totalorder %s58, %s61
    %p70 = scmp.eq.s32.totalorder %s15, 1
    %p71 = por %p69, %p70
    %p72 = scmp.ne.s32.totalorder %s61, %s62
    %p73 = scmp.eq.s32.totalorder %s15, 0
    %p74 = por %p72, %p73
    %p75 = scmp.ne.s32.totalorder %s61, %s62
    %p76 = scmp.eq.s32.totalorder %s16, 1
    %p77 = por %p75, %p76
    %p79 = scmp.ne.s32.totalorder %s62, %s78
    %p80 = scmp.eq.s32.totalorder %s16, 0
    %p81 = por %p79, %p80
    %s82 = ssub.s32 %s18, %s25
    %p83 = scmp.eq.s32.totalorder %s82, 0
    %s85 = sadd.s32 %s84, 1
    %s86 = scalar_select %p83, %s84, %s85
    %p89 = pneg %p83
    %p90 = scmp.eq.s32.totalorder %s10, 1
    %p91 = por %p89, %p90
    %p92 = scmp.ne.s32.totalorder %s84, %s87
    %p93 = scmp.eq.s32.totalorder %s10, 0
    %p94 = por %p92, %p93
    %p95 = scmp.ne.s32.totalorder %s84, %s87
    %p96 = scmp.eq.s32.totalorder %s15, 1
    %p97 = por %p95, %p96
    %p98 = scmp.ne.s32.totalorder %s87, %s88
    %p99 = scmp.eq.s32.totalorder %s15, 0
    %p100 = por %p98, %p99
    %p101 = scmp.ne.s32.totalorder %s87, %s88
    %p102 = scmp.eq.s32.totalorder %s16, 1
    %p103 = por %p101, %p102
    %p105 = scmp.ne.s32.totalorder %s88, %s104
    %p106 = scmp.eq.s32.totalorder %s16, 0
    %p107 = por %p105, %p106
    %s108 = ssub.s32 %s17, %s29
    %s109 = ssub.s32 %s18, %s25
    %s110 = sor.u32 %s108, %s109
    %p111 = scmp.eq.s32.totalorder %s110, 0
    %s113 = sadd.s32 %s112, 1
    %s114 = scalar_select %p111, %s112, %s113
    %p117 = pneg %p111
    %p118 = scmp.eq.s32.totalorder %s10, 1
    %p119 = por %p117, %p118
    %p120 = scmp.ne.s32.totalorder %s112, %s115
    %p121 = scmp.eq.s32.totalorder %s10, 0
    %p122 = por %p120, %p121
    %p123 = scmp.ne.s32.totalorder %s112, %s115
    %p124 = scmp.eq.s32.totalorder %s15, 1
    %p125 = por %p123, %p124
    %p126 = scmp.ne.s32.totalorder %s115, %s116
    %p127 = scmp.eq.s32.totalorder %s15, 0
    %p128 = por %p126, %p127
    %p129 = scmp.ne.s32.totalorder %s115, %s116
    %p130 = scmp.eq.s32.totalorder %s16, 1
    %p131 = por %p129, %p130
    %p133 = scmp.ne.s32.totalorder %s116, %s132
    %p134 = scmp.eq.s32.totalorder %s16, 0
    %p135 = por %p133, %p134
    %s136 = ssub.s32 %s17, %s29
    %s137 = ssub.s32 %s18, %s25
    %s138 = sor.u32 %s136, %s137
    %p139 = scmp.eq.s32.totalorder %s138, 0
    %s141 = sadd.s32 %s140, 1
    %s142 = scalar_select %p139, %s140, %s141
    %p145 = pneg %p139
    %p146 = scmp.eq.s32.totalorder %s10, 1
    %p147 = por %p145, %p146
    %p148 = scmp.ne.s32.totalorder %s140, %s143
    %p149 = scmp.eq.s32.totalorder %s10, 0
    %p150 = por %p148, %p149
    %p151 = scmp.ne.s32.totalorder %s140, %s143
    %p152 = scmp.eq.s32.totalorder %s15, 1
    %p153 = por %p151, %p152
    %p154 = scmp.ne.s32.totalorder %s143, %s144
    %p155 = scmp.eq.s32.totalorder %s15, 0
    %p156 = por %p154, %p155
    %p157 = scmp.ne.s32.totalorder %s143, %s144
    %p158 = scmp.eq.s32.totalorder %s16, 1
    %p159 = por %p157, %p158
    %p161 = scmp.ne.s32.totalorder %s144, %s160
    %p162 = scmp.eq.s32.totalorder %s16, 0
    %p163 = por %p161, %p162
    %p164 = scmp.le.s32.totalorder 1, %s10
    %p165 = scmp.lt.s32.totalorder %s10, 3
    %p166 = pnand %p164, %p165
    %p167 = pneg %p166
    // Predicated region
    $region9: #{_forward.5} parent=5 // pred_check
      _
    $region10: #{_forward.5} parent=5 // pred_check_branch
      %169 = sbr.rel (%p166) target = $region12
    $region11: #{_forward.5} parent=5 // pred_region
      %s170 = ssub.s32 %s10, 1
      // Predicated region
      $region13: #{_forward.5} parent=11 // pred_check
        %p171 = pneg %p74
      $region14: #{_forward.5} parent=11 // pred_check_branch
        %173 = sbr.rel (%p171) target = $region16
      $region15: #{_forward.5} parent=11 // pred_region
        %p174 = scmp.lt.s32.totalorder %s20, 0
        %s175 = scalar_select %p174, %s20, 0
        %s176 = smul.addr %s175, 4
        %s177 = scalar_lea.vmem %s1, %s176
      $region16: #{_forward.5} parent=11 // pred_fallthru
        _
      // Predicated region
      $region17: #{_forward.5} parent=11 // pred_check
        %p178 = pneg %p100
      $region18: #{_forward.5} parent=11 // pred_check_branch
        %180 = sbr.rel (%p178) target = $region20
      $region19: #{_forward.5} parent=11 // pred_region
        %p181 = scmp.lt.s32.totalorder %s20, 0
        %s182 = scalar_select %p181, %s20, 0
        %s183 = scalar_lea.vmem %s2, %s182
      $region20: #{_forward.5} parent=11 // pred_fallthru
        _
    $region12: #{_forward.5} parent=5 // pred_fallthru
      _
    %p184 = scmp.lt.s32.totalorder %s10, 2
    // Predicated region
    $region21: #{_forward.5} parent=5 // pred_check
      %p185 = pneg %p184
    $region22: #{_forward.5} parent=5 // pred_check_branch
      %187 = sbr.rel (%p185) target = $region24
    $region23: #{_forward.5} parent=5 // pred_region
      // Predicated region
      $region25: #{_forward.5} parent=23 // pred_check
        %p188 = pneg %p42
      $region26: #{_forward.5} parent=23 // pred_check_branch
        %190 = sbr.rel (%p188) target = $region28
      $region27: #{_forward.5} parent=23 // pred_region
        %s191 = smul.u32 32, %s17
        %p192 = scmp.lt.s32.totalorder %s191, 63
        %s193 = scalar_select %p192, %s191, 63
        %s194 = smul.addr %s193, 4
        %s195 = scalar_lea.vmem %s0, %s194
        %s196 = smul.u32 32, %s17
      $region28: #{_forward.5} parent=23 // pred_fallthru
        _
      // Predicated region
      $region29: #{_forward.5} parent=23 // pred_check
        %p197 = pneg %p122
      $region30: #{_forward.5} parent=23 // pred_check_branch
        %199 = sbr.rel (%p197) target = $region32
      $region31: #{_forward.5} parent=23 // pred_region
        %s200 = smul.u32 32, %s17
        %p201 = scmp.lt.s32.totalorder %s200, 63
        %s202 = scalar_select %p201, %s200, 63
        %p203 = scmp.lt.s32.totalorder %s18, 0
        %s204 = scalar_select %p203, %s18, 0
        %s205 = sadd.s32 %s204, %s202
        %s206 = smul.addr %s205, 8
        %s207 = scalar_lea.vmem %s3, %s206
        %s208 = smul.u32 32, %s17
      $region32: #{_forward.5} parent=23 // pred_fallthru
        _
    $region24: #{_forward.5} parent=5 // pred_fallthru
      _
    %p209 = scmp.le.s32.totalorder 1, %s10
    %p210 = scmp.lt.s32.totalorder %s10, 3
    %p211 = pnand %p209, %p210
    %p212 = pneg %p211
    // Predicated region
    $region33: #{_forward.5} parent=5 // pred_check
      _
    $region34: #{_forward.5} parent=5 // pred_check_branch
      %214 = sbr.rel (%p211) target = $region36
    $region35: #{_forward.5} parent=5 // pred_region
      %s215 = ssub.s32 %s10, 1
      %s216 = smul.u32 32, %s19
      %p217 = scmp.lt.s32.totalorder %s216, 63
      %s218 = scalar_select %p217, %s216, 63
      %s219 = smul.addr %s218, 4
      %s220 = scalar_lea.vmem %s0, %s219
      %p221 = pneg %p48
      %p222 = pneg %p45
      %p223 = scmp.lt.s32.totalorder %s20, 0
      %s224 = scalar_select %p223, %s20, 0
      %s225 = smul.addr %s224, 4
      %s226 = scalar_lea.vmem %s1, %s225
      %p227 = pneg %p74
      %p228 = pneg %p71
      %p229 = scmp.lt.s32.totalorder %s20, 0
      %s230 = scalar_select %p229, %s20, 0
      %s231 = scalar_lea.vmem %s2, %s230
      %p232 = pneg %p100
      %p233 = pneg %p97
      %s234 = smul.u32 32, %s19
      %p235 = scmp.lt.s32.totalorder %s234, 63
      %s236 = scalar_select %p235, %s234, 63
      %p237 = scmp.lt.s32.totalorder %s20, 0
      %s238 = scalar_select %p237, %s20, 0
      %s239 = sadd.s32 %s238, %s236
      %s240 = smul.addr %s239, 8
      %s241 = scalar_lea.vmem %s3, %s240
      %p242 = pneg %p128
      %p243 = pneg %p125
      %p244 = pneg %p156
      %p245 = pneg %p153
      %s246 = smul.u32 32, %s19
      %p247 = scmp.lt.s32.totalorder %s246, 63
      %s248 = scalar_select %p247, %s246, 63
      %p249 = scmp.lt.s32.totalorder %s20, 0
      %s250 = scalar_select %p249, %s20, 0
      %s251 = sadd.s32 %s250, %s248
      %s252 = smul.addr %s251, 8
      %s253 = scalar_lea.vmem %s4, %s252
      %s254 = smul.u32 32, %s19
      %p255 = scmp.lt.s32.totalorder %s254, 63
      %s256 = scalar_select %p255, %s254, 63
      %s257 = smul.addr %s256, 4
      %s258 = scalar_lea.vmem %s0, %s257
      %s259 = smul.u32 32, %s19
      %p260 = scmp.lt.s32.totalorder %s20, 0
      %s261 = scalar_select %p260, %s20, 0
      %s262 = smul.addr %s261, 4
      %s263 = scalar_lea.vmem %s1, %s262
      %p264 = scmp.lt.s32.totalorder %s20, 0
      %s265 = scalar_select %p264, %s20, 0
      %s266 = scalar_lea.vmem %s2, %s265
      %s267 = smul.u32 32, %s19
      %p268 = scmp.lt.s32.totalorder %s267, 63
      %s269 = scalar_select %p268, %s267, 63
      %p270 = scmp.lt.s32.totalorder %s20, 0
      %s271 = scalar_select %p270, %s20, 0
      %s272 = sadd.s32 %s271, %s269
      %s273 = smul.addr %s272, 8
      %s274 = scalar_lea.vmem %s3, %s273
      %s275 = smul.u32 32, %s19
      %s276 = smul.u32 32, %s19
      %p277 = scmp.lt.s32.totalorder %s276, 63
      %s278 = scalar_select %p277, %s276, 63
      %p279 = scmp.lt.s32.totalorder %s20, 0
      %s280 = scalar_select %p279, %s20, 0
      %s281 = sadd.s32 %s280, %s278
      %s282 = smul.addr %s281, 8
      %s283 = scalar_lea.vmem %s4, %s282
      %s284 = smul.u32 32, %s19
      %v286 = vld [vmem:[%s258] sm:$0xf]
      %v287 = vld [vmem:[%s258 + $0x4] sm:$0xf]
      %v288 = vld [vmem:[%s258 + $0x8] sm:$0xf]
      %v289 = vld [vmem:[%s258 + $0xc] sm:$0xf]
      %v290 = vld [vmem:[%s258 + $0x10] sm:$0xf]
      %v291 = vld [vmem:[%s258 + $0x14] sm:$0xf]
      %v292 = vld [vmem:[%s258 + $0x18] sm:$0xf]
      %v293 = vld [vmem:[%s258 + $0x1c] sm:$0xf]
      %v294 = vld [vmem:[%s258 + $0x20] sm:$0xf]
      %v295 = vld [vmem:[%s258 + $0x24] sm:$0xf]
      %v296 = vld [vmem:[%s258 + $0x28] sm:$0xf]
      %v297 = vld [vmem:[%s258 + $0x2c] sm:$0xf]
      %v298 = vld [vmem:[%s258 + $0x30] sm:$0xf]
      %v299 = vld [vmem:[%s258 + $0x34] sm:$0xf]
      %v300 = vld [vmem:[%s258 + $0x38] sm:$0xf]
      %v301 = vld [vmem:[%s258 + $0x3c] sm:$0xf]
      %v302 = vld [vmem:[%s258 + $0x40] sm:$0xf]
      %v303 = vld [vmem:[%s258 + $0x44] sm:$0xf]
      %v304 = vld [vmem:[%s258 + $0x48] sm:$0xf]
      %v305 = vld [vmem:[%s258 + $0x4c] sm:$0xf]
      %v306 = vld [vmem:[%s258 + $0x50] sm:$0xf]
      %v307 = vld [vmem:[%s258 + $0x54] sm:$0xf]
      %v308 = vld [vmem:[%s258 + $0x58] sm:$0xf]
      %v309 = vld [vmem:[%s258 + $0x5c] sm:$0xf]
      %v310 = vld [vmem:[%s258 + $0x60] sm:$0xf]
      %v311 = vld [vmem:[%s258 + $0x64] sm:$0xf]
      %v312 = vld [vmem:[%s258 + $0x68] sm:$0xf]
      %v313 = vld [vmem:[%s258 + $0x6c] sm:$0xf]
      %v314 = vld [vmem:[%s258 + $0x70] sm:$0xf]
      %v315 = vld [vmem:[%s258 + $0x74] sm:$0xf]
      %v316 = vld [vmem:[%s258 + $0x78] sm:$0xf]
      %v317 = vld [vmem:[%s258 + $0x7c] sm:$0xf]
      %v318 = vld [vmem:[%s263] sm:$0xf]
      %v319 = vld [vmem:[%s263 + $0x4] sm:$0xf]
      %v320 = vld [vmem:[%s263 + $0x8] sm:$0xf]
      %v321 = vld [vmem:[%s263 + $0xc] sm:$0xf]
      %v322 = vld [vmem:[%s263 + $0x10] sm:$0xf]
      %v323 = vld [vmem:[%s263 + $0x14] sm:$0xf]
      %v324 = vld [vmem:[%s263 + $0x18] sm:$0xf]
      %v325 = vld [vmem:[%s263 + $0x1c] sm:$0xf]
      %v326 = vld [vmem:[%s263 + $0x20] sm:$0xf]
      %v327 = vld [vmem:[%s263 + $0x24] sm:$0xf]
      %v328 = vld [vmem:[%s263 + $0x28] sm:$0xf]
      %v329 = vld [vmem:[%s263 + $0x2c] sm:$0xf]
      %v330 = vld [vmem:[%s263 + $0x30] sm:$0xf]
      %v331 = vld [vmem:[%s263 + $0x34] sm:$0xf]
      %v332 = vld [vmem:[%s263 + $0x38] sm:$0xf]
      %v333 = vld [vmem:[%s263 + $0x3c] sm:$0xf]
      %v334 = vld [vmem:[%s266] sm:$0x1]
      %v336 = vlaneseq
      %v337 = vshrl.u32 %v336, 7
      %v338 = vsub.s32 0, %v337
      %v339 = vrot.slane %v334, %v338
      %v373 = vunpack.c.l.b16 %v286
      %v374 = vunpack.c.l.b16 %v287
      %v375 = vunpack.c.l.b16 %v288
      %v376 = vunpack.c.l.b16 %v289
      %v377 = vunpack.c.l.b16 %v290
      %v378 = vunpack.c.l.b16 %v291
      %v379 = vunpack.c.l.b16 %v292
      %v380 = vunpack.c.l.b16 %v293
      %v381 = vunpack.c.l.b16 %v294
      %v382 = vunpack.c.l.b16 %v295
      %v383 = vunpack.c.l.b16 %v296
      %v384 = vunpack.c.l.b16 %v297
      %v385 = vunpack.c.l.b16 %v298
      %v386 = vunpack.c.l.b16 %v299
      %v387 = vunpack.c.l.b16 %v300
      %v388 = vunpack.c.l.b16 %v301
      %v389 = vunpack.c.l.b16 %v302
      %v390 = vunpack.c.l.b16 %v303
      %v391 = vunpack.c.l.b16 %v304
      %v392 = vunpack.c.l.b16 %v305
      %v393 = vunpack.c.l.b16 %v306
      %v394 = vunpack.c.l.b16 %v307
      %v395 = vunpack.c.l.b16 %v308
      %v396 = vunpack.c.l.b16 %v309
      %v397 = vunpack.c.l.b16 %v310
      %v398 = vunpack.c.l.b16 %v311
      %v399 = vunpack.c.l.b16 %v312
      %v400 = vunpack.c.l.b16 %v313
      %v401 = vunpack.c.l.b16 %v314
      %v402 = vunpack.c.l.b16 %v315
      %v403 = vunpack.c.l.b16 %v316
      %v404 = vunpack.c.l.b16 %v317
      %v405 = vpack.c.b16 %v374, %v373
      %v406 = vpack.c.b16 %v376, %v375
      %v407 = vpack.c.b16 %v378, %v377
      %v408 = vpack.c.b16 %v380, %v379
      %v409 = vpack.c.b16 %v382, %v381
      %v410 = vpack.c.b16 %v384, %v383
      %v411 = vpack.c.b16 %v386, %v385
      %v412 = vpack.c.b16 %v388, %v387
      %v413 = vpack.c.b16 %v390, %v389
      %v414 = vpack.c.b16 %v392, %v391
      %v415 = vpack.c.b16 %v394, %v393
      %v416 = vpack.c.b16 %v396, %v395
      %v417 = vpack.c.b16 %v398, %v397
      %v418 = vpack.c.b16 %v400, %v399
      %v419 = vpack.c.b16 %v402, %v401
      %v420 = vpack.c.b16 %v404, %v403
      %v453 = vunpack.c.l.b16 %v318
      %v454 = vunpack.c.l.b16 %v319
      %v455 = vunpack.c.l.b16 %v320
      %v456 = vunpack.c.l.b16 %v321
      %v457 = vunpack.c.l.b16 %v322
      %v458 = vunpack.c.l.b16 %v323
      %v459 = vunpack.c.l.b16 %v324
      %v460 = vunpack.c.l.b16 %v325
      %v461 = vunpack.c.l.b16 %v326
      %v462 = vunpack.c.l.b16 %v327
      %v463 = vunpack.c.l.b16 %v328
      %v464 = vunpack.c.l.b16 %v329
      %v465 = vunpack.c.l.b16 %v330
      %v466 = vunpack.c.l.b16 %v331
      %v467 = vunpack.c.l.b16 %v332
      %v468 = vunpack.c.l.b16 %v333
      %v469 = vpack.c.b16 %v454, %v453
      %v470 = vpack.c.b16 %v456, %v455
      %v471 = vpack.c.b16 %v458, %v457
      %v472 = vpack.c.b16 %v460, %v459
      %v473 = vpack.c.b16 %v462, %v461
      %v474 = vpack.c.b16 %v464, %v463
      %v475 = vpack.c.b16 %v466, %v465
      %v476 = vpack.c.b16 %v468, %v467
      %485 = vmatprep.subr.bf16.mxu0 0
      %486 = vmatpush1.bf16.msra.mxu0 %v469
      %487 = vmatprep.subr.bf16.mxu0 0
      %488 = vmatpush1.bf16.msra.mxu0 %v470
      %489 = vmatprep.subr.bf16.mxu0 0
      %490 = vmatpush1.bf16.msra.mxu0 %v471
      %491 = vmatprep.subr.bf16.mxu0 0
      %492 = vmatpush1.bf16.msra.mxu0 %v472
      %493 = vmatprep.subr.bf16.mxu0 0
      %494 = vmatpush1.bf16.msra.mxu0 %v473
      %495 = vmatprep.subr.bf16.mxu0 0
      %496 = vmatpush1.bf16.msra.mxu0 %v474
      %497 = vmatprep.subr.bf16.mxu0 0
      %498 = vmatpush1.bf16.msra.mxu0 %v475
      %499 = vmatprep.subr.bf16.mxu0 0
      %500 = vmatpush1.bf16.msra.mxu0 %v476
      %501 = vmatprep.subr.bf16.mxu0 0
      %502 = vmatpush1.bf16.msra.mxu0 0
      %503 = vmatprep.subr.bf16.mxu0 0
      %504 = vmatpush1.bf16.msra.mxu0 0
      %505 = vmatprep.subr.bf16.mxu0 0
      %506 = vmatpush1.bf16.msra.mxu0 0
      %507 = vmatprep.subr.bf16.mxu0 0
      %508 = vmatpush1.bf16.msra.mxu0 0
      %509 = vmatprep.subr.bf16.mxu0 0
      %510 = vmatpush1.bf16.msra.mxu0 0
      %511 = vmatprep.subr.bf16.mxu0 0
      %512 = vmatpush1.bf16.msra.mxu0 0
      %513 = vmatprep.subr.bf16.mxu0 0
      %514 = vmatpush1.bf16.msra.mxu0 0
      %515 = vmatprep.subr.bf16.mxu0 0
      %516 = vmatpush1.bf16.msra.mxu0 0
      %517 = vmatprep.mubr.bf16.mxu0 0
      %518 = vmatmul.mubr.bf16.gmra.mrb[0].mxu0 %v405
      %v519 = vpop.f32.mrb[0].mxu0
      %v520 = vadd.f32 %v339, %v519
      %v521 = vpop.f32.mrb[0].mxu0
      %v522 = vpop.f32.mrb[0].mxu0
      %v523 = vadd.f32 %v339, %v522
      %v524 = vpop.f32.mrb[0].mxu0
      %525 = vmatprep.mubr.bf16.mxu0 0
      %526 = vmatmul.mubr.bf16.gmra.mrb[0].mxu0 %v406
      %v527 = vpop.f32.mrb[0].mxu0
      %v528 = vadd.f32 %v339, %v527
      %v529 = vpop.f32.mrb[0].mxu0
      %v530 = vpop.f32.mrb[0].mxu0
      %v531 = vadd.f32 %v339, %v530
      %v532 = vpop.f32.mrb[0].mxu0
      %533 = vmatprep.mubr.bf16.mxu0 0
      %534 = vmatmul.mubr.bf16.gmra.mrb[0].mxu0 %v407
      %v535 = vpop.f32.mrb[0].mxu0
      %v536 = vadd.f32 %v339, %v535
      %v537 = vpop.f32.mrb[0].mxu0
      %v538 = vpop.f32.mrb[0].mxu0
      %v539 = vadd.f32 %v339, %v538
      %v540 = vpop.f32.mrb[0].mxu0
      %541 = vmatprep.mubr.bf16.mxu0 0
      %542 = vmatmul.mubr.bf16.gmra.mrb[0].mxu0 %v408
      %v543 = vpop.f32.mrb[0].mxu0
      %v544 = vadd.f32 %v339, %v543
      %v545 = vpop.f32.mrb[0].mxu0
      %v546 = vpop.f32.mrb[0].mxu0
      %v547 = vadd.f32 %v339, %v546
      %v548 = vpop.f32.mrb[0].mxu0
      %549 = vmatprep.mubr.bf16.mxu0 0
      %550 = vmatmul.mubr.bf16.gmra.mrb[0].mxu0 %v409
      %v551 = vpop.f32.mrb[0].mxu0
      %v552 = vadd.f32 %v339, %v551
      %v553 = vpop.f32.mrb[0].mxu0
      %v554 = vpop.f32.mrb[0].mxu0
      %v555 = vadd.f32 %v339, %v554
      %v556 = vpop.f32.mrb[0].mxu0
      %557 = vmatprep.mubr.bf16.mxu0 0
      %558 = vmatmul.mubr.bf16.gmra.mrb[0].mxu0 %v410
      %v559 = vpop.f32.mrb[0].mxu0
      %v560 = vadd.f32 %v339, %v559
      %v561 = vpop.f32.mrb[0].mxu0
      %v562 = vpop.f32.mrb[0].mxu0
      %v563 = vadd.f32 %v339, %v562
      %v564 = vpop.f32.mrb[0].mxu0
      %565 = vmatprep.mubr.bf16.mxu0 0
      %566 = vmatmul.mubr.bf16.gmra.mrb[0].mxu0 %v411
      %v567 = vpop.f32.mrb[0].mxu0
      %v568 = vadd.f32 %v339, %v567
      %v569 = vpop.f32.mrb[0].mxu0
      %v570 = vpop.f32.mrb[0].mxu0
      %v571 = vadd.f32 %v339, %v570
      %v572 = vpop.f32.mrb[0].mxu0
      %573 = vmatprep.mubr.bf16.mxu0 0
      %574 = vmatmul.mubr.bf16.gmra.mrb[0].mxu0 %v412
      %v575 = vpop.f32.mrb[0].mxu0
      %v576 = vadd.f32 %v339, %v575
      %v577 = vpop.f32.mrb[0].mxu0
      %v578 = vpop.f32.mrb[0].mxu0
      %v579 = vadd.f32 %v339, %v578
      %v580 = vpop.f32.mrb[0].mxu0
      %581 = vmatprep.mubr.bf16.mxu0 0
      %582 = vmatmul.mubr.bf16.gmra.mrb[0].mxu0 %v413
      %v583 = vpop.f32.mrb[0].mxu0
      %v584 = vadd.f32 %v339, %v583
      %v585 = vpop.f32.mrb[0].mxu0
      %v586 = vpop.f32.mrb[0].mxu0
      %v587 = vadd.f32 %v339, %v586
      %v588 = vpop.f32.mrb[0].mxu0
      %589 = vmatprep.mubr.bf16.mxu0 0
      %590 = vmatmul.mubr.bf16.gmra.mrb[0].mxu0 %v414
      %v591 = vpop.f32.mrb[0].mxu0
      %v592 = vadd.f32 %v339, %v591
      %v593 = vpop.f32.mrb[0].mxu0
      %v594 = vpop.f32.mrb[0].mxu0
      %v595 = vadd.f32 %v339, %v594
      %v596 = vpop.f32.mrb[0].mxu0
      %597 = vmatprep.mubr.bf16.mxu0 0
      %598 = vmatmul.mubr.bf16.gmra.mrb[0].mxu0 %v415
      %v599 = vpop.f32.mrb[0].mxu0
      %v600 = vadd.f32 %v339, %v599
      %v601 = vpop.f32.mrb[0].mxu0
      %v602 = vpop.f32.mrb[0].mxu0
      %v603 = vadd.f32 %v339, %v602
      %v604 = vpop.f32.mrb[0].mxu0
      %605 = vmatprep.mubr.bf16.mxu0 0
      %606 = vmatmul.mubr.bf16.gmra.mrb[0].mxu0 %v416
      %v607 = vpop.f32.mrb[0].mxu0
      %v608 = vadd.f32 %v339, %v607
      %v609 = vpop.f32.mrb[0].mxu0
      %v610 = vpop.f32.mrb[0].mxu0
      %v611 = vadd.f32 %v339, %v610
      %v612 = vpop.f32.mrb[0].mxu0
      %613 = vmatprep.mubr.bf16.mxu0 0
      %614 = vmatmul.mubr.bf16.gmra.mrb[0].mxu0 %v417
      %v615 = vpop.f32.mrb[0].mxu0
      %v616 = vadd.f32 %v339, %v615
      %v617 = vpop.f32.mrb[0].mxu0
      %v618 = vpop.f32.mrb[0].mxu0
      %v619 = vadd.f32 %v339, %v618
      %v620 = vpop.f32.mrb[0].mxu0
      %621 = vmatprep.mubr.bf16.mxu0 0
      %622 = vmatmul.mubr.bf16.gmra.mrb[0].mxu0 %v418
      %v623 = vpop.f32.mrb[0].mxu0
      %v624 = vadd.f32 %v339, %v623
      %v625 = vpop.f32.mrb[0].mxu0
      %v626 = vpop.f32.mrb[0].mxu0
      %v627 = vadd.f32 %v339, %v626
      %v628 = vpop.f32.mrb[0].mxu0
      %629 = vmatprep.mubr.bf16.mxu0 0
      %630 = vmatmul.mubr.bf16.gmra.mrb[0].mxu0 %v419
      %v631 = vpop.f32.mrb[0].mxu0
      %v632 = vadd.f32 %v339, %v631
      %v633 = vpop.f32.mrb[0].mxu0
      %v634 = vpop.f32.mrb[0].mxu0
      %v635 = vadd.f32 %v339, %v634
      %v636 = vpop.f32.mrb[0].mxu0
      %637 = vmatprep.mubr.bf16.mxu0 0
      %638 = vmatmul.mubr.bf16.gmra.mrb[0].mxu0 %v420
      %v639 = vpop.f32.mrb[0].mxu0
      %v640 = vadd.f32 %v339, %v639
      %v641 = vpop.f32.mrb[0].mxu0
      %v642 = vpop.f32.mrb[0].mxu0
      %v643 = vadd.f32 %v339, %v642
      %v644 = vpop.f32.mrb[0].mxu0
      %645 = vdwg.mxu0
      %v646 = vld [vmem:[%s274] sm:$0xff]
      %v647 = vld [vmem:[%s274 + $0x8] sm:$0xff]
      %v648 = vld [vmem:[%s274 + $0x10] sm:$0xff]
      %v649 = vld [vmem:[%s274 + $0x18] sm:$0xff]
      %v650 = vld [vmem:[%s274 + $0x20] sm:$0xff]
      %v651 = vld [vmem:[%s274 + $0x28] sm:$0xff]
      %v652 = vld [vmem:[%s274 + $0x30] sm:$0xff]
      %v653 = vld [vmem:[%s274 + $0x38] sm:$0xff]
      %v654 = vld [vmem:[%s274 + $0x40] sm:$0xff]
      %v655 = vld [vmem:[%s274 + $0x48] sm:$0xff]
      %v656 = vld [vmem:[%s274 + $0x50] sm:$0xff]
      %v657 = vld [vmem:[%s274 + $0x58] sm:$0xff]
      %v658 = vld [vmem:[%s274 + $0x60] sm:$0xff]
      %v659 = vld [vmem:[%s274 + $0x68] sm:$0xff]
      %v660 = vld [vmem:[%s274 + $0x70] sm:$0xff]
      %v661 = vld [vmem:[%s274 + $0x78] sm:$0xff]
      %v662 = vld [vmem:[%s274 + $0x80] sm:$0xff]
      %v663 = vld [vmem:[%s274 + $0x88] sm:$0xff]
      %v664 = vld [vmem:[%s274 + $0x90] sm:$0xff]
      %v665 = vld [vmem:[%s274 + $0x98] sm:$0xff]
      %v666 = vld [vmem:[%s274 + $0xa0] sm:$0xff]
      %v667 = vld [vmem:[%s274 + $0xa8] sm:$0xff]
      %v668 = vld [vmem:[%s274 + $0xb0] sm:$0xff]
      %v669 = vld [vmem:[%s274 + $0xb8] sm:$0xff]
      %v670 = vld [vmem:[%s274 + $0xc0] sm:$0xff]
      %v671 = vld [vmem:[%s274 + $0xc8] sm:$0xff]
      %v672 = vld [vmem:[%s274 + $0xd0] sm:$0xff]
      %v673 = vld [vmem:[%s274 + $0xd8] sm:$0xff]
      %v674 = vld [vmem:[%s274 + $0xe0] sm:$0xff]
      %v675 = vld [vmem:[%s274 + $0xe8] sm:$0xff]
      %v676 = vld [vmem:[%s274 + $0xf0] sm:$0xff]
      %v677 = vld [vmem:[%s274 + $0xf8] sm:$0xff]
      %v678 = vadd.f32 %v520, %v646
      %v679 = vadd.f32 %v523, %v647
      %v680 = vadd.f32 %v528, %v648
      %v681 = vadd.f32 %v531, %v649
      %v682 = vadd.f32 %v536, %v650
      %v683 = vadd.f32 %v539, %v651
      %v684 = vadd.f32 %v544, %v652
      %v685 = vadd.f32 %v547, %v653
      %v686 = vadd.f32 %v552, %v654
      %v687 = vadd.f32 %v555, %v655
      %v688 = vadd.f32 %v560, %v656
      %v689 = vadd.f32 %v563, %v657
      %v690 = vadd.f32 %v568, %v658
      %v691 = vadd.f32 %v571, %v659
      %v692 = vadd.f32 %v576, %v660
      %v693 = vadd.f32 %v579, %v661
      %v694 = vadd.f32 %v584, %v662
      %v695 = vadd.f32 %v587, %v663
      %v696 = vadd.f32 %v592, %v664
      %v697 = vadd.f32 %v595, %v665
      %v698 = vadd.f32 %v600, %v666
      %v699 = vadd.f32 %v603, %v667
      %v700 = vadd.f32 %v608, %v668
      %v701 = vadd.f32 %v611, %v669
      %v702 = vadd.f32 %v616, %v670
      %v703 = vadd.f32 %v619, %v671
      %v704 = vadd.f32 %v624, %v672
      %v705 = vadd.f32 %v627, %v673
      %v706 = vadd.f32 %v632, %v674
      %v707 = vadd.f32 %v635, %v675
      %v708 = vadd.f32 %v640, %v676
      %v709 = vadd.f32 %v643, %v677
      %v710 = vmax.f32 %v678, 0.0
      %v711 = vmax.f32 %v679, 0.0
      %v712 = vmax.f32 %v680, 0.0
      %v713 = vmax.f32 %v681, 0.0
      %v714 = vmax.f32 %v682, 0.0
      %v715 = vmax.f32 %v683, 0.0
      %v716 = vmax.f32 %v684, 0.0
      %v717 = vmax.f32 %v685, 0.0
      %v718 = vmax.f32 %v686, 0.0
      %v719 = vmax.f32 %v687, 0.0
      %v720 = vmax.f32 %v688, 0.0
      %v721 = vmax.f32 %v689, 0.0
      %v722 = vmax.f32 %v690, 0.0
      %v723 = vmax.f32 %v691, 0.0
      %v724 = vmax.f32 %v692, 0.0
      %v725 = vmax.f32 %v693, 0.0
      %v726 = vmax.f32 %v694, 0.0
      %v727 = vmax.f32 %v695, 0.0
      %v728 = vmax.f32 %v696, 0.0
      %v729 = vmax.f32 %v697, 0.0
      %v730 = vmax.f32 %v698, 0.0
      %v731 = vmax.f32 %v699, 0.0
      %v732 = vmax.f32 %v700, 0.0
      %v733 = vmax.f32 %v701, 0.0
      %v734 = vmax.f32 %v702, 0.0
      %v735 = vmax.f32 %v703, 0.0
      %v736 = vmax.f32 %v704, 0.0
      %v737 = vmax.f32 %v705, 0.0
      %v738 = vmax.f32 %v706, 0.0
      %v739 = vmax.f32 %v707, 0.0
      %v740 = vmax.f32 %v708, 0.0
      %v741 = vmax.f32 %v709, 0.0
      %742 = vst [vmem:[%s283] sm:$0xff] %v710
      %743 = vst [vmem:[%s283 + $0x8] sm:$0xff] %v711
      %744 = vst [vmem:[%s283 + $0x10] sm:$0xff] %v712
      %745 = vst [vmem:[%s283 + $0x18] sm:$0xff] %v713
      %746 = vst [vmem:[%s283 + $0x20] sm:$0xff] %v714
      %747 = vst [vmem:[%s283 + $0x28] sm:$0xff] %v715
      %748 = vst [vmem:[%s283 + $0x30] sm:$0xff] %v716
      %749 = vst [vmem:[%s283 + $0x38] sm:$0xff] %v717
      %750 = vst [vmem:[%s283 + $0x40] sm:$0xff] %v718
      %751 = vst [vmem:[%s283 + $0x48] sm:$0xff] %v719
      %752 = vst [vmem:[%s283 + $0x50] sm:$0xff] %v720
      %753 = vst [vmem:[%s283 + $0x58] sm:$0xff] %v721
      %754 = vst [vmem:[%s283 + $0x60] sm:$0xff] %v722
      %755 = vst [vmem:[%s283 + $0x68] sm:$0xff] %v723
      %756 = vst [vmem:[%s283 + $0x70] sm:$0xff] %v724
      %757 = vst [vmem:[%s283 + $0x78] sm:$0xff] %v725
      %758 = vst [vmem:[%s283 + $0x80] sm:$0xff] %v726
      %759 = vst [vmem:[%s283 + $0x88] sm:$0xff] %v727
      %760 = vst [vmem:[%s283 + $0x90] sm:$0xff] %v728
      %761 = vst [vmem:[%s283 + $0x98] sm:$0xff] %v729
      %762 = vst [vmem:[%s283 + $0xa0] sm:$0xff] %v730
      %763 = vst [vmem:[%s283 + $0xa8] sm:$0xff] %v731
      %764 = vst [vmem:[%s283 + $0xb0] sm:$0xff] %v732
      %765 = vst [vmem:[%s283 + $0xb8] sm:$0xff] %v733
      %766 = vst [vmem:[%s283 + $0xc0] sm:$0xff] %v734
      %767 = vst [vmem:[%s283 + $0xc8] sm:$0xff] %v735
      %768 = vst [vmem:[%s283 + $0xd0] sm:$0xff] %v736
      %769 = vst [vmem:[%s283 + $0xd8] sm:$0xff] %v737
      %770 = vst [vmem:[%s283 + $0xe0] sm:$0xff] %v738
      %771 = vst [vmem:[%s283 + $0xe8] sm:$0xff] %v739
      %772 = vst [vmem:[%s283 + $0xf0] sm:$0xff] %v740
      %773 = vst [vmem:[%s283 + $0xf8] sm:$0xff] %v741
      %s774 = smul.u32 32, %s19
      %p775 = scmp.lt.s32.totalorder %s774, 63
      %s776 = scalar_select %p775, %s774, 63
      %p777 = scmp.lt.s32.totalorder %s20, 0
      %s778 = scalar_select %p777, %s20, 0
      %s779 = sadd.s32 %s778, %s776
      %s780 = smul.addr %s779, 8
      %s781 = scalar_lea.vmem %s4, %s780
      // Predicated region
      $region37: #{_forward.5} parent=35 // pred_check
        %p782 = pneg %p153
      $region38: #{_forward.5} parent=35 // pred_check_branch
        %784 = sbr.rel (%p782) target = $region40
      $region39: #{_forward.5} parent=35 // pred_region
        %s785 = smul.u32 32, %s19
      $region40: #{_forward.5} parent=35 // pred_fallthru
        _
    $region36: #{_forward.5} parent=5 // pred_fallthru
      _
    %p786 = scmp.le.s32.totalorder 2, %s10
    // Predicated region
    $region41: #{_forward.5} parent=5 // pred_check
      %p787 = pneg %p786
    $region42: #{_forward.5} parent=5 // pred_check_branch
      %789 = sbr.rel (%p787) target = $region44
    $region43: #{_forward.5} parent=5 // pred_region
      %s790 = ssub.s32 %s10, 2
      // Predicated region
      $region45: #{_forward.5} parent=43 // pred_check
        %p791 = pneg %p159
      $region46: #{_forward.5} parent=43 // pred_check_branch
        %793 = sbr.rel (%p791) target = $region48
      $region47: #{_forward.5} parent=43 // pred_region
        %s794 = smul.u32 32, %s21
        %p795 = scmp.lt.s32.totalorder %s794, 63
        %s796 = scalar_select %p795, %s794, 63
        %p797 = scmp.lt.s32.totalorder %s22, 0
        %s798 = scalar_select %p797, %s22, 0
        %s799 = sadd.s32 %s798, %s796
        %s800 = smul.addr %s799, 8
        %s801 = scalar_lea.vmem %s4, %s800
      $region48: #{_forward.5} parent=43 // pred_fallthru
        _
    $region44: #{_forward.5} parent=5 // pred_fallthru
      _
  $region6: #{_forward.5} parent=0 // loop_footer
    %s14 = sadd.s32 1, %s10
  $region7: #{_forward.5} parent=0 // loop_footer_branch
    %9 = sbr.rel target = $region3
  $region8: #{_forward.5} parent=0 // loop_exit
    _

// kernel: _forward.4
$region0: #{_forward.4}
  #allocation0 [shape = 'u32[]', space=smem, size = 0x4, offset = 0x4, fixed_abs, tag = 'smem constant byte address 0x4 - core index']
  #allocation1 [shape = 'u32[144,128]{1,0:T(1,128)}', space=vmem, size = 0x12000, scoped, tag = 'internal scratch']
  %s0 = inlined_call_operand.vmem [shape: bf16[2,342,128], index: 0, kind: input, shape index: {}]
  %s1 = inlined_call_operand.vmem [shape: bf16[9,128,128], index: 1, kind: input, shape index: {}]
  %s2 = inlined_call_operand.vmem [shape: f32[1,128], index: 2, kind: input, shape index: {}]
  %s3 = inlined_call_operand.vmem [shape: bf16[2,288,128], index: 3, kind: output, shape index: {}]
  %s4 = sld [smem:[#allocation0]]
  $region45: #{_forward.4} parent=0
    _
  %s6 = ssub.s32 1, %s4
  %s7 = scalar_select 0, %s6, %s4
  loop: start=0, step=1, limit=4
  $region2: #{_forward.4} parent=0 // loop_pre_header
    _
  $region3: #{_forward.4} parent=0 // loop_header
    %s9 = sphi 0, %s13
    %p10 = scmp.ge.s32.totalorder %s9, 4
    %s16 = sphi 0, %s28
    %s17 = sphi 0, %s24
    %s18 = sphi 0, %s16
    %s19 = sphi 0, %s17
    %s20 = sphi 0, %s18
    %s21 = sphi 0, %s19
    %s31 = sphi 0, %s33
    %s34 = sphi 0, %s31
    %s35 = sphi 0, %s34
    %s51 = sphi 0, %s35
    %s57 = sphi 0, %s59
    %s60 = sphi 0, %s57
    %s61 = sphi 0, %s60
    %s77 = sphi 0, %s61
    %s83 = sphi 0, %s85
    %s86 = sphi 0, %s83
    %s87 = sphi 0, %s86
    %s103 = sphi 0, %s87
    %s111 = sphi 0, %s113
    %s114 = sphi 0, %s111
    %s115 = sphi 0, %s114
    %s131 = sphi 0, %s115
  $region4: #{_forward.4} parent=0 // loop_header_branch
    %12 = sbr.rel (%p10) target = $region8
  $region5: #{_forward.4} parent=0 // loop_body
    %s14 = ssub.s32 %s9, 1
    %s15 = ssub.s32 %s9, 2
    %s22 = sadd.s32 1, %s17
    %p23 = scmp.ge.s32.totalorder %s22, 1
    %s24 = scalar_select %p23, 0, %s22
    %s25 = sadd.s32 1, %s16
    %s26 = scalar_select %p23, %s25, %s16
    %p27 = scmp.ge.s32.totalorder %s26, 2
    %s28 = scalar_select %p27, 0, %s26
    %s29 = ssub.s32 %s16, %s28
    %p30 = scmp.eq.s32.totalorder %s29, 0
    %s32 = sadd.s32 %s31, 1
    %s33 = scalar_select %p30, %s31, %s32
    %p36 = pneg %p30
    %p37 = scmp.eq.s32.totalorder %s9, 1
    %p38 = por %p36, %p37
    %p39 = scmp.ne.s32.totalorder %s31, %s34
    %p40 = scmp.eq.s32.totalorder %s9, 0
    %p41 = por %p39, %p40
    %p42 = scmp.ne.s32.totalorder %s31, %s34
    %p43 = scmp.eq.s32.totalorder %s14, 1
    %p44 = por %p42, %p43
    %p45 = scmp.ne.s32.totalorder %s34, %s35
    %p46 = scmp.eq.s32.totalorder %s14, 0
    %p47 = por %p45, %p46
    %p48 = scmp.ne.s32.totalorder %s34, %s35
    %p49 = scmp.eq.s32.totalorder %s15, 1
    %p50 = por %p48, %p49
    %p52 = scmp.ne.s32.totalorder %s35, %s51
    %p53 = scmp.eq.s32.totalorder %s15, 0
    %p54 = por %p52, %p53
    %s55 = ssub.s32 %s17, %s24
    %p56 = scmp.eq.s32.totalorder %s55, 0
    %s58 = sadd.s32 %s57, 1
    %s59 = scalar_select %p56, %s57, %s58
    %p62 = pneg %p56
    %p63 = scmp.eq.s32.totalorder %s9, 1
    %p64 = por %p62, %p63
    %p65 = scmp.ne.s32.totalorder %s57, %s60
    %p66 = scmp.eq.s32.totalorder %s9, 0
    %p67 = por %p65, %p66
    %p68 = scmp.ne.s32.totalorder %s57, %s60
    %p69 = scmp.eq.s32.totalorder %s14, 1
    %p70 = por %p68, %p69
    %p71 = scmp.ne.s32.totalorder %s60, %s61
    %p72 = scmp.eq.s32.totalorder %s14, 0
    %p73 = por %p71, %p72
    %p74 = scmp.ne.s32.totalorder %s60, %s61
    %p75 = scmp.eq.s32.totalorder %s15, 1
    %p76 = por %p74, %p75
    %p78 = scmp.ne.s32.totalorder %s61, %s77
    %p79 = scmp.eq.s32.totalorder %s15, 0
    %p80 = por %p78, %p79
    %s81 = ssub.s32 %s17, %s24
    %p82 = scmp.eq.s32.totalorder %s81, 0
    %s84 = sadd.s32 %s83, 1
    %s85 = scalar_select %p82, %s83, %s84
    %p88 = pneg %p82
    %p89 = scmp.eq.s32.totalorder %s9, 1
    %p90 = por %p88, %p89
    %p91 = scmp.ne.s32.totalorder %s83, %s86
    %p92 = scmp.eq.s32.totalorder %s9, 0
    %p93 = por %p91, %p92
    %p94 = scmp.ne.s32.totalorder %s83, %s86
    %p95 = scmp.eq.s32.totalorder %s14, 1
    %p96 = por %p94, %p95
    %p97 = scmp.ne.s32.totalorder %s86, %s87
    %p98 = scmp.eq.s32.totalorder %s14, 0
    %p99 = por %p97, %p98
    %p100 = scmp.ne.s32.totalorder %s86, %s87
    %p101 = scmp.eq.s32.totalorder %s15, 1
    %p102 = por %p100, %p101
    %p104 = scmp.ne.s32.totalorder %s87, %s103
    %p105 = scmp.eq.s32.totalorder %s15, 0
    %p106 = por %p104, %p105
    %s107 = ssub.s32 %s16, %s28
    %s108 = ssub.s32 %s17, %s24
    %s109 = sor.u32 %s107, %s108
    %p110 = scmp.eq.s32.totalorder %s109, 0
    %s112 = sadd.s32 %s111, 1
    %s113 = scalar_select %p110, %s111, %s112
    %p116 = pneg %p110
    %p117 = scmp.eq.s32.totalorder %s9, 1
    %p118 = por %p116, %p117
    %p119 = scmp.ne.s32.totalorder %s111, %s114
    %p120 = scmp.eq.s32.totalorder %s9, 0
    %p121 = por %p119, %p120
    %p122 = scmp.ne.s32.totalorder %s111, %s114
    %p123 = scmp.eq.s32.totalorder %s14, 1
    %p124 = por %p122, %p123
    %p125 = scmp.ne.s32.totalorder %s114, %s115
    %p126 = scmp.eq.s32.totalorder %s14, 0
    %p127 = por %p125, %p126
    %p128 = scmp.ne.s32.totalorder %s114, %s115
    %p129 = scmp.eq.s32.totalorder %s15, 1
    %p130 = por %p128, %p129
    %p132 = scmp.ne.s32.totalorder %s115, %s131
    %p133 = scmp.eq.s32.totalorder %s15, 0
    %p134 = por %p132, %p133
    %p135 = scmp.le.s32.totalorder 1, %s9
    %p136 = scmp.lt.s32.totalorder %s9, 3
    %p137 = pnand %p135, %p136
    %p138 = pneg %p137
    // Predicated region
    $region9: #{_forward.4} parent=5 // pred_check
      _
    $region10: #{_forward.4} parent=5 // pred_check_branch
      %140 = sbr.rel (%p137) target = $region12
    $region11: #{_forward.4} parent=5 // pred_region
      %s141 = ssub.s32 %s9, 1
      // Predicated region
      $region13: #{_forward.4} parent=11 // pred_check
        %p142 = pneg %p73
      $region14: #{_forward.4} parent=11 // pred_check_branch
        %144 = sbr.rel (%p142) target = $region16
      $region15: #{_forward.4} parent=11 // pred_region
        %p145 = scmp.lt.s32.totalorder %s19, 0
        %s146 = scalar_select %p145, %s19, 0
        %s147 = smul.addr %s146, 4
        %s148 = scalar_lea.vmem %s1, %s147
      $region16: #{_forward.4} parent=11 // pred_fallthru
        _
      // Predicated region
      $region17: #{_forward.4} parent=11 // pred_check
        %p149 = pneg %p99
      $region18: #{_forward.4} parent=11 // pred_check_branch
        %151 = sbr.rel (%p149) target = $region20
      $region19: #{_forward.4} parent=11 // pred_region
        %p152 = scmp.lt.s32.totalorder %s19, 0
        %s153 = scalar_select %p152, %s19, 0
        %s154 = scalar_lea.vmem %s2, %s153
      $region20: #{_forward.4} parent=11 // pred_fallthru
        _
    $region12: #{_forward.4} parent=5 // pred_fallthru
      _
    %p155 = scmp.lt.s32.totalorder %s9, 2
    // Predicated region
    $region21: #{_forward.4} parent=5 // pred_check
      %p156 = pneg %p155
    $region22: #{_forward.4} parent=5 // pred_check_branch
      %158 = sbr.rel (%p156) target = $region24
    $region23: #{_forward.4} parent=5 // pred_region
      // Predicated region
      $region25: #{_forward.4} parent=23 // pred_check
        %p159 = pneg %p41
      $region26: #{_forward.4} parent=23 // pred_check_branch
        %161 = sbr.rel (%p159) target = $region28
      $region27: #{_forward.4} parent=23 // pred_region
        %p162 = scmp.lt.s32.totalorder %s16, 1
        %s163 = scalar_select %p162, %s16, 1
        %s164 = smul.addr %s163, 43
        %s165 = smul.addr %s164, 4
        %s166 = scalar_lea.vmem %s0, %s165
      $region28: #{_forward.4} parent=23 // pred_fallthru
        _
    $region24: #{_forward.4} parent=5 // pred_fallthru
      _
    %p167 = scmp.le.s32.totalorder 1, %s9
    %p168 = scmp.lt.s32.totalorder %s9, 3
    %p169 = pnand %p167, %p168
    %p170 = pneg %p169
    // Predicated region
    $region29: #{_forward.4} parent=5 // pred_check
      _
    $region30: #{_forward.4} parent=5 // pred_check_branch
      %172 = sbr.rel (%p169) target = $region32
    $region31: #{_forward.4} parent=5 // pred_region
      %s173 = ssub.s32 %s9, 1
      %p174 = scmp.lt.s32.totalorder %s18, 1
      %s175 = scalar_select %p174, %s18, 1
      %s176 = smul.addr %s175, 43
      %s177 = smul.addr %s176, 4
      %s178 = scalar_lea.vmem %s0, %s177
      %p179 = pneg %p47
      %p180 = pneg %p44
      %p181 = scmp.lt.s32.totalorder %s19, 0
      %s182 = scalar_select %p181, %s19, 0
      %s183 = smul.addr %s182, 4
      %s184 = scalar_lea.vmem %s1, %s183
      %p185 = pneg %p73
      %p186 = pneg %p70
      %p187 = scmp.lt.s32.totalorder %s19, 0
      %s188 = scalar_select %p187, %s19, 0
      %s189 = scalar_lea.vmem %s2, %s188
      %p190 = pneg %p99
      %p191 = pneg %p96
      %p192 = pneg %p127
      %p193 = pneg %p124
      %p194 = scmp.lt.s32.totalorder %s18, 1
      %s195 = scalar_select %p194, %s18, 1
      %p196 = scmp.lt.s32.totalorder %s19, 0
      %s197 = scalar_select %p196, %s19, 0
      %s198 = smul.addr %s195, 36
      %s199 = sadd.s32 %s197, %s198
      %s200 = smul.addr %s199, 4
      %s201 = scalar_lea.vmem %s3, %s200
      %p202 = scmp.lt.s32.totalorder %s18, 1
      %s203 = scalar_select %p202, %s18, 1
      %s204 = smul.addr %s203, 43
      %s205 = smul.addr %s204, 4
      %s206 = scalar_lea.vmem %s0, %s205
      %p207 = scmp.lt.s32.totalorder %s19, 0
      %s208 = scalar_select %p207, %s19, 0
      %s209 = smul.addr %s208, 4
      %s210 = scalar_lea.vmem %s1, %s209
      %p211 = scmp.lt.s32.totalorder %s19, 0
      %s212 = scalar_select %p211, %s19, 0
      %s213 = scalar_lea.vmem %s2, %s212
      %p214 = scmp.lt.s32.totalorder %s18, 1
      %s215 = scalar_select %p214, %s18, 1
      %p216 = scmp.lt.s32.totalorder %s19, 0
      %s217 = scalar_select %p216, %s19, 0
      %s218 = smul.addr %s215, 36
      %s219 = sadd.s32 %s217, %s218
      %s220 = smul.addr %s219, 4
      %s221 = scalar_lea.vmem %s3, %s220
      %v223 = vld [vmem:[%s206] sm:$0xf]
      %v224 = vld [vmem:[%s206 + $0x4] sm:$0xf]
      %v225 = vld [vmem:[%s206 + $0x8] sm:$0xf]
      %v226 = vld [vmem:[%s206 + $0xc] sm:$0xf]
      %v227 = vld [vmem:[%s206 + $0x10] sm:$0xf]
      %v228 = vld [vmem:[%s206 + $0x14] sm:$0xf]
      %v229 = vld [vmem:[%s206 + $0x18] sm:$0xf]
      %v230 = vld [vmem:[%s206 + $0x1c] sm:$0xf]
      %v231 = vld [vmem:[%s206 + $0x20] sm:$0xf]
      %v232 = vld [vmem:[%s206 + $0x24] sm:$0xf]
      %v233 = vld [vmem:[%s206 + $0x28] sm:$0xf]
      %v234 = vld [vmem:[%s206 + $0x2c] sm:$0xf]
      %v235 = vld [vmem:[%s206 + $0x30] sm:$0xf]
      %v236 = vld [vmem:[%s206 + $0x34] sm:$0xf]
      %v237 = vld [vmem:[%s206 + $0x38] sm:$0xf]
      %v238 = vld [vmem:[%s206 + $0x3c] sm:$0xf]
      %v239 = vld [vmem:[%s206 + $0x40] sm:$0xf]
      %v240 = vld [vmem:[%s206 + $0x44] sm:$0xf]
      %v241 = vld [vmem:[%s206 + $0x48] sm:$0xf]
      %v242 = vld [vmem:[%s206 + $0x4c] sm:$0xf]
      %v243 = vld [vmem:[%s206 + $0x50] sm:$0xf]
      %v244 = vld [vmem:[%s206 + $0x54] sm:$0xf]
      %v245 = vld [vmem:[%s206 + $0x58] sm:$0xf]
      %v246 = vld [vmem:[%s206 + $0x5c] sm:$0xf]
      %v247 = vld [vmem:[%s206 + $0x60] sm:$0xf]
      %v248 = vld [vmem:[%s206 + $0x64] sm:$0xf]
      %v249 = vld [vmem:[%s206 + $0x68] sm:$0xf]
      %v250 = vld [vmem:[%s206 + $0x6c] sm:$0xf]
      %v251 = vld [vmem:[%s206 + $0x70] sm:$0xf]
      %v252 = vld [vmem:[%s206 + $0x74] sm:$0xf]
      %v253 = vld [vmem:[%s206 + $0x78] sm:$0xf]
      %v254 = vld [vmem:[%s206 + $0x7c] sm:$0xf]
      %v255 = vld [vmem:[%s206 + $0x80] sm:$0xf]
      %v256 = vld [vmem:[%s206 + $0x84] sm:$0xf]
      %v257 = vld [vmem:[%s206 + $0x88] sm:$0xf]
      %v258 = vld [vmem:[%s206 + $0x8c] sm:$0xf]
      %v259 = vld [vmem:[%s210] sm:$0xf]
      %v260 = vld [vmem:[%s210 + $0x4] sm:$0xf]
      %v261 = vld [vmem:[%s210 + $0x8] sm:$0xf]
      %v262 = vld [vmem:[%s210 + $0xc] sm:$0xf]
      %v263 = vld [vmem:[%s210 + $0x10] sm:$0xf]
      %v264 = vld [vmem:[%s210 + $0x14] sm:$0xf]
      %v265 = vld [vmem:[%s210 + $0x18] sm:$0xf]
      %v266 = vld [vmem:[%s210 + $0x1c] sm:$0xf]
      %v267 = vld [vmem:[%s210 + $0x20] sm:$0xf]
      %v268 = vld [vmem:[%s210 + $0x24] sm:$0xf]
      %v269 = vld [vmem:[%s210 + $0x28] sm:$0xf]
      %v270 = vld [vmem:[%s210 + $0x2c] sm:$0xf]
      %v271 = vld [vmem:[%s210 + $0x30] sm:$0xf]
      %v272 = vld [vmem:[%s210 + $0x34] sm:$0xf]
      %v273 = vld [vmem:[%s210 + $0x38] sm:$0xf]
      %v274 = vld [vmem:[%s210 + $0x3c] sm:$0xf]
      %v275 = vld [vmem:[%s206 + $0x90] sm:$0x1]
      %s276 = scalar_lea.vmem %s210, 64
      %v277 = vld [vmem:[%s276] sm:$0xf]
      %v278 = vld [vmem:[%s276 + $0x4] sm:$0xf]
      %v279 = vld [vmem:[%s276 + $0x8] sm:$0xf]
      %v280 = vld [vmem:[%s276 + $0xc] sm:$0xf]
      %v281 = vld [vmem:[%s276 + $0x10] sm:$0xf]
      %v282 = vld [vmem:[%s276 + $0x14] sm:$0xf]
      %v283 = vld [vmem:[%s276 + $0x18] sm:$0xf]
      %v284 = vld [vmem:[%s276 + $0x1c] sm:$0xf]
      %v285 = vld [vmem:[%s276 + $0x20] sm:$0xf]
      %v286 = vld [vmem:[%s276 + $0x24] sm:$0xf]
      %v287 = vld [vmem:[%s276 + $0x28] sm:$0xf]
      %v288 = vld [vmem:[%s276 + $0x2c] sm:$0xf]
      %v289 = vld [vmem:[%s276 + $0x30] sm:$0xf]
      %v290 = vld [vmem:[%s276 + $0x34] sm:$0xf]
      %v291 = vld [vmem:[%s276 + $0x38] sm:$0xf]
      %v292 = vld [vmem:[%s276 + $0x3c] sm:$0xf]
      %v330 = vunpack.c.l.b16 %v223
      %v331 = vunpack.c.l.b16 %v224
      %v332 = vunpack.c.l.b16 %v225
      %v333 = vunpack.c.l.b16 %v226
      %v334 = vunpack.c.l.b16 %v227
      %v335 = vunpack.c.l.b16 %v228
      %v336 = vunpack.c.l.b16 %v229
      %v337 = vunpack.c.l.b16 %v230
      %v338 = vunpack.c.l.b16 %v231
      %v339 = vunpack.c.l.b16 %v232
      %v340 = vunpack.c.l.b16 %v233
      %v341 = vunpack.c.l.b16 %v234
      %v342 = vunpack.c.l.b16 %v235
      %v343 = vunpack.c.l.b16 %v236
      %v344 = vunpack.c.l.b16 %v237
      %v345 = vunpack.c.l.b16 %v238
      %v346 = vunpack.c.l.b16 %v239
      %v347 = vunpack.c.l.b16 %v240
      %v348 = vunpack.c.l.b16 %v241
      %v349 = vunpack.c.l.b16 %v242
      %v350 = vunpack.c.l.b16 %v243
      %v351 = vunpack.c.l.b16 %v244
      %v352 = vunpack.c.l.b16 %v245
      %v353 = vunpack.c.l.b16 %v246
      %v354 = vunpack.c.l.b16 %v247
      %v355 = vunpack.c.l.b16 %v248
      %v356 = vunpack.c.l.b16 %v249
      %v357 = vunpack.c.l.b16 %v250
      %v358 = vunpack.c.l.b16 %v251
      %v359 = vunpack.c.l.b16 %v252
      %v360 = vunpack.c.l.b16 %v253
      %v361 = vunpack.c.l.b16 %v254
      %v362 = vunpack.c.l.b16 %v255
      %v363 = vunpack.c.l.b16 %v256
      %v364 = vunpack.c.l.b16 %v257
      %v365 = vunpack.c.l.b16 %v258
      %v366 = vunpack.c.l.b16 %v275
      %v367 = vpack.c.b16 %v331, %v330
      %v368 = vpack.c.b16 %v333, %v332
      %v369 = vpack.c.b16 %v335, %v334
      %v370 = vpack.c.b16 %v337, %v336
      %v371 = vpack.c.b16 %v339, %v338
      %v372 = vpack.c.b16 %v341, %v340
      %v373 = vpack.c.b16 %v343, %v342
      %v374 = vpack.c.b16 %v345, %v344
      %v375 = vpack.c.b16 %v347, %v346
      %v376 = vpack.c.b16 %v349, %v348
      %v377 = vpack.c.b16 %v351, %v350
      %v378 = vpack.c.b16 %v353, %v352
      %v379 = vpack.c.b16 %v355, %v354
      %v380 = vpack.c.b16 %v357, %v356
      %v381 = vpack.c.b16 %v359, %v358
      %v382 = vpack.c.b16 %v361, %v360
      %v383 = vpack.c.b16 %v363, %v362
      %v384 = vpack.c.b16 %v365, %v364
      %v385 = vpack.c.b16 %v366, %v366
      %vm386 = vsmask.f32 7424
      %v388 = vshrl.u32 %v367, 16
      %v390 = vshll.u32 %v367, 16
      %v392 = vrot.slane %v390, 1
      %v393 = vor.u32 %v388, %v392
      %v395 = vshll.u32 %v368, 16
      %v397 = vrot.slane %v395, 1
      %v398 = vsel %vm386, %v393, %v397
      %v399 = vshrl.u32 %v368, 16
      %v401 = vor.u32 %v399, %v397
      %v403 = vshll.u32 %v369, 16
      %v405 = vrot.slane %v403, 1
      %v406 = vsel %vm386, %v401, %v405
      %v407 = vshrl.u32 %v369, 16
      %v409 = vor.u32 %v407, %v405
      %v411 = vshll.u32 %v370, 16
      %v413 = vrot.slane %v411, 1
      %v414 = vsel %vm386, %v409, %v413
      %v415 = vshrl.u32 %v370, 16
      %v417 = vor.u32 %v415, %v413
      %v419 = vshll.u32 %v371, 16
      %v421 = vrot.slane %v419, 1
      %v422 = vsel %vm386, %v417, %v421
      %v423 = vshrl.u32 %v371, 16
      %v425 = vor.u32 %v423, %v421
      %v427 = vshll.u32 %v372, 16
      %v429 = vrot.slane %v427, 1
      %v430 = vsel %vm386, %v425, %v429
      %v431 = vshrl.u32 %v372, 16
      %v433 = vor.u32 %v431, %v429
      %v435 = vshll.u32 %v373, 16
      %v437 = vrot.slane %v435, 1
      %v438 = vsel %vm386, %v433, %v437
      %v439 = vshrl.u32 %v373, 16
      %v441 = vor.u32 %v439, %v437
      %v443 = vshll.u32 %v374, 16
      %v445 = vrot.slane %v443, 1
      %v446 = vsel %vm386, %v441, %v445
      %v447 = vshrl.u32 %v374, 16
      %v449 = vor.u32 %v447, %v445
      %v451 = vshll.u32 %v375, 16
      %v453 = vrot.slane %v451, 1
      %v454 = vsel %vm386, %v449, %v453
      %v455 = vshrl.u32 %v375, 16
      %v457 = vor.u32 %v455, %v453
      %v459 = vshll.u32 %v376, 16
      %v461 = vrot.slane %v459, 1
      %v462 = vsel %vm386, %v457, %v461
      %v463 = vshrl.u32 %v376, 16
      %v465 = vor.u32 %v463, %v461
      %v467 = vshll.u32 %v377, 16
      %v469 = vrot.slane %v467, 1
      %v470 = vsel %vm386, %v465, %v469
      %v471 = vshrl.u32 %v377, 16
      %v473 = vor.u32 %v471, %v469
      %v475 = vshll.u32 %v378, 16
      %v477 = vrot.slane %v475, 1
      %v478 = vsel %vm386, %v473, %v477
      %v479 = vshrl.u32 %v378, 16
      %v481 = vor.u32 %v479, %v477
      %v483 = vshll.u32 %v379, 16
      %v485 = vrot.slane %v483, 1
      %v486 = vsel %vm386, %v481, %v485
      %v487 = vshrl.u32 %v379, 16
      %v489 = vor.u32 %v487, %v485
      %v491 = vshll.u32 %v380, 16
      %v493 = vrot.slane %v491, 1
      %v494 = vsel %vm386, %v489, %v493
      %v495 = vshrl.u32 %v380, 16
      %v497 = vor.u32 %v495, %v493
      %v499 = vshll.u32 %v381, 16
      %v501 = vrot.slane %v499, 1
      %v502 = vsel %vm386, %v497, %v501
      %v503 = vshrl.u32 %v381, 16
      %v505 = vor.u32 %v503, %v501
      %v507 = vshll.u32 %v382, 16
      %v509 = vrot.slane %v507, 1
      %v510 = vsel %vm386, %v505, %v509
      %v511 = vshrl.u32 %v382, 16
      %v513 = vor.u32 %v511, %v509
      %v515 = vshll.u32 %v383, 16
      %v517 = vrot.slane %v515, 1
      %v518 = vsel %vm386, %v513, %v517
      %v519 = vshrl.u32 %v383, 16
      %v521 = vor.u32 %v519, %v517
      %v523 = vshll.u32 %v384, 16
      %v525 = vrot.slane %v523, 1
      %v526 = vsel %vm386, %v521, %v525
      %v527 = vshrl.u32 %v384, 16
      %v529 = vor.u32 %v527, %v525
      %v531 = vshll.u32 %v385, 16
      %v533 = vrot.slane %v531, 1
      %v534 = vsel %vm386, %v529, %v533
      %v569 = vunpack.c.l.b16 %v277
      %v570 = vunpack.c.l.b16 %v278
      %v571 = vunpack.c.l.b16 %v279
      %v572 = vunpack.c.l.b16 %v280
      %v573 = vunpack.c.l.b16 %v281
      %v574 = vunpack.c.l.b16 %v282
      %v575 = vunpack.c.l.b16 %v283
      %v576 = vunpack.c.l.b16 %v284
      %v577 = vunpack.c.l.b16 %v285
      %v578 = vunpack.c.l.b16 %v286
      %v579 = vunpack.c.l.b16 %v287
      %v580 = vunpack.c.l.b16 %v288
      %v581 = vunpack.c.l.b16 %v289
      %v582 = vunpack.c.l.b16 %v290
      %v583 = vunpack.c.l.b16 %v291
      %v584 = vunpack.c.l.b16 %v292
      %v585 = vpack.c.b16 %v570, %v569
      %v586 = vpack.c.b16 %v572, %v571
      %v587 = vpack.c.b16 %v574, %v573
      %v588 = vpack.c.b16 %v576, %v575
      %v589 = vpack.c.b16 %v578, %v577
      %v590 = vpack.c.b16 %v580, %v579
      %v591 = vpack.c.b16 %v582, %v581
      %v592 = vpack.c.b16 %v584, %v583
      %601 = vmatprep.subr.bf16.mxu0 0
      %602 = vmatpush1.bf16.msra.mxu0 %v585
      %603 = vmatprep.subr.bf16.mxu0 0
      %604 = vmatpush1.bf16.msra.mxu0 %v586
      %605 = vmatprep.subr.bf16.mxu0 0
      %606 = vmatpush1.bf16.msra.mxu0 %v587
      %607 = vmatprep.subr.bf16.mxu0 0
      %608 = vmatpush1.bf16.msra.mxu0 %v588
      %609 = vmatprep.subr.bf16.mxu0 0
      %610 = vmatpush1.bf16.msra.mxu0 %v589
      %611 = vmatprep.subr.bf16.mxu0 0
      %612 = vmatpush1.bf16.msra.mxu0 %v590
      %613 = vmatprep.subr.bf16.mxu0 0
      %614 = vmatpush1.bf16.msra.mxu0 %v591
      %615 = vmatprep.subr.bf16.mxu0 0
      %616 = vmatpush1.bf16.msra.mxu0 %v592
      %617 = vmatprep.subr.bf16.mxu0 0
      %618 = vmatpush1.bf16.msra.mxu0 0
      %619 = vmatprep.subr.bf16.mxu0 0
      %620 = vmatpush1.bf16.msra.mxu0 0
      %621 = vmatprep.subr.bf16.mxu0 0
      %622 = vmatpush1.bf16.msra.mxu0 0
      %623 = vmatprep.subr.bf16.mxu0 0
      %624 = vmatpush1.bf16.msra.mxu0 0
      %625 = vmatprep.subr.bf16.mxu0 0
      %626 = vmatpush1.bf16.msra.mxu0 0
      %627 = vmatprep.subr.bf16.mxu0 0
      %628 = vmatpush1.bf16.msra.mxu0 0
      %629 = vmatprep.subr.bf16.mxu0 0
      %630 = vmatpush1.bf16.msra.mxu0 0
      %631 = vmatprep.subr.bf16.mxu0 0
      %632 = vmatpush1.bf16.msra.mxu0 0
      %633 = vmatprep.mubr.bf16.mxu0 0
      %634 = vmatmul.mubr.bf16.gmra.mrb[0].mxu0 %v398
      %v635 = vpop.f32.mrb[0].mxu0
      %v636 = vadd.f32 0.0, %v635
      %v637 = vpop.f32.mrb[0].mxu0
      %v638 = vpop.f32.mrb[0].mxu0
      %v639 = vadd.f32 0.0, %v638
      %v640 = vpop.f32.mrb[0].mxu0
      %641 = vmatprep.mubr.bf16.mxu0 0
      %642 = vmatmul.mubr.bf16.gmra.mrb[0].mxu0 %v406
      %v643 = vpop.f32.mrb[0].mxu0
      %v644 = vadd.f32 0.0, %v643
      %v645 = vpop.f32.mrb[0].mxu0
      %v646 = vpop.f32.mrb[0].mxu0
      %v647 = vadd.f32 0.0, %v646
      %v648 = vpop.f32.mrb[0].mxu0
      %649 = vmatprep.mubr.bf16.mxu0 0
      %650 = vmatmul.mubr.bf16.gmra.mrb[0].mxu0 %v414
      %v651 = vpop.f32.mrb[0].mxu0
      %v652 = vadd.f32 0.0, %v651
      %v653 = vpop.f32.mrb[0].mxu0
      %v654 = vpop.f32.mrb[0].mxu0
      %v655 = vadd.f32 0.0, %v654
      %v656 = vpop.f32.mrb[0].mxu0
      %657 = vmatprep.mubr.bf16.mxu0 0
      %658 = vmatmul.mubr.bf16.gmra.mrb[0].mxu0 %v422
      %v659 = vpop.f32.mrb[0].mxu0
      %v660 = vadd.f32 0.0, %v659
      %v661 = vpop.f32.mrb[0].mxu0
      %v662 = vpop.f32.mrb[0].mxu0
      %v663 = vadd.f32 0.0, %v662
      %v664 = vpop.f32.mrb[0].mxu0
      %665 = vmatprep.mubr.bf16.mxu0 0
      %666 = vmatmul.mubr.bf16.gmra.mrb[0].mxu0 %v430
      %v667 = vpop.f32.mrb[0].mxu0
      %v668 = vadd.f32 0.0, %v667
      %v669 = vpop.f32.mrb[0].mxu0
      %v670 = vpop.f32.mrb[0].mxu0
      %v671 = vadd.f32 0.0, %v670
      %v672 = vpop.f32.mrb[0].mxu0
      %673 = vmatprep.mubr.bf16.mxu0 0
      %674 = vmatmul.mubr.bf16.gmra.mrb[0].mxu0 %v438
      %v675 = vpop.f32.mrb[0].mxu0
      %v676 = vadd.f32 0.0, %v675
      %v677 = vpop.f32.mrb[0].mxu0
      %v678 = vpop.f32.mrb[0].mxu0
      %v679 = vadd.f32 0.0, %v678
      %v680 = vpop.f32.mrb[0].mxu0
      %681 = vmatprep.mubr.bf16.mxu0 0
      %682 = vmatmul.mubr.bf16.gmra.mrb[0].mxu0 %v446
      %v683 = vpop.f32.mrb[0].mxu0
      %v684 = vadd.f32 0.0, %v683
      %v685 = vpop.f32.mrb[0].mxu0
      %v686 = vpop.f32.mrb[0].mxu0
      %v687 = vadd.f32 0.0, %v686
      %v688 = vpop.f32.mrb[0].mxu0
      %689 = vmatprep.mubr.bf16.mxu0 0
      %690 = vmatmul.mubr.bf16.gmra.mrb[0].mxu0 %v454
      %v691 = vpop.f32.mrb[0].mxu0
      %v692 = vadd.f32 0.0, %v691
      %v693 = vpop.f32.mrb[0].mxu0
      %v694 = vpop.f32.mrb[0].mxu0
      %v695 = vadd.f32 0.0, %v694
      %v696 = vpop.f32.mrb[0].mxu0
      %697 = vmatprep.mubr.bf16.mxu0 0
      %698 = vmatmul.mubr.bf16.gmra.mrb[0].mxu0 %v462
      %v699 = vpop.f32.mrb[0].mxu0
      %v700 = vadd.f32 0.0, %v699
      %v701 = vpop.f32.mrb[0].mxu0
      %v702 = vpop.f32.mrb[0].mxu0
      %v703 = vadd.f32 0.0, %v702
      %v704 = vpop.f32.mrb[0].mxu0
      %705 = vmatprep.mubr.bf16.mxu0 0
      %706 = vmatmul.mubr.bf16.gmra.mrb[0].mxu0 %v470
      %v707 = vpop.f32.mrb[0].mxu0
      %v708 = vadd.f32 0.0, %v707
      %v709 = vpop.f32.mrb[0].mxu0
      %v710 = vpop.f32.mrb[0].mxu0
      %v711 = vadd.f32 0.0, %v710
      %v712 = vpop.f32.mrb[0].mxu0
      %713 = vmatprep.mubr.bf16.mxu0 0
      %714 = vmatmul.mubr.bf16.gmra.mrb[0].mxu0 %v478
      %v715 = vpop.f32.mrb[0].mxu0
      %v716 = vadd.f32 0.0, %v715
      %v717 = vpop.f32.mrb[0].mxu0
      %v718 = vpop.f32.mrb[0].mxu0
      %v719 = vadd.f32 0.0, %v718
      %v720 = vpop.f32.mrb[0].mxu0
      %721 = vmatprep.mubr.bf16.mxu0 0
      %722 = vmatmul.mubr.bf16.gmra.mrb[0].mxu0 %v486
      %v723 = vpop.f32.mrb[0].mxu0
      %v724 = vadd.f32 0.0, %v723
      %v725 = vpop.f32.mrb[0].mxu0
      %v726 = vpop.f32.mrb[0].mxu0
      %v727 = vadd.f32 0.0, %v726
      %v728 = vpop.f32.mrb[0].mxu0
      %729 = vmatprep.mubr.bf16.mxu0 0
      %730 = vmatmul.mubr.bf16.gmra.mrb[0].mxu0 %v494
      %v731 = vpop.f32.mrb[0].mxu0
      %v732 = vadd.f32 0.0, %v731
      %v733 = vpop.f32.mrb[0].mxu0
      %v734 = vpop.f32.mrb[0].mxu0
      %v735 = vadd.f32 0.0, %v734
      %v736 = vpop.f32.mrb[0].mxu0
      %737 = vmatprep.mubr.bf16.mxu0 0
      %738 = vmatmul.mubr.bf16.gmra.mrb[0].mxu0 %v502
      %v739 = vpop.f32.mrb[0].mxu0
      %v740 = vadd.f32 0.0, %v739
      %v741 = vpop.f32.mrb[0].mxu0
      %v742 = vpop.f32.mrb[0].mxu0
      %v743 = vadd.f32 0.0, %v742
      %v744 = vpop.f32.mrb[0].mxu0
      %745 = vmatprep.mubr.bf16.mxu0 0
      %746 = vmatmul.mubr.bf16.gmra.mrb[0].mxu0 %v510
      %v747 = vpop.f32.mrb[0].mxu0
      %v748 = vadd.f32 0.0, %v747
      %v749 = vpop.f32.mrb[0].mxu0
      %v750 = vpop.f32.mrb[0].mxu0
      %v751 = vadd.f32 0.0, %v750
      %v752 = vpop.f32.mrb[0].mxu0
      %753 = vmatprep.mubr.bf16.mxu0 0
      %754 = vmatmul.mubr.bf16.gmra.mrb[0].mxu0 %v518
      %v755 = vpop.f32.mrb[0].mxu0
      %v756 = vadd.f32 0.0, %v755
      %v757 = vpop.f32.mrb[0].mxu0
      %v758 = vpop.f32.mrb[0].mxu0
      %v759 = vadd.f32 0.0, %v758
      %v760 = vpop.f32.mrb[0].mxu0
      %761 = vmatprep.mubr.bf16.mxu0 0
      %762 = vmatmul.mubr.bf16.gmra.mrb[0].mxu0 %v526
      %v763 = vpop.f32.mrb[0].mxu0
      %v764 = vadd.f32 0.0, %v763
      %v765 = vpop.f32.mrb[0].mxu0
      %v766 = vpop.f32.mrb[0].mxu0
      %v767 = vadd.f32 0.0, %v766
      %v768 = vpop.f32.mrb[0].mxu0
      %769 = vmatprep.mubr.bf16.mxu0 0
      %770 = vmatmul.mubr.bf16.gmra.mrb[0].mxu0 %v534
      %v771 = vpop.f32.mrb[0].mxu0
      %v772 = vadd.f32 0.0, %v771
      %v773 = vpop.f32.mrb[0].mxu0
      %v774 = vpop.f32.mrb[0].mxu0
      %v775 = vadd.f32 0.0, %v774
      %v776 = vpop.f32.mrb[0].mxu0
      %777 = vdwg.mxu0
      %v812 = vunpack.c.l.b16 %v259
      %v813 = vunpack.c.l.b16 %v260
      %v814 = vunpack.c.l.b16 %v261
      %v815 = vunpack.c.l.b16 %v262
      %v816 = vunpack.c.l.b16 %v263
      %v817 = vunpack.c.l.b16 %v264
      %v818 = vunpack.c.l.b16 %v265
      %v819 = vunpack.c.l.b16 %v266
      %v820 = vunpack.c.l.b16 %v267
      %v821 = vunpack.c.l.b16 %v268
      %v822 = vunpack.c.l.b16 %v269
      %v823 = vunpack.c.l.b16 %v270
      %v824 = vunpack.c.l.b16 %v271
      %v825 = vunpack.c.l.b16 %v272
      %v826 = vunpack.c.l.b16 %v273
      %v827 = vunpack.c.l.b16 %v274
      %v828 = vpack.c.b16 %v813, %v812
      %v829 = vpack.c.b16 %v815, %v814
      %v830 = vpack.c.b16 %v817, %v816
      %v831 = vpack.c.b16 %v819, %v818
      %v832 = vpack.c.b16 %v821, %v820
      %v833 = vpack.c.b16 %v823, %v822
      %v834 = vpack.c.b16 %v825, %v824
      %v835 = vpack.c.b16 %v827, %v826
      %844 = vmatprep.subr.bf16.mxu0 0
      %845 = vmatpush1.bf16.msra.mxu0 %v828
      %846 = vmatprep.subr.bf16.mxu0 0
      %847 = vmatpush1.bf16.msra.mxu0 %v829
      %848 = vmatprep.subr.bf16.mxu0 0
      %849 = vmatpush1.bf16.msra.mxu0 %v830
      %850 = vmatprep.subr.bf16.mxu0 0
      %851 = vmatpush1.bf16.msra.mxu0 %v831
      %852 = vmatprep.subr.bf16.mxu0 0
      %853 = vmatpush1.bf16.msra.mxu0 %v832
      %854 = vmatprep.subr.bf16.mxu0 0
      %855 = vmatpush1.bf16.msra.mxu0 %v833
      %856 = vmatprep.subr.bf16.mxu0 0
      %857 = vmatpush1.bf16.msra.mxu0 %v834
      %858 = vmatprep.subr.bf16.mxu0 0
      %859 = vmatpush1.bf16.msra.mxu0 %v835
      %860 = vmatprep.subr.bf16.mxu0 0
      %861 = vmatpush1.bf16.msra.mxu0 0
      %862 = vmatprep.subr.bf16.mxu0 0
      %863 = vmatpush1.bf16.msra.mxu0 0
      %864 = vmatprep.subr.bf16.mxu0 0
      %865 = vmatpush1.bf16.msra.mxu0 0
      %866 = vmatprep.subr.bf16.mxu0 0
      %867 = vmatpush1.bf16.msra.mxu0 0
      %868 = vmatprep.subr.bf16.mxu0 0
      %869 = vmatpush1.bf16.msra.mxu0 0
      %870 = vmatprep.subr.bf16.mxu0 0
      %871 = vmatpush1.bf16.msra.mxu0 0
      %872 = vmatprep.subr.bf16.mxu0 0
      %873 = vmatpush1.bf16.msra.mxu0 0
      %874 = vmatprep.subr.bf16.mxu0 0
      %875 = vmatpush1.bf16.msra.mxu0 0
      %876 = vmatprep.mubr.bf16.mxu0 0
      %877 = vmatmul.mubr.bf16.gmra.mrb[0].mxu0 %v367
      %v878 = vpop.f32.mrb[0].mxu0
      %v879 = vadd.f32 %v636, %v878
      %v880 = vpop.f32.mrb[0].mxu0
      %v881 = vpop.f32.mrb[0].mxu0
      %v882 = vadd.f32 %v639, %v881
      %v883 = vpop.f32.mrb[0].mxu0
      %884 = vmatprep.mubr.bf16.mxu0 0
      %885 = vmatmul.mubr.bf16.gmra.mrb[0].mxu0 %v368
      %v886 = vpop.f32.mrb[0].mxu0
      %v887 = vadd.f32 %v644, %v886
      %v888 = vpop.f32.mrb[0].mxu0
      %v889 = vpop.f32.mrb[0].mxu0
      %v890 = vadd.f32 %v647, %v889
      %v891 = vpop.f32.mrb[0].mxu0
      %892 = vmatprep.mubr.bf16.mxu0 0
      %893 = vmatmul.mubr.bf16.gmra.mrb[0].mxu0 %v369
      %v894 = vpop.f32.mrb[0].mxu0
      %v895 = vadd.f32 %v652, %v894
      %v896 = vpop.f32.mrb[0].mxu0
      %v897 = vpop.f32.mrb[0].mxu0
      %v898 = vadd.f32 %v655, %v897
      %v899 = vpop.f32.mrb[0].mxu0
      %900 = vmatprep.mubr.bf16.mxu0 0
      %901 = vmatmul.mubr.bf16.gmra.mrb[0].mxu0 %v370
      %v902 = vpop.f32.mrb[0].mxu0
      %v903 = vadd.f32 %v660, %v902
      %v904 = vpop.f32.mrb[0].mxu0
      %v905 = vpop.f32.mrb[0].mxu0
      %v906 = vadd.f32 %v663, %v905
      %v907 = vpop.f32.mrb[0].mxu0
      %908 = vmatprep.mubr.bf16.mxu0 0
      %909 = vmatmul.mubr.bf16.gmra.mrb[0].mxu0 %v371
      %v910 = vpop.f32.mrb[0].mxu0
      %v911 = vadd.f32 %v668, %v910
      %v912 = vpop.f32.mrb[0].mxu0
      %v913 = vpop.f32.mrb[0].mxu0
      %v914 = vadd.f32 %v671, %v913
      %v915 = vpop.f32.mrb[0].mxu0
      %916 = vmatprep.mubr.bf16.mxu0 0
      %917 = vmatmul.mubr.bf16.gmra.mrb[0].mxu0 %v372
      %v918 = vpop.f32.mrb[0].mxu0
      %v919 = vadd.f32 %v676, %v918
      %v920 = vpop.f32.mrb[0].mxu0
      %v921 = vpop.f32.mrb[0].mxu0
      %v922 = vadd.f32 %v679, %v921
      %v923 = vpop.f32.mrb[0].mxu0
      %924 = vmatprep.mubr.bf16.mxu0 0
      %925 = vmatmul.mubr.bf16.gmra.mrb[0].mxu0 %v373
      %v926 = vpop.f32.mrb[0].mxu0
      %v927 = vadd.f32 %v684, %v926
      %v928 = vpop.f32.mrb[0].mxu0
      %v929 = vpop.f32.mrb[0].mxu0
      %v930 = vadd.f32 %v687, %v929
      %v931 = vpop.f32.mrb[0].mxu0
      %932 = vmatprep.mubr.bf16.mxu0 0
      %933 = vmatmul.mubr.bf16.gmra.mrb[0].mxu0 %v374
      %v934 = vpop.f32.mrb[0].mxu0
      %v935 = vadd.f32 %v692, %v934
      %v936 = vpop.f32.mrb[0].mxu0
      %v937 = vpop.f32.mrb[0].mxu0
      %v938 = vadd.f32 %v695, %v937
      %v939 = vpop.f32.mrb[0].mxu0
      %940 = vmatprep.mubr.bf16.mxu0 0
      %941 = vmatmul.mubr.bf16.gmra.mrb[0].mxu0 %v375
      %v942 = vpop.f32.mrb[0].mxu0
      %v943 = vadd.f32 %v700, %v942
      %v944 = vpop.f32.mrb[0].mxu0
      %v945 = vpop.f32.mrb[0].mxu0
      %v946 = vadd.f32 %v703, %v945
      %v947 = vpop.f32.mrb[0].mxu0
      %948 = vmatprep.mubr.bf16.mxu0 0
      %949 = vmatmul.mubr.bf16.gmra.mrb[0].mxu0 %v376
      %v950 = vpop.f32.mrb[0].mxu0
      %v951 = vadd.f32 %v708, %v950
      %v952 = vpop.f32.mrb[0].mxu0
      %v953 = vpop.f32.mrb[0].mxu0
      %v954 = vadd.f32 %v711, %v953
      %v955 = vpop.f32.mrb[0].mxu0
      %956 = vmatprep.mubr.bf16.mxu0 0
      %957 = vmatmul.mubr.bf16.gmra.mrb[0].mxu0 %v377
      %v958 = vpop.f32.mrb[0].mxu0
      %v959 = vadd.f32 %v716, %v958
      %v960 = vpop.f32.mrb[0].mxu0
      %v961 = vpop.f32.mrb[0].mxu0
      %v962 = vadd.f32 %v719, %v961
      %v963 = vpop.f32.mrb[0].mxu0
      %964 = vmatprep.mubr.bf16.mxu0 0
      %965 = vmatmul.mubr.bf16.gmra.mrb[0].mxu0 %v378
      %v966 = vpop.f32.mrb[0].mxu0
      %v967 = vadd.f32 %v724, %v966
      %v968 = vpop.f32.mrb[0].mxu0
      %v969 = vpop.f32.mrb[0].mxu0
      %v970 = vadd.f32 %v727, %v969
      %v971 = vpop.f32.mrb[0].mxu0
      %972 = vmatprep.mubr.bf16.mxu0 0
      %973 = vmatmul.mubr.bf16.gmra.mrb[0].mxu0 %v379
      %v974 = vpop.f32.mrb[0].mxu0
      %v975 = vadd.f32 %v732, %v974
      %v976 = vpop.f32.mrb[0].mxu0
      %v977 = vpop.f32.mrb[0].mxu0
      %v978 = vadd.f32 %v735, %v977
      %v979 = vpop.f32.mrb[0].mxu0
      %980 = vmatprep.mubr.bf16.mxu0 0
      %981 = vmatmul.mubr.bf16.gmra.mrb[0].mxu0 %v380
      %v982 = vpop.f32.mrb[0].mxu0
      %v983 = vadd.f32 %v740, %v982
      %v984 = vpop.f32.mrb[0].mxu0
      %v985 = vpop.f32.mrb[0].mxu0
      %v986 = vadd.f32 %v743, %v985
      %v987 = vpop.f32.mrb[0].mxu0
      %988 = vmatprep.mubr.bf16.mxu0 0
      %989 = vmatmul.mubr.bf16.gmra.mrb[0].mxu0 %v381
      %v990 = vpop.f32.mrb[0].mxu0
      %v991 = vadd.f32 %v748, %v990
      %v992 = vpop.f32.mrb[0].mxu0
      %v993 = vpop.f32.mrb[0].mxu0
      %v994 = vadd.f32 %v751, %v993
      %v995 = vpop.f32.mrb[0].mxu0
      %996 = vmatprep.mubr.bf16.mxu0 0
      %997 = vmatmul.mubr.bf16.gmra.mrb[0].mxu0 %v382
      %v998 = vpop.f32.mrb[0].mxu0
      %v999 = vadd.f32 %v756, %v998
      %v1000 = vpop.f32.mrb[0].mxu0
      %v1001 = vpop.f32.mrb[0].mxu0
      %v1002 = vadd.f32 %v759, %v1001
      %v1003 = vpop.f32.mrb[0].mxu0
      %1004 = vmatprep.mubr.bf16.mxu0 0
      %1005 = vmatmul.mubr.bf16.gmra.mrb[0].mxu0 %v383
      %v1006 = vpop.f32.mrb[0].mxu0
      %v1007 = vadd.f32 %v764, %v1006
      %v1008 = vpop.f32.mrb[0].mxu0
      %v1009 = vpop.f32.mrb[0].mxu0
      %v1010 = vadd.f32 %v767, %v1009
      %v1011 = vpop.f32.mrb[0].mxu0
      %1012 = vmatprep.mubr.bf16.mxu0 0
      %1013 = vmatmul.mubr.bf16.gmra.mrb[0].mxu0 %v384
      %v1014 = vpop.f32.mrb[0].mxu0
      %v1015 = vadd.f32 %v772, %v1014
      %v1016 = vpop.f32.mrb[0].mxu0
      %v1017 = vpop.f32.mrb[0].mxu0
      %v1018 = vadd.f32 %v775, %v1017
      %v1019 = vpop.f32.mrb[0].mxu0
      %1020 = vdwg.mxu0
      %v1021 = vld [vmem:[%s206] sm:$0xe]
      %s1022 = scalar_lea.vmem %s210, 128
      %v1023 = vld [vmem:[%s1022] sm:$0xf]
      %v1024 = vld [vmem:[%s1022 + $0x4] sm:$0xf]
      %v1025 = vld [vmem:[%s1022 + $0x8] sm:$0xf]
      %v1026 = vld [vmem:[%s1022 + $0xc] sm:$0xf]
      %v1027 = vld [vmem:[%s1022 + $0x10] sm:$0xf]
      %v1028 = vld [vmem:[%s1022 + $0x14] sm:$0xf]
      %v1029 = vld [vmem:[%s1022 + $0x18] sm:$0xf]
      %v1030 = vld [vmem:[%s1022 + $0x1c] sm:$0xf]
      %v1031 = vld [vmem:[%s1022 + $0x20] sm:$0xf]
      %v1032 = vld [vmem:[%s1022 + $0x24] sm:$0xf]
      %v1033 = vld [vmem:[%s1022 + $0x28] sm:$0xf]
      %v1034 = vld [vmem:[%s1022 + $0x2c] sm:$0xf]
      %v1035 = vld [vmem:[%s1022 + $0x30] sm:$0xf]
      %v1036 = vld [vmem:[%s1022 + $0x34] sm:$0xf]
      %v1037 = vld [vmem:[%s1022 + $0x38] sm:$0xf]
      %v1038 = vld [vmem:[%s1022 + $0x3c] sm:$0xf]
      %v1040 = vunpack.c.l.b16 %v1021
      %v1041 = vpack.c.b16 %v331, %v1040
      %vm1042 = vcmask 1046528
      %v1043 = vrot.slane %v1041, 1
      %v1044 = vrot.slane %v368, 1
      %v1045 = vsel %vm1042, %v1043, %v1044
      %v1046 = vrot.slane %v369, 1
      %v1047 = vsel %vm1042, %v1044, %v1046
      %v1048 = vrot.slane %v370, 1
      %v1049 = vsel %vm1042, %v1046, %v1048
      %v1050 = vrot.slane %v371, 1
      %v1051 = vsel %vm1042, %v1048, %v1050
      %v1052 = vrot.slane %v372, 1
      %v1053 = vsel %vm1042, %v1050, %v1052
      %v1054 = vrot.slane %v373, 1
      %v1055 = vsel %vm1042, %v1052, %v1054
      %v1056 = vrot.slane %v374, 1
      %v1057 = vsel %vm1042, %v1054, %v1056
      %v1058 = vrot.slane %v375, 1
      %v1059 = vsel %vm1042, %v1056, %v1058
      %v1060 = vrot.slane %v376, 1
      %v1061 = vsel %vm1042, %v1058, %v1060
      %v1062 = vrot.slane %v377, 1
      %v1063 = vsel %vm1042, %v1060, %v1062
      %v1064 = vrot.slane %v378, 1
      %v1065 = vsel %vm1042, %v1062, %v1064
      %v1066 = vrot.slane %v379, 1
      %v1067 = vsel %vm1042, %v1064, %v1066
      %v1068 = vrot.slane %v380, 1
      %v1069 = vsel %vm1042, %v1066, %v1068
      %v1070 = vrot.slane %v381, 1
      %v1071 = vsel %vm1042, %v1068, %v1070
      %v1072 = vrot.slane %v382, 1
      %v1073 = vsel %vm1042, %v1070, %v1072
      %v1074 = vrot.slane %v383, 1
      %v1075 = vsel %vm1042, %v1072, %v1074
      %v1076 = vrot.slane %v384, 1
      %v1077 = vsel %vm1042, %v1074, %v1076
      %v1078 = vrot.slane %v385, 1
      %v1079 = vsel %vm1042, %v1076, %v1078
      %v1114 = vunpack.c.l.b16 %v1023
      %v1115 = vunpack.c.l.b16 %v1024
      %v1116 = vunpack.c.l.b16 %v1025
      %v1117 = vunpack.c.l.b16 %v1026
      %v1118 = vunpack.c.l.b16 %v1027
      %v1119 = vunpack.c.l.b16 %v1028
      %v1120 = vunpack.c.l.b16 %v1029
      %v1121 = vunpack.c.l.b16 %v1030
      %v1122 = vunpack.c.l.b16 %v1031
      %v1123 = vunpack.c.l.b16 %v1032
      %v1124 = vunpack.c.l.b16 %v1033
      %v1125 = vunpack.c.l.b16 %v1034
      %v1126 = vunpack.c.l.b16 %v1035
      %v1127 = vunpack.c.l.b16 %v1036
      %v1128 = vunpack.c.l.b16 %v1037
      %v1129 = vunpack.c.l.b16 %v1038
      %v1130 = vpack.c.b16 %v1115, %v1114
      %v1131 = vpack.c.b16 %v1117, %v1116
      %v1132 = vpack.c.b16 %v1119, %v1118
      %v1133 = vpack.c.b16 %v1121, %v1120
      %v1134 = vpack.c.b16 %v1123, %v1122
      %v1135 = vpack.c.b16 %v1125, %v1124
      %v1136 = vpack.c.b16 %v1127, %v1126
      %v1137 = vpack.c.b16 %v1129, %v1128
      %1146 = vmatprep.subr.bf16.mxu0 0
      %1147 = vmatpush1.bf16.msra.mxu0 %v1130
      %1148 = vmatprep.subr.bf16.mxu0 0
      %1149 = vmatpush1.bf16.msra.mxu0 %v1131
      %1150 = vmatprep.subr.bf16.mxu0 0
      %1151 = vmatpush1.bf16.msra.mxu0 %v1132
      %1152 = vmatprep.subr.bf16.mxu0 0
      %1153 = vmatpush1.bf16.msra.mxu0 %v1133
      %1154 = vmatprep.subr.bf16.mxu0 0
      %1155 = vmatpush1.bf16.msra.mxu0 %v1134
      %1156 = vmatprep.subr.bf16.mxu0 0
      %1157 = vmatpush1.bf16.msra.mxu0 %v1135
      %1158 = vmatprep.subr.bf16.mxu0 0
      %1159 = vmatpush1.bf16.msra.mxu0 %v1136
      %1160 = vmatprep.subr.bf16.mxu0 0
      %1161 = vmatpush1.bf16.msra.mxu0 %v1137
      %1162 = vmatprep.subr.bf16.mxu0 0
      %1163 = vmatpush1.bf16.msra.mxu0 0
      %1164 = vmatprep.subr.bf16.mxu0 0
      %1165 = vmatpush1.bf16.msra.mxu0 0
      %1166 = vmatprep.subr.bf16.mxu0 0
      %1167 = vmatpush1.bf16.msra.mxu0 0
      %1168 = vmatprep.subr.bf16.mxu0 0
      %1169 = vmatpush1.bf16.msra.mxu0 0
      %1170 = vmatprep.subr.bf16.mxu0 0
      %1171 = vmatpush1.bf16.msra.mxu0 0
      %1172 = vmatprep.subr.bf16.mxu0 0
      %1173 = vmatpush1.bf16.msra.mxu0 0
      %1174 = vmatprep.subr.bf16.mxu0 0
      %1175 = vmatpush1.bf16.msra.mxu0 0
      %1176 = vmatprep.subr.bf16.mxu0 0
      %1177 = vmatpush1.bf16.msra.mxu0 0
      %1178 = vmatprep.mubr.bf16.mxu0 0
      %1179 = vmatmul.mubr.bf16.gmra.mrb[0].mxu0 %v1045
      %v1180 = vpop.f32.mrb[0].mxu0
      %v1181 = vadd.f32 0.0, %v1180
      %v1182 = vpop.f32.mrb[0].mxu0
      %v1183 = vpop.f32.mrb[0].mxu0
      %v1184 = vadd.f32 0.0, %v1183
      %v1185 = vpop.f32.mrb[0].mxu0
      %1186 = vmatprep.mubr.bf16.mxu0 0
      %1187 = vmatmul.mubr.bf16.gmra.mrb[0].mxu0 %v1047
      %v1188 = vpop.f32.mrb[0].mxu0
      %v1189 = vadd.f32 0.0, %v1188
      %v1190 = vpop.f32.mrb[0].mxu0
      %v1191 = vpop.f32.mrb[0].mxu0
      %v1192 = vadd.f32 0.0, %v1191
      %v1193 = vpop.f32.mrb[0].mxu0
      %1194 = vmatprep.mubr.bf16.mxu0 0
      %1195 = vmatmul.mubr.bf16.gmra.mrb[0].mxu0 %v1049
      %v1196 = vpop.f32.mrb[0].mxu0
      %v1197 = vadd.f32 0.0, %v1196
      %v1198 = vpop.f32.mrb[0].mxu0
      %v1199 = vpop.f32.mrb[0].mxu0
      %v1200 = vadd.f32 0.0, %v1199
      %v1201 = vpop.f32.mrb[0].mxu0
      %1202 = vmatprep.mubr.bf16.mxu0 0
      %1203 = vmatmul.mubr.bf16.gmra.mrb[0].mxu0 %v1051
      %v1204 = vpop.f32.mrb[0].mxu0
      %v1205 = vadd.f32 0.0, %v1204
      %v1206 = vpop.f32.mrb[0].mxu0
      %v1207 = vpop.f32.mrb[0].mxu0
      %v1208 = vadd.f32 0.0, %v1207
      %v1209 = vpop.f32.mrb[0].mxu0
      %1210 = vmatprep.mubr.bf16.mxu0 0
      %1211 = vmatmul.mubr.bf16.gmra.mrb[0].mxu0 %v1053
      %v1212 = vpop.f32.mrb[0].mxu0
      %v1213 = vadd.f32 0.0, %v1212
      %v1214 = vpop.f32.mrb[0].mxu0
      %v1215 = vpop.f32.mrb[0].mxu0
      %v1216 = vadd.f32 0.0, %v1215
      %v1217 = vpop.f32.mrb[0].mxu0
      %1218 = vmatprep.mubr.bf16.mxu0 0
      %1219 = vmatmul.mubr.bf16.gmra.mrb[0].mxu0 %v1055
      %v1220 = vpop.f32.mrb[0].mxu0
      %v1221 = vadd.f32 0.0, %v1220
      %v1222 = vpop.f32.mrb[0].mxu0
      %v1223 = vpop.f32.mrb[0].mxu0
      %v1224 = vadd.f32 0.0, %v1223
      %v1225 = vpop.f32.mrb[0].mxu0
      %1226 = vmatprep.mubr.bf16.mxu0 0
      %1227 = vmatmul.mubr.bf16.gmra.mrb[0].mxu0 %v1057
      %v1228 = vpop.f32.mrb[0].mxu0
      %v1229 = vadd.f32 0.0, %v1228
      %v1230 = vpop.f32.mrb[0].mxu0
      %v1231 = vpop.f32.mrb[0].mxu0
      %v1232 = vadd.f32 0.0, %v1231
      %v1233 = vpop.f32.mrb[0].mxu0
      %1234 = vmatprep.mubr.bf16.mxu0 0
      %1235 = vmatmul.mubr.bf16.gmra.mrb[0].mxu0 %v1059
      %v1236 = vpop.f32.mrb[0].mxu0
      %v1237 = vadd.f32 0.0, %v1236
      %v1238 = vpop.f32.mrb[0].mxu0
      %v1239 = vpop.f32.mrb[0].mxu0
      %v1240 = vadd.f32 0.0, %v1239
      %v1241 = vpop.f32.mrb[0].mxu0
      %1242 = vmatprep.mubr.bf16.mxu0 0
      %1243 = vmatmul.mubr.bf16.gmra.mrb[0].mxu0 %v1061
      %v1244 = vpop.f32.mrb[0].mxu0
      %v1245 = vadd.f32 0.0, %v1244
      %v1246 = vpop.f32.mrb[0].mxu0
      %v1247 = vpop.f32.mrb[0].mxu0
      %v1248 = vadd.f32 0.0, %v1247
      %v1249 = vpop.f32.mrb[0].mxu0
      %1250 = vmatprep.mubr.bf16.mxu0 0
      %1251 = vmatmul.mubr.bf16.gmra.mrb[0].mxu0 %v1063
      %v1252 = vpop.f32.mrb[0].mxu0
      %v1253 = vadd.f32 0.0, %v1252
      %v1254 = vpop.f32.mrb[0].mxu0
      %v1255 = vpop.f32.mrb[0].mxu0
      %v1256 = vadd.f32 0.0, %v1255
      %v1257 = vpop.f32.mrb[0].mxu0
      %1258 = vmatprep.mubr.bf16.mxu0 0
      %1259 = vmatmul.mubr.bf16.gmra.mrb[0].mxu0 %v1065
      %v1260 = vpop.f32.mrb[0].mxu0
      %v1261 = vadd.f32 0.0, %v1260
      %v1262 = vpop.f32.mrb[0].mxu0
      %v1263 = vpop.f32.mrb[0].mxu0
      %v1264 = vadd.f32 0.0, %v1263
      %v1265 = vpop.f32.mrb[0].mxu0
      %1266 = vmatprep.mubr.bf16.mxu0 0
      %1267 = vmatmul.mubr.bf16.gmra.mrb[0].mxu0 %v1067
      %v1268 = vpop.f32.mrb[0].mxu0
      %v1269 = vadd.f32 0.0, %v1268
      %v1270 = vpop.f32.mrb[0].mxu0
      %v1271 = vpop.f32.mrb[0].mxu0
      %v1272 = vadd.f32 0.0, %v1271
      %v1273 = vpop.f32.mrb[0].mxu0
      %1274 = vmatprep.mubr.bf16.mxu0 0
      %1275 = vmatmul.mubr.bf16.gmra.mrb[0].mxu0 %v1069
      %v1276 = vpop.f32.mrb[0].mxu0
      %v1277 = vadd.f32 0.0, %v1276
      %v1278 = vpop.f32.mrb[0].mxu0
      %v1279 = vpop.f32.mrb[0].mxu0
      %v1280 = vadd.f32 0.0, %v1279
      %v1281 = vpop.f32.mrb[0].mxu0
      %1282 = vmatprep.mubr.bf16.mxu0 0
      %1283 = vmatmul.mubr.bf16.gmra.mrb[0].mxu0 %v1071
      %v1284 = vpop.f32.mrb[0].mxu0
      %v1285 = vadd.f32 0.0, %v1284
      %v1286 = vpop.f32.mrb[0].mxu0
      %v1287 = vpop.f32.mrb[0].mxu0
      %v1288 = vadd.f32 0.0, %v1287
      %v1289 = vpop.f32.mrb[0].mxu0
      %1290 = vmatprep.mubr.bf16.mxu0 0
      %1291 = vmatmul.mubr.bf16.gmra.mrb[0].mxu0 %v1073
      %v1292 = vpop.f32.mrb[0].mxu0
      %v1293 = vadd.f32 0.0, %v1292
      %v1294 = vpop.f32.mrb[0].mxu0
      %v1295 = vpop.f32.mrb[0].mxu0
      %v1296 = vadd.f32 0.0, %v1295
      %v1297 = vpop.f32.mrb[0].mxu0
      %1298 = vmatprep.mubr.bf16.mxu0 0
      %1299 = vmatmul.mubr.bf16.gmra.mrb[0].mxu0 %v1075
      %v1300 = vpop.f32.mrb[0].mxu0
      %v1301 = vadd.f32 0.0, %v1300
      %v1302 = vpop.f32.mrb[0].mxu0
      %v1303 = vpop.f32.mrb[0].mxu0
      %v1304 = vadd.f32 0.0, %v1303
      %v1305 = vpop.f32.mrb[0].mxu0
      %1306 = vmatprep.mubr.bf16.mxu0 0
      %1307 = vmatmul.mubr.bf16.gmra.mrb[0].mxu0 %v1077
      %v1308 = vpop.f32.mrb[0].mxu0
      %v1309 = vadd.f32 0.0, %v1308
      %v1310 = vpop.f32.mrb[0].mxu0
      %v1311 = vpop.f32.mrb[0].mxu0
      %v1312 = vadd.f32 0.0, %v1311
      %v1313 = vpop.f32.mrb[0].mxu0
      %1314 = vmatprep.mubr.bf16.mxu0 0
      %1315 = vmatmul.mubr.bf16.gmra.mrb[0].mxu0 %v1079
      %v1316 = vpop.f32.mrb[0].mxu0
      %v1317 = vadd.f32 0.0, %v1316
      %v1318 = vpop.f32.mrb[0].mxu0
      %v1319 = vpop.f32.mrb[0].mxu0
      %v1320 = vadd.f32 0.0, %v1319
      %v1321 = vpop.f32.mrb[0].mxu0
      %1322 = vdwg.mxu0
      %v1323 = vadd.f32 %v879, %v1181
      %v1324 = vadd.f32 %v882, %v1184
      %v1325 = vadd.f32 %v887, %v1189
      %v1326 = vadd.f32 %v890, %v1192
      %v1327 = vadd.f32 %v895, %v1197
      %v1328 = vadd.f32 %v898, %v1200
      %v1329 = vadd.f32 %v903, %v1205
      %v1330 = vadd.f32 %v906, %v1208
      %v1331 = vadd.f32 %v911, %v1213
      %v1332 = vadd.f32 %v914, %v1216
      %v1333 = vadd.f32 %v919, %v1221
      %v1334 = vadd.f32 %v922, %v1224
      %v1335 = vadd.f32 %v927, %v1229
      %v1336 = vadd.f32 %v930, %v1232
      %v1337 = vadd.f32 %v935, %v1237
      %v1338 = vadd.f32 %v938, %v1240
      %v1339 = vadd.f32 %v943, %v1245
      %v1340 = vadd.f32 %v946, %v1248
      %v1341 = vadd.f32 %v951, %v1253
      %v1342 = vadd.f32 %v954, %v1256
      %v1343 = vadd.f32 %v959, %v1261
      %v1344 = vadd.f32 %v962, %v1264
      %v1345 = vadd.f32 %v967, %v1269
      %v1346 = vadd.f32 %v970, %v1272
      %v1347 = vadd.f32 %v975, %v1277
      %v1348 = vadd.f32 %v978, %v1280
      %v1349 = vadd.f32 %v983, %v1285
      %v1350 = vadd.f32 %v986, %v1288
      %v1351 = vadd.f32 %v991, %v1293
      %v1352 = vadd.f32 %v994, %v1296
      %v1353 = vadd.f32 %v999, %v1301
      %v1354 = vadd.f32 %v1002, %v1304
      %v1355 = vadd.f32 %v1007, %v1309
      %v1356 = vadd.f32 %v1010, %v1312
      %v1357 = vadd.f32 %v1015, %v1317
      %v1358 = vadd.f32 %v1018, %v1320
      %v1359 = vld [vmem:[%s206 + $0x8] sm:$0xe]
      %v1360 = vld [vmem:[%s206 + $0xc] sm:$0xf]
      %v1361 = vld [vmem:[%s206 + $0x10] sm:$0xf]
      %v1362 = vld [vmem:[%s206 + $0x14] sm:$0xf]
      %v1363 = vld [vmem:[%s206 + $0x18] sm:$0xf]
      %v1364 = vld [vmem:[%s206 + $0x1c] sm:$0xf]
      %v1365 = vld [vmem:[%s206 + $0x20] sm:$0xf]
      %v1366 = vld [vmem:[%s206 + $0x24] sm:$0xf]
      %v1367 = vld [vmem:[%s206 + $0x28] sm:$0xf]
      %v1368 = vld [vmem:[%s206 + $0x2c] sm:$0xf]
      %v1369 = vld [vmem:[%s206 + $0x30] sm:$0xf]
      %v1370 = vld [vmem:[%s206 + $0x34] sm:$0xf]
      %v1371 = vld [vmem:[%s206 + $0x38] sm:$0xf]
      %v1372 = vld [vmem:[%s206 + $0x3c] sm:$0xf]
      %v1373 = vld [vmem:[%s206 + $0x40] sm:$0xf]
      %v1374 = vld [vmem:[%s206 + $0x44] sm:$0xf]
      %v1375 = vld [vmem:[%s206 + $0x48] sm:$0xf]
      %v1376 = vld [vmem:[%s206 + $0x4c] sm:$0xf]
      %v1377 = vld [vmem:[%s206 + $0x50] sm:$0xf]
      %v1378 = vld [vmem:[%s206 + $0x54] sm:$0xf]
      %v1379 = vld [vmem:[%s206 + $0x58] sm:$0xf]
      %v1380 = vld [vmem:[%s206 + $0x5c] sm:$0xf]
      %v1381 = vld [vmem:[%s206 + $0x60] sm:$0xf]
      %v1382 = vld [vmem:[%s206 + $0x64] sm:$0xf]
      %v1383 = vld [vmem:[%s206 + $0x68] sm:$0xf]
      %v1384 = vld [vmem:[%s206 + $0x6c] sm:$0xf]
      %v1385 = vld [vmem:[%s206 + $0x70] sm:$0xf]
      %v1386 = vld [vmem:[%s206 + $0x74] sm:$0xf]
      %v1387 = vld [vmem:[%s206 + $0x78] sm:$0xf]
      %v1388 = vld [vmem:[%s206 + $0x7c] sm:$0xf]
      %v1389 = vld [vmem:[%s206 + $0x80] sm:$0xf]
      %v1390 = vld [vmem:[%s206 + $0x84] sm:$0xf]
      %v1391 = vld [vmem:[%s206 + $0x88] sm:$0xf]
      %v1392 = vld [vmem:[%s206 + $0x8c] sm:$0xf]
      %v1393 = vld [vmem:[%s206 + $0x90] sm:$0xf]
      %v1394 = vld [vmem:[%s206 + $0x94] sm:$0xf]
      %v1395 = vld [vmem:[%s206 + $0x98] sm:$0x1]
      %s1396 = scalar_lea.vmem %s210, 192
      %v1397 = vld [vmem:[%s1396] sm:$0xf]
      %v1398 = vld [vmem:[%s1396 + $0x4] sm:$0xf]
      %v1399 = vld [vmem:[%s1396 + $0x8] sm:$0xf]
      %v1400 = vld [vmem:[%s1396 + $0xc] sm:$0xf]
      %v1401 = vld [vmem:[%s1396 + $0x10] sm:$0xf]
      %v1402 = vld [vmem:[%s1396 + $0x14] sm:$0xf]
      %v1403 = vld [vmem:[%s1396 + $0x18] sm:$0xf]
      %v1404 = vld [vmem:[%s1396 + $0x1c] sm:$0xf]
      %v1405 = vld [vmem:[%s1396 + $0x20] sm:$0xf]
      %v1406 = vld [vmem:[%s1396 + $0x24] sm:$0xf]
      %v1407 = vld [vmem:[%s1396 + $0x28] sm:$0xf]
      %v1408 = vld [vmem:[%s1396 + $0x2c] sm:$0xf]
      %v1409 = vld [vmem:[%s1396 + $0x30] sm:$0xf]
      %v1410 = vld [vmem:[%s1396 + $0x34] sm:$0xf]
      %v1411 = vld [vmem:[%s1396 + $0x38] sm:$0xf]
      %v1412 = vld [vmem:[%s1396 + $0x3c] sm:$0xf]
      %v1450 = vunpack.c.l.b16 %v1359
      %v1451 = vunpack.c.l.b16 %v1360
      %v1452 = vunpack.c.l.b16 %v1361
      %v1453 = vunpack.c.l.b16 %v1362
      %v1454 = vunpack.c.l.b16 %v1363
      %v1455 = vunpack.c.l.b16 %v1364
      %v1456 = vunpack.c.l.b16 %v1365
      %v1457 = vunpack.c.l.b16 %v1366
      %v1458 = vunpack.c.l.b16 %v1367
      %v1459 = vunpack.c.l.b16 %v1368
      %v1460 = vunpack.c.l.b16 %v1369
      %v1461 = vunpack.c.l.b16 %v1370
      %v1462 = vunpack.c.l.b16 %v1371
      %v1463 = vunpack.c.l.b16 %v1372
      %v1464 = vunpack.c.l.b16 %v1373
      %v1465 = vunpack.c.l.b16 %v1374
      %v1466 = vunpack.c.l.b16 %v1375
      %v1467 = vunpack.c.l.b16 %v1376
      %v1468 = vunpack.c.l.b16 %v1377
      %v1469 = vunpack.c.l.b16 %v1378
      %v1470 = vunpack.c.l.b16 %v1379
      %v1471 = vunpack.c.l.b16 %v1380
      %v1472 = vunpack.c.l.b16 %v1381
      %v1473 = vunpack.c.l.b16 %v1382
      %v1474 = vunpack.c.l.b16 %v1383
      %v1475 = vunpack.c.l.b16 %v1384
      %v1476 = vunpack.c.l.b16 %v1385
      %v1477 = vunpack.c.l.b16 %v1386
      %v1478 = vunpack.c.l.b16 %v1387
      %v1479 = vunpack.c.l.b16 %v1388
      %v1480 = vunpack.c.l.b16 %v1389
      %v1481 = vunpack.c.l.b16 %v1390
      %v1482 = vunpack.c.l.b16 %v1391
      %v1483 = vunpack.c.l.b16 %v1392
      %v1484 = vunpack.c.l.b16 %v1393
      %v1485 = vunpack.c.l.b16 %v1394
      %v1486 = vunpack.c.l.b16 %v1395
      %v1487 = vpack.c.b16 %v1451, %v1450
      %v1488 = vpack.c.b16 %v1453, %v1452
      %v1489 = vpack.c.b16 %v1455, %v1454
      %v1490 = vpack.c.b16 %v1457, %v1456
      %v1491 = vpack.c.b16 %v1459, %v1458
      %v1492 = vpack.c.b16 %v1461, %v1460
      %v1493 = vpack.c.b16 %v1463, %v1462
      %v1494 = vpack.c.b16 %v1465, %v1464
      %v1495 = vpack.c.b16 %v1467, %v1466
      %v1496 = vpack.c.b16 %v1469, %v1468
      %v1497 = vpack.c.b16 %v1471, %v1470
      %v1498 = vpack.c.b16 %v1473, %v1472
      %v1499 = vpack.c.b16 %v1475, %v1474
      %v1500 = vpack.c.b16 %v1477, %v1476
      %v1501 = vpack.c.b16 %v1479, %v1478
      %v1502 = vpack.c.b16 %v1481, %v1480
      %v1503 = vpack.c.b16 %v1483, %v1482
      %v1504 = vpack.c.b16 %v1485, %v1484
      %v1505 = vpack.c.b16 %v1486, %v1486
      %v1506 = vrot.slane %v1487, 1
      %v1507 = vrot.slane %v1488, 1
      %v1508 = vsel %vm1042, %v1506, %v1507
      %v1509 = vrot.slane %v1489, 1
      %v1510 = vsel %vm1042, %v1507, %v1509
      %v1511 = vrot.slane %v1490, 1
      %v1512 = vsel %vm1042, %v1509, %v1511
      %v1513 = vrot.slane %v1491, 1
      %v1514 = vsel %vm1042, %v1511, %v1513
      %v1515 = vrot.slane %v1492, 1
      %v1516 = vsel %vm1042, %v1513, %v1515
      %v1517 = vrot.slane %v1493, 1
      %v1518 = vsel %vm1042, %v1515, %v1517
      %v1519 = vrot.slane %v1494, 1
      %v1520 = vsel %vm1042, %v1517, %v1519
      %v1521 = vrot.slane %v1495, 1
      %v1522 = vsel %vm1042, %v1519, %v1521
      %v1523 = vrot.slane %v1496, 1
      %v1524 = vsel %vm1042, %v1521, %v1523
      %v1525 = vrot.slane %v1497, 1
      %v1526 = vsel %vm1042, %v1523, %v1525
      %v1527 = vrot.slane %v1498, 1
      %v1528 = vsel %vm1042, %v1525, %v1527
      %v1529 = vrot.slane %v1499, 1
      %v1530 = vsel %vm1042, %v1527, %v1529
      %v1531 = vrot.slane %v1500, 1
      %v1532 = vsel %vm1042, %v1529, %v1531
      %v1533 = vrot.slane %v1501, 1
      %v1534 = vsel %vm1042, %v1531, %v1533
      %v1535 = vrot.slane %v1502, 1
      %v1536 = vsel %vm1042, %v1533, %v1535
      %v1537 = vrot.slane %v1503, 1
      %v1538 = vsel %vm1042, %v1535, %v1537
      %v1539 = vrot.slane %v1504, 1
      %v1540 = vsel %vm1042, %v1537, %v1539
      %v1541 = vrot.slane %v1505, 1
      %v1542 = vsel %vm1042, %v1539, %v1541
      %v1577 = vunpack.c.l.b16 %v1397
      %v1578 = vunpack.c.l.b16 %v1398
      %v1579 = vunpack.c.l.b16 %v1399
      %v1580 = vunpack.c.l.b16 %v1400
      %v1581 = vunpack.c.l.b16 %v1401
      %v1582 = vunpack.c.l.b16 %v1402
      %v1583 = vunpack.c.l.b16 %v1403
      %v1584 = vunpack.c.l.b16 %v1404
      %v1585 = vunpack.c.l.b16 %v1405
      %v1586 = vunpack.c.l.b16 %v1406
      %v1587 = vunpack.c.l.b16 %v1407
      %v1588 = vunpack.c.l.b16 %v1408
      %v1589 = vunpack.c.l.b16 %v1409
      %v1590 = vunpack.c.l.b16 %v1410
      %v1591 = vunpack.c.l.b16 %v1411
      %v1592 = vunpack.c.l.b16 %v1412
      %v1593 = vpack.c.b16 %v1578, %v1577
      %v1594 = vpack.c.b16 %v1580, %v1579
      %v1595 = vpack.c.b16 %v1582, %v1581
      %v1596 = vpack.c.b16 %v1584, %v1583
      %v1597 = vpack.c.b16 %v1586, %v1585
      %v1598 = vpack.c.b16 %v1588, %v1587
      %v1599 = vpack.c.b16 %v1590, %v1589
      %v1600 = vpack.c.b16 %v1592, %v1591
      %1609 = vmatprep.subr.bf16.mxu0 0
      %1610 = vmatpush1.bf16.msra.mxu0 %v1593
      %1611 = vmatprep.subr.bf16.mxu0 0
      %1612 = vmatpush1.bf16.msra.mxu0 %v1594
      %1613 = vmatprep.subr.bf16.mxu0 0
      %1614 = vmatpush1.bf16.msra.mxu0 %v1595
      %1615 = vmatprep.subr.bf16.mxu0 0
      %1616 = vmatpush1.bf16.msra.mxu0 %v1596
      %1617 = vmatprep.subr.bf16.mxu0 0
      %1618 = vmatpush1.bf16.msra.mxu0 %v1597
      %1619 = vmatprep.subr.bf16.mxu0 0
      %1620 = vmatpush1.bf16.msra.mxu0 %v1598
      %1621 = vmatprep.subr.bf16.mxu0 0
      %1622 = vmatpush1.bf16.msra.mxu0 %v1599
      %1623 = vmatprep.subr.bf16.mxu0 0
      %1624 = vmatpush1.bf16.msra.mxu0 %v1600
      %1625 = vmatprep.subr.bf16.mxu0 0
      %1626 = vmatpush1.bf16.msra.mxu0 0
      %1627 = vmatprep.subr.bf16.mxu0 0
      %1628 = vmatpush1.bf16.msra.mxu0 0
      %1629 = vmatprep.subr.bf16.mxu0 0
      %1630 = vmatpush1.bf16.msra.mxu0 0
      %1631 = vmatprep.subr.bf16.mxu0 0
      %1632 = vmatpush1.bf16.msra.mxu0 0
      %1633 = vmatprep.subr.bf16.mxu0 0
      %1634 = vmatpush1.bf16.msra.mxu0 0
      %1635 = vmatprep.subr.bf16.mxu0 0
      %1636 = vmatpush1.bf16.msra.mxu0 0
      %1637 = vmatprep.subr.bf16.mxu0 0
      %1638 = vmatpush1.bf16.msra.mxu0 0
      %1639 = vmatprep.subr.bf16.mxu0 0
      %1640 = vmatpush1.bf16.msra.mxu0 0
      %1641 = vmatprep.mubr.bf16.mxu0 0
      %1642 = vmatmul.mubr.bf16.gmra.mrb[0].mxu0 %v1508
      %v1643 = vpop.f32.mrb[0].mxu0
      %v1644 = vadd.f32 0.0, %v1643
      %v1645 = vpop.f32.mrb[0].mxu0
      %v1646 = vpop.f32.mrb[0].mxu0
      %v1647 = vadd.f32 0.0, %v1646
      %v1648 = vpop.f32.mrb[0].mxu0
      %1649 = vmatprep.mubr.bf16.mxu0 0
      %1650 = vmatmul.mubr.bf16.gmra.mrb[0].mxu0 %v1510
      %v1651 = vpop.f32.mrb[0].mxu0
      %v1652 = vadd.f32 0.0, %v1651
      %v1653 = vpop.f32.mrb[0].mxu0
      %v1654 = vpop.f32.mrb[0].mxu0
      %v1655 = vadd.f32 0.0, %v1654
      %v1656 = vpop.f32.mrb[0].mxu0
      %1657 = vmatprep.mubr.bf16.mxu0 0
      %1658 = vmatmul.mubr.bf16.gmra.mrb[0].mxu0 %v1512
      %v1659 = vpop.f32.mrb[0].mxu0
      %v1660 = vadd.f32 0.0, %v1659
      %v1661 = vpop.f32.mrb[0].mxu0
      %v1662 = vpop.f32.mrb[0].mxu0
      %v1663 = vadd.f32 0.0, %v1662
      %v1664 = vpop.f32.mrb[0].mxu0
      %1665 = vmatprep.mubr.bf16.mxu0 0
      %1666 = vmatmul.mubr.bf16.gmra.mrb[0].mxu0 %v1514
      %v1667 = vpop.f32.mrb[0].mxu0
      %v1668 = vadd.f32 0.0, %v1667
      %v1669 = vpop.f32.mrb[0].mxu0
      %v1670 = vpop.f32.mrb[0].mxu0
      %v1671 = vadd.f32 0.0, %v1670
      %v1672 = vpop.f32.mrb[0].mxu0
      %1673 = vmatprep.mubr.bf16.mxu0 0
      %1674 = vmatmul.mubr.bf16.gmra.mrb[0].mxu0 %v1516
      %v1675 = vpop.f32.mrb[0].mxu0
      %v1676 = vadd.f32 0.0, %v1675
      %v1677 = vpop.f32.mrb[0].mxu0
      %v1678 = vpop.f32.mrb[0].mxu0
      %v1679 = vadd.f32 0.0, %v1678
      %v1680 = vpop.f32.mrb[0].mxu0
      %1681 = vmatprep.mubr.bf16.mxu0 0
      %1682 = vmatmul.mubr.bf16.gmra.mrb[0].mxu0 %v1518
      %v1683 = vpop.f32.mrb[0].mxu0
      %v1684 = vadd.f32 0.0, %v1683
      %v1685 = vpop.f32.mrb[0].mxu0
      %v1686 = vpop.f32.mrb[0].mxu0
      %v1687 = vadd.f32 0.0, %v1686
      %v1688 = vpop.f32.mrb[0].mxu0
      %1689 = vmatprep.mubr.bf16.mxu0 0
      %1690 = vmatmul.mubr.bf16.gmra.mrb[0].mxu0 %v1520
      %v1691 = vpop.f32.mrb[0].mxu0
      %v1692 = vadd.f32 0.0, %v1691
      %v1693 = vpop.f32.mrb[0].mxu0
      %v1694 = vpop.f32.mrb[0].mxu0
      %v1695 = vadd.f32 0.0, %v1694
      %v1696 = vpop.f32.mrb[0].mxu0
      %1697 = vmatprep.mubr.bf16.mxu0 0
      %1698 = vmatmul.mubr.bf16.gmra.mrb[0].mxu0 %v1522
      %v1699 = vpop.f32.mrb[0].mxu0
      %v1700 = vadd.f32 0.0, %v1699
      %v1701 = vpop.f32.mrb[0].mxu0
      %v1702 = vpop.f32.mrb[0].mxu0
      %v1703 = vadd.f32 0.0, %v1702
      %v1704 = vpop.f32.mrb[0].mxu0
      %1705 = vmatprep.mubr.bf16.mxu0 0
      %1706 = vmatmul.mubr.bf16.gmra.mrb[0].mxu0 %v1524
      %v1707 = vpop.f32.mrb[0].mxu0
      %v1708 = vadd.f32 0.0, %v1707
      %v1709 = vpop.f32.mrb[0].mxu0
      %v1710 = vpop.f32.mrb[0].mxu0
      %v1711 = vadd.f32 0.0, %v1710
      %v1712 = vpop.f32.mrb[0].mxu0
      %1713 = vmatprep.mubr.bf16.mxu0 0
      %1714 = vmatmul.mubr.bf16.gmra.mrb[0].mxu0 %v1526
      %v1715 = vpop.f32.mrb[0].mxu0
      %v1716 = vadd.f32 0.0, %v1715
      %v1717 = vpop.f32.mrb[0].mxu0
      %v1718 = vpop.f32.mrb[0].mxu0
      %v1719 = vadd.f32 0.0, %v1718
      %v1720 = vpop.f32.mrb[0].mxu0
      %1721 = vmatprep.mubr.bf16.mxu0 0
      %1722 = vmatmul.mubr.bf16.gmra.mrb[0].mxu0 %v1528
      %v1723 = vpop.f32.mrb[0].mxu0
      %v1724 = vadd.f32 0.0, %v1723
      %v1725 = vpop.f32.mrb[0].mxu0
      %v1726 = vpop.f32.mrb[0].mxu0
      %v1727 = vadd.f32 0.0, %v1726
      %v1728 = vpop.f32.mrb[0].mxu0
      %1729 = vmatprep.mubr.bf16.mxu0 0
      %1730 = vmatmul.mubr.bf16.gmra.mrb[0].mxu0 %v1530
      %v1731 = vpop.f32.mrb[0].mxu0
      %v1732 = vadd.f32 0.0, %v1731
      %v1733 = vpop.f32.mrb[0].mxu0
      %v1734 = vpop.f32.mrb[0].mxu0
      %v1735 = vadd.f32 0.0, %v1734
      %v1736 = vpop.f32.mrb[0].mxu0
      %1737 = vmatprep.mubr.bf16.mxu0 0
      %1738 = vmatmul.mubr.bf16.gmra.mrb[0].mxu0 %v1532
      %v1739 = vpop.f32.mrb[0].mxu0
      %v1740 = vadd.f32 0.0, %v1739
      %v1741 = vpop.f32.mrb[0].mxu0
      %v1742 = vpop.f32.mrb[0].mxu0
      %v1743 = vadd.f32 0.0, %v1742
      %v1744 = vpop.f32.mrb[0].mxu0
      %1745 = vmatprep.mubr.bf16.mxu0 0
      %1746 = vmatmul.mubr.bf16.gmra.mrb[0].mxu0 %v1534
      %v1747 = vpop.f32.mrb[0].mxu0
      %v1748 = vadd.f32 0.0, %v1747
      %v1749 = vpop.f32.mrb[0].mxu0
      %v1750 = vpop.f32.mrb[0].mxu0
      %v1751 = vadd.f32 0.0, %v1750
      %v1752 = vpop.f32.mrb[0].mxu0
      %1753 = vmatprep.mubr.bf16.mxu0 0
      %1754 = vmatmul.mubr.bf16.gmra.mrb[0].mxu0 %v1536
      %v1755 = vpop.f32.mrb[0].mxu0
      %v1756 = vadd.f32 0.0, %v1755
      %v1757 = vpop.f32.mrb[0].mxu0
      %v1758 = vpop.f32.mrb[0].mxu0
      %v1759 = vadd.f32 0.0, %v1758
      %v1760 = vpop.f32.mrb[0].mxu0
      %1761 = vmatprep.mubr.bf16.mxu0 0
      %1762 = vmatmul.mubr.bf16.gmra.mrb[0].mxu0 %v1538
      %v1763 = vpop.f32.mrb[0].mxu0
      %v1764 = vadd.f32 0.0, %v1763
      %v1765 = vpop.f32.mrb[0].mxu0
      %v1766 = vpop.f32.mrb[0].mxu0
      %v1767 = vadd.f32 0.0, %v1766
      %v1768 = vpop.f32.mrb[0].mxu0
      %1769 = vmatprep.mubr.bf16.mxu0 0
      %1770 = vmatmul.mubr.bf16.gmra.mrb[0].mxu0 %v1540
      %v1771 = vpop.f32.mrb[0].mxu0
      %v1772 = vadd.f32 0.0, %v1771
      %v1773 = vpop.f32.mrb[0].mxu0
      %v1774 = vpop.f32.mrb[0].mxu0
      %v1775 = vadd.f32 0.0, %v1774
      %v1776 = vpop.f32.mrb[0].mxu0
      %1777 = vmatprep.mubr.bf16.mxu0 0
      %1778 = vmatmul.mubr.bf16.gmra.mrb[0].mxu0 %v1542
      %v1779 = vpop.f32.mrb[0].mxu0
      %v1780 = vadd.f32 0.0, %v1779
      %v1781 = vpop.f32.mrb[0].mxu0
      %v1782 = vpop.f32.mrb[0].mxu0
      %v1783 = vadd.f32 0.0, %v1782
      %v1784 = vpop.f32.mrb[0].mxu0
      %1785 = vdwg.mxu0
      %v1786 = vadd.f32 %v1323, %v1644
      %v1787 = vadd.f32 %v1324, %v1647
      %v1788 = vadd.f32 %v1325, %v1652
      %v1789 = vadd.f32 %v1326, %v1655
      %v1790 = vadd.f32 %v1327, %v1660
      %v1791 = vadd.f32 %v1328, %v1663
      %v1792 = vadd.f32 %v1329, %v1668
      %v1793 = vadd.f32 %v1330, %v1671
      %v1794 = vadd.f32 %v1331, %v1676
      %v1795 = vadd.f32 %v1332, %v1679
      %v1796 = vadd.f32 %v1333, %v1684
      %v1797 = vadd.f32 %v1334, %v1687
      %v1798 = vadd.f32 %v1335, %v1692
      %v1799 = vadd.f32 %v1336, %v1695
      %v1800 = vadd.f32 %v1337, %v1700
      %v1801 = vadd.f32 %v1338, %v1703
      %v1802 = vadd.f32 %v1339, %v1708
      %v1803 = vadd.f32 %v1340, %v1711
      %v1804 = vadd.f32 %v1341, %v1716
      %v1805 = vadd.f32 %v1342, %v1719
      %v1806 = vadd.f32 %v1343, %v1724
      %v1807 = vadd.f32 %v1344, %v1727
      %v1808 = vadd.f32 %v1345, %v1732
      %v1809 = vadd.f32 %v1346, %v1735
      %v1810 = vadd.f32 %v1347, %v1740
      %v1811 = vadd.f32 %v1348, %v1743
      %v1812 = vadd.f32 %v1349, %v1748
      %v1813 = vadd.f32 %v1350, %v1751
      %v1814 = vadd.f32 %v1351, %v1756
      %v1815 = vadd.f32 %v1352, %v1759
      %v1816 = vadd.f32 %v1353, %v1764
      %v1817 = vadd.f32 %v1354, %v1767
      %v1818 = vadd.f32 %v1355, %v1772
      %v1819 = vadd.f32 %v1356, %v1775
      %v1820 = vadd.f32 %v1357, %v1780
      %v1821 = vadd.f32 %v1358, %v1783
      %v1822 = vld [vmem:[%s206 + $0x98] sm:$0x3]
      %s1823 = scalar_lea.vmem %s210, 256
      %v1824 = vld [vmem:[%s1823] sm:$0xf]
      %v1825 = vld [vmem:[%s1823 + $0x4] sm:$0xf]
      %v1826 = vld [vmem:[%s1823 + $0x8] sm:$0xf]
      %v1827 = vld [vmem:[%s1823 + $0xc] sm:$0xf]
      %v1828 = vld [vmem:[%s1823 + $0x10] sm:$0xf]
      %v1829 = vld [vmem:[%s1823 + $0x14] sm:$0xf]
      %v1830 = vld [vmem:[%s1823 + $0x18] sm:$0xf]
      %v1831 = vld [vmem:[%s1823 + $0x1c] sm:$0xf]
      %v1832 = vld [vmem:[%s1823 + $0x20] sm:$0xf]
      %v1833 = vld [vmem:[%s1823 + $0x24] sm:$0xf]
      %v1834 = vld [vmem:[%s1823 + $0x28] sm:$0xf]
      %v1835 = vld [vmem:[%s1823 + $0x2c] sm:$0xf]
      %v1836 = vld [vmem:[%s1823 + $0x30] sm:$0xf]
      %v1837 = vld [vmem:[%s1823 + $0x34] sm:$0xf]
      %v1838 = vld [vmem:[%s1823 + $0x38] sm:$0xf]
      %v1839 = vld [vmem:[%s1823 + $0x3c] sm:$0xf]
      %v1841 = vunpack.c.l.b16 %v1822
      %v1842 = vpack.c.b16 %v1841, %v1841
      %vm1843 = vsmask.f32 6400
      %v1845 = vshrl.u32 %v1487, 16
      %v1847 = vrot.slane %v1845, 1
      %v1848 = vshll.u32 %v1487, 16
      %v1850 = vrot.slane %v1848, 2
      %v1851 = vor.u32 %v1847, %v1850
      %v1853 = vshrl.u32 %v1488, 16
      %v1855 = vrot.slane %v1853, 1
      %v1856 = vshll.u32 %v1488, 16
      %v1858 = vrot.slane %v1856, 2
      %v1859 = vor.u32 %v1855, %v1858
      %v1860 = vsel %vm1843, %v1851, %v1859
      %v1862 = vshrl.u32 %v1489, 16
      %v1864 = vrot.slane %v1862, 1
      %v1865 = vshll.u32 %v1489, 16
      %v1867 = vrot.slane %v1865, 2
      %v1868 = vor.u32 %v1864, %v1867
      %v1869 = vsel %vm1843, %v1859, %v1868
      %v1871 = vshrl.u32 %v1490, 16
      %v1873 = vrot.slane %v1871, 1
      %v1874 = vshll.u32 %v1490, 16
      %v1876 = vrot.slane %v1874, 2
      %v1877 = vor.u32 %v1873, %v1876
      %v1878 = vsel %vm1843, %v1868, %v1877
      %v1880 = vshrl.u32 %v1491, 16
      %v1882 = vrot.slane %v1880, 1
      %v1883 = vshll.u32 %v1491, 16
      %v1885 = vrot.slane %v1883, 2
      %v1886 = vor.u32 %v1882, %v1885
      %v1887 = vsel %vm1843, %v1877, %v1886
      %v1889 = vshrl.u32 %v1492, 16
      %v1891 = vrot.slane %v1889, 1
      %v1892 = vshll.u32 %v1492, 16
      %v1894 = vrot.slane %v1892, 2
      %v1895 = vor.u32 %v1891, %v1894
      %v1896 = vsel %vm1843, %v1886, %v1895
      %v1898 = vshrl.u32 %v1493, 16
      %v1900 = vrot.slane %v1898, 1
      %v1901 = vshll.u32 %v1493, 16
      %v1903 = vrot.slane %v1901, 2
      %v1904 = vor.u32 %v1900, %v1903
      %v1905 = vsel %vm1843, %v1895, %v1904
      %v1907 = vshrl.u32 %v1494, 16
      %v1909 = vrot.slane %v1907, 1
      %v1910 = vshll.u32 %v1494, 16
      %v1912 = vrot.slane %v1910, 2
      %v1913 = vor.u32 %v1909, %v1912
      %v1914 = vsel %vm1843, %v1904, %v1913
      %v1916 = vshrl.u32 %v1495, 16
      %v1918 = vrot.slane %v1916, 1
      %v1919 = vshll.u32 %v1495, 16
      %v1921 = vrot.slane %v1919, 2
      %v1922 = vor.u32 %v1918, %v1921
      %v1923 = vsel %vm1843, %v1913, %v1922
      %v1925 = vshrl.u32 %v1496, 16
      %v1927 = vrot.slane %v1925, 1
      %v1928 = vshll.u32 %v1496, 16
      %v1930 = vrot.slane %v1928, 2
      %v1931 = vor.u32 %v1927, %v1930
      %v1932 = vsel %vm1843, %v1922, %v1931
      %v1934 = vshrl.u32 %v1497, 16
      %v1936 = vrot.slane %v1934, 1
      %v1937 = vshll.u32 %v1497, 16
      %v1939 = vrot.slane %v1937, 2
      %v1940 = vor.u32 %v1936, %v1939
      %v1941 = vsel %vm1843, %v1931, %v1940
      %v1943 = vshrl.u32 %v1498, 16
      %v1945 = vrot.slane %v1943, 1
      %v1946 = vshll.u32 %v1498, 16
      %v1948 = vrot.slane %v1946, 2
      %v1949 = vor.u32 %v1945, %v1948
      %v1950 = vsel %vm1843, %v1940, %v1949
      %v1952 = vshrl.u32 %v1499, 16
      %v1954 = vrot.slane %v1952, 1
      %v1955 = vshll.u32 %v1499, 16
      %v1957 = vrot.slane %v1955, 2
      %v1958 = vor.u32 %v1954, %v1957
      %v1959 = vsel %vm1843, %v1949, %v1958
      %v1961 = vshrl.u32 %v1500, 16
      %v1963 = vrot.slane %v1961, 1
      %v1964 = vshll.u32 %v1500, 16
      %v1966 = vrot.slane %v1964, 2
      %v1967 = vor.u32 %v1963, %v1966
      %v1968 = vsel %vm1843, %v1958, %v1967
      %v1970 = vshrl.u32 %v1501, 16
      %v1972 = vrot.slane %v1970, 1
      %v1973 = vshll.u32 %v1501, 16
      %v1975 = vrot.slane %v1973, 2
      %v1976 = vor.u32 %v1972, %v1975
      %v1977 = vsel %vm1843, %v1967, %v1976
      %v1979 = vshrl.u32 %v1502, 16
      %v1981 = vrot.slane %v1979, 1
      %v1982 = vshll.u32 %v1502, 16
      %v1984 = vrot.slane %v1982, 2
      %v1985 = vor.u32 %v1981, %v1984
      %v1986 = vsel %vm1843, %v1976, %v1985
      %v1988 = vshrl.u32 %v1503, 16
      %v1990 = vrot.slane %v1988, 1
      %v1991 = vshll.u32 %v1503, 16
      %v1993 = vrot.slane %v1991, 2
      %v1994 = vor.u32 %v1990, %v1993
      %v1995 = vsel %vm1843, %v1985, %v1994
      %v1997 = vshrl.u32 %v1504, 16
      %v1999 = vrot.slane %v1997, 1
      %v2000 = vshll.u32 %v1504, 16
      %v2002 = vrot.slane %v2000, 2
      %v2003 = vor.u32 %v1999, %v2002
      %v2004 = vsel %vm1843, %v1994, %v2003
      %v2006 = vshrl.u32 %v1842, 16
      %v2008 = vrot.slane %v2006, 1
      %v2009 = vshll.u32 %v1842, 16
      %v2011 = vrot.slane %v2009, 2
      %v2012 = vor.u32 %v2008, %v2011
      %v2013 = vsel %vm1843, %v2003, %v2012
      %v2048 = vunpack.c.l.b16 %v1824
      %v2049 = vunpack.c.l.b16 %v1825
      %v2050 = vunpack.c.l.b16 %v1826
      %v2051 = vunpack.c.l.b16 %v1827
      %v2052 = vunpack.c.l.b16 %v1828
      %v2053 = vunpack.c.l.b16 %v1829
      %v2054 = vunpack.c.l.b16 %v1830
      %v2055 = vunpack.c.l.b16 %v1831
      %v2056 = vunpack.c.l.b16 %v1832
      %v2057 = vunpack.c.l.b16 %v1833
      %v2058 = vunpack.c.l.b16 %v1834
      %v2059 = vunpack.c.l.b16 %v1835
      %v2060 = vunpack.c.l.b16 %v1836
      %v2061 = vunpack.c.l.b16 %v1837
      %v2062 = vunpack.c.l.b16 %v1838
      %v2063 = vunpack.c.l.b16 %v1839
      %v2064 = vpack.c.b16 %v2049, %v2048
      %v2065 = vpack.c.b16 %v2051, %v2050
      %v2066 = vpack.c.b16 %v2053, %v2052
      %v2067 = vpack.c.b16 %v2055, %v2054
      %v2068 = vpack.c.b16 %v2057, %v2056
      %v2069 = vpack.c.b16 %v2059, %v2058
      %v2070 = vpack.c.b16 %v2061, %v2060
      %v2071 = vpack.c.b16 %v2063, %v2062
      %2080 = vmatprep.subr.bf16.mxu0 0
      %2081 = vmatpush1.bf16.msra.mxu0 %v2064
      %2082 = vmatprep.subr.bf16.mxu0 0
      %2083 = vmatpush1.bf16.msra.mxu0 %v2065
      %2084 = vmatprep.subr.bf16.mxu0 0
      %2085 = vmatpush1.bf16.msra.mxu0 %v2066
      %2086 = vmatprep.subr.bf16.mxu0 0
      %2087 = vmatpush1.bf16.msra.mxu0 %v2067
      %2088 = vmatprep.subr.bf16.mxu0 0
      %2089 = vmatpush1.bf16.msra.mxu0 %v2068
      %2090 = vmatprep.subr.bf16.mxu0 0
      %2091 = vmatpush1.bf16.msra.mxu0 %v2069
      %2092 = vmatprep.subr.bf16.mxu0 0
      %2093 = vmatpush1.bf16.msra.mxu0 %v2070
      %2094 = vmatprep.subr.bf16.mxu0 0
      %2095 = vmatpush1.bf16.msra.mxu0 %v2071
      %2096 = vmatprep.subr.bf16.mxu0 0
      %2097 = vmatpush1.bf16.msra.mxu0 0
      %2098 = vmatprep.subr.bf16.mxu0 0
      %2099 = vmatpush1.bf16.msra.mxu0 0
      %2100 = vmatprep.subr.bf16.mxu0 0
      %2101 = vmatpush1.bf16.msra.mxu0 0
      %2102 = vmatprep.subr.bf16.mxu0 0
      %2103 = vmatpush1.bf16.msra.mxu0 0
      %2104 = vmatprep.subr.bf16.mxu0 0
      %2105 = vmatpush1.bf16.msra.mxu0 0
      %2106 = vmatprep.subr.bf16.mxu0 0
      %2107 = vmatpush1.bf16.msra.mxu0 0
      %2108 = vmatprep.subr.bf16.mxu0 0
      %2109 = vmatpush1.bf16.msra.mxu0 0
      %2110 = vmatprep.subr.bf16.mxu0 0
      %2111 = vmatpush1.bf16.msra.mxu0 0
      %2112 = vmatprep.mubr.bf16.mxu0 0
      %2113 = vmatmul.mubr.bf16.gmra.mrb[0].mxu0 %v1860
      %v2114 = vpop.f32.mrb[0].mxu0
      %v2115 = vadd.f32 0.0, %v2114
      %v2116 = vpop.f32.mrb[0].mxu0
      %v2117 = vpop.f32.mrb[0].mxu0
      %v2118 = vadd.f32 0.0, %v2117
      %v2119 = vpop.f32.mrb[0].mxu0
      %2120 = vmatprep.mubr.bf16.mxu0 0
      %2121 = vmatmul.mubr.bf16.gmra.mrb[0].mxu0 %v1869
      %v2122 = vpop.f32.mrb[0].mxu0
      %v2123 = vadd.f32 0.0, %v2122
      %v2124 = vpop.f32.mrb[0].mxu0
      %v2125 = vpop.f32.mrb[0].mxu0
      %v2126 = vadd.f32 0.0, %v2125
      %v2127 = vpop.f32.mrb[0].mxu0
      %2128 = vmatprep.mubr.bf16.mxu0 0
      %2129 = vmatmul.mubr.bf16.gmra.mrb[0].mxu0 %v1878
      %v2130 = vpop.f32.mrb[0].mxu0
      %v2131 = vadd.f32 0.0, %v2130
      %v2132 = vpop.f32.mrb[0].mxu0
      %v2133 = vpop.f32.mrb[0].mxu0
      %v2134 = vadd.f32 0.0, %v2133
      %v2135 = vpop.f32.mrb[0].mxu0
      %2136 = vmatprep.mubr.bf16.mxu0 0
      %2137 = vmatmul.mubr.bf16.gmra.mrb[0].mxu0 %v1887
      %v2138 = vpop.f32.mrb[0].mxu0
      %v2139 = vadd.f32 0.0, %v2138
      %v2140 = vpop.f32.mrb[0].mxu0
      %v2141 = vpop.f32.mrb[0].mxu0
      %v2142 = vadd.f32 0.0, %v2141
      %v2143 = vpop.f32.mrb[0].mxu0
      %2144 = vmatprep.mubr.bf16.mxu0 0
      %2145 = vmatmul.mubr.bf16.gmra.mrb[0].mxu0 %v1896
      %v2146 = vpop.f32.mrb[0].mxu0
      %v2147 = vadd.f32 0.0, %v2146
      %v2148 = vpop.f32.mrb[0].mxu0
      %v2149 = vpop.f32.mrb[0].mxu0
      %v2150 = vadd.f32 0.0, %v2149
      %v2151 = vpop.f32.mrb[0].mxu0
      %2152 = vmatprep.mubr.bf16.mxu0 0
      %2153 = vmatmul.mubr.bf16.gmra.mrb[0].mxu0 %v1905
      %v2154 = vpop.f32.mrb[0].mxu0
      %v2155 = vadd.f32 0.0, %v2154
      %v2156 = vpop.f32.mrb[0].mxu0
      %v2157 = vpop.f32.mrb[0].mxu0
      %v2158 = vadd.f32 0.0, %v2157
      %v2159 = vpop.f32.mrb[0].mxu0
      %2160 = vmatprep.mubr.bf16.mxu0 0
      %2161 = vmatmul.mubr.bf16.gmra.mrb[0].mxu0 %v1914
      %v2162 = vpop.f32.mrb[0].mxu0
      %v2163 = vadd.f32 0.0, %v2162
      %v2164 = vpop.f32.mrb[0].mxu0
      %v2165 = vpop.f32.mrb[0].mxu0
      %v2166 = vadd.f32 0.0, %v2165
      %v2167 = vpop.f32.mrb[0].mxu0
      %2168 = vmatprep.mubr.bf16.mxu0 0
      %2169 = vmatmul.mubr.bf16.gmra.mrb[0].mxu0 %v1923
      %v2170 = vpop.f32.mrb[0].mxu0
      %v2171 = vadd.f32 0.0, %v2170
      %v2172 = vpop.f32.mrb[0].mxu0
      %v2173 = vpop.f32.mrb[0].mxu0
      %v2174 = vadd.f32 0.0, %v2173
      %v2175 = vpop.f32.mrb[0].mxu0
      %2176 = vmatprep.mubr.bf16.mxu0 0
      %2177 = vmatmul.mubr.bf16.gmra.mrb[0].mxu0 %v1932
      %v2178 = vpop.f32.mrb[0].mxu0
      %v2179 = vadd.f32 0.0, %v2178
      %v2180 = vpop.f32.mrb[0].mxu0
      %v2181 = vpop.f32.mrb[0].mxu0
      %v2182 = vadd.f32 0.0, %v2181
      %v2183 = vpop.f32.mrb[0].mxu0
      %2184 = vmatprep.mubr.bf16.mxu0 0
      %2185 = vmatmul.mubr.bf16.gmra.mrb[0].mxu0 %v1941
      %v2186 = vpop.f32.mrb[0].mxu0
      %v2187 = vadd.f32 0.0, %v2186
      %v2188 = vpop.f32.mrb[0].mxu0
      %v2189 = vpop.f32.mrb[0].mxu0
      %v2190 = vadd.f32 0.0, %v2189
      %v2191 = vpop.f32.mrb[0].mxu0
      %2192 = vmatprep.mubr.bf16.mxu0 0
      %2193 = vmatmul.mubr.bf16.gmra.mrb[0].mxu0 %v1950
      %v2194 = vpop.f32.mrb[0].mxu0
      %v2195 = vadd.f32 0.0, %v2194
      %v2196 = vpop.f32.mrb[0].mxu0
      %v2197 = vpop.f32.mrb[0].mxu0
      %v2198 = vadd.f32 0.0, %v2197
      %v2199 = vpop.f32.mrb[0].mxu0
      %2200 = vmatprep.mubr.bf16.mxu0 0
      %2201 = vmatmul.mubr.bf16.gmra.mrb[0].mxu0 %v1959
      %v2202 = vpop.f32.mrb[0].mxu0
      %v2203 = vadd.f32 0.0, %v2202
      %v2204 = vpop.f32.mrb[0].mxu0
      %v2205 = vpop.f32.mrb[0].mxu0
      %v2206 = vadd.f32 0.0, %v2205
      %v2207 = vpop.f32.mrb[0].mxu0
      %2208 = vmatprep.mubr.bf16.mxu0 0
      %2209 = vmatmul.mubr.bf16.gmra.mrb[0].mxu0 %v1968
      %v2210 = vpop.f32.mrb[0].mxu0
      %v2211 = vadd.f32 0.0, %v2210
      %v2212 = vpop.f32.mrb[0].mxu0
      %v2213 = vpop.f32.mrb[0].mxu0
      %v2214 = vadd.f32 0.0, %v2213
      %v2215 = vpop.f32.mrb[0].mxu0
      %2216 = vmatprep.mubr.bf16.mxu0 0
      %2217 = vmatmul.mubr.bf16.gmra.mrb[0].mxu0 %v1977
      %v2218 = vpop.f32.mrb[0].mxu0
      %v2219 = vadd.f32 0.0, %v2218
      %v2220 = vpop.f32.mrb[0].mxu0
      %v2221 = vpop.f32.mrb[0].mxu0
      %v2222 = vadd.f32 0.0, %v2221
      %v2223 = vpop.f32.mrb[0].mxu0
      %2224 = vmatprep.mubr.bf16.mxu0 0
      %2225 = vmatmul.mubr.bf16.gmra.mrb[0].mxu0 %v1986
      %v2226 = vpop.f32.mrb[0].mxu0
      %v2227 = vadd.f32 0.0, %v2226
      %v2228 = vpop.f32.mrb[0].mxu0
      %v2229 = vpop.f32.mrb[0].mxu0
      %v2230 = vadd.f32 0.0, %v2229
      %v2231 = vpop.f32.mrb[0].mxu0
      %2232 = vmatprep.mubr.bf16.mxu0 0
      %2233 = vmatmul.mubr.bf16.gmra.mrb[0].mxu0 %v1995
      %v2234 = vpop.f32.mrb[0].mxu0
      %v2235 = vadd.f32 0.0, %v2234
      %v2236 = vpop.f32.mrb[0].mxu0
      %v2237 = vpop.f32.mrb[0].mxu0
      %v2238 = vadd.f32 0.0, %v2237
      %v2239 = vpop.f32.mrb[0].mxu0
      %2240 = vmatprep.mubr.bf16.mxu0 0
      %2241 = vmatmul.mubr.bf16.gmra.mrb[0].mxu0 %v2004
      %v2242 = vpop.f32.mrb[0].mxu0
      %v2243 = vadd.f32 0.0, %v2242
      %v2244 = vpop.f32.mrb[0].mxu0
      %v2245 = vpop.f32.mrb[0].mxu0
      %v2246 = vadd.f32 0.0, %v2245
      %v2247 = vpop.f32.mrb[0].mxu0
      %2248 = vmatprep.mubr.bf16.mxu0 0
      %2249 = vmatmul.mubr.bf16.gmra.mrb[0].mxu0 %v2013
      %v2250 = vpop.f32.mrb[0].mxu0
      %v2251 = vadd.f32 0.0, %v2250
      %v2252 = vpop.f32.mrb[0].mxu0
      %v2253 = vpop.f32.mrb[0].mxu0
      %v2254 = vadd.f32 0.0, %v2253
      %v2255 = vpop.f32.mrb[0].mxu0
      %2256 = vdwg.mxu0
      %v2257 = vadd.f32 %v1786, %v2115
      %v2258 = vadd.f32 %v1787, %v2118
      %v2259 = vadd.f32 %v1788, %v2123
      %v2260 = vadd.f32 %v1789, %v2126
      %v2261 = vadd.f32 %v1790, %v2131
      %v2262 = vadd.f32 %v1791, %v2134
      %v2263 = vadd.f32 %v1792, %v2139
      %v2264 = vadd.f32 %v1793, %v2142
      %v2265 = vadd.f32 %v1794, %v2147
      %v2266 = vadd.f32 %v1795, %v2150
      %v2267 = vadd.f32 %v1796, %v2155
      %v2268 = vadd.f32 %v1797, %v2158
      %v2269 = vadd.f32 %v1798, %v2163
      %v2270 = vadd.f32 %v1799, %v2166
      %v2271 = vadd.f32 %v1800, %v2171
      %v2272 = vadd.f32 %v1801, %v2174
      %v2273 = vadd.f32 %v1802, %v2179
      %v2274 = vadd.f32 %v1803, %v2182
      %v2275 = vadd.f32 %v1804, %v2187
      %v2276 = vadd.f32 %v1805, %v2190
      %v2277 = vadd.f32 %v1806, %v2195
      %v2278 = vadd.f32 %v1807, %v2198
      %v2279 = vadd.f32 %v1808, %v2203
      %v2280 = vadd.f32 %v1809, %v2206
      %v2281 = vadd.f32 %v1810, %v2211
      %v2282 = vadd.f32 %v1811, %v2214
      %v2283 = vadd.f32 %v1812, %v2219
      %v2284 = vadd.f32 %v1813, %v2222
      %v2285 = vadd.f32 %v1814, %v2227
      %v2286 = vadd.f32 %v1815, %v2230
      %v2287 = vadd.f32 %v1816, %v2235
      %v2288 = vadd.f32 %v1817, %v2238
      %v2289 = vadd.f32 %v1818, %v2243
      %v2290 = vadd.f32 %v1819, %v2246
      %v2291 = vadd.f32 %v1820, %v2251
      %v2292 = vadd.f32 %v1821, %v2254
      %v2293 = vld [vmem:[%s206 + $0x8] sm:$0xc]
      %s2294 = scalar_lea.vmem %s210, 320
      %v2295 = vld [vmem:[%s2294] sm:$0xf]
      %v2296 = vld [vmem:[%s2294 + $0x4] sm:$0xf]
      %v2297 = vld [vmem:[%s2294 + $0x8] sm:$0xf]
      %v2298 = vld [vmem:[%s2294 + $0xc] sm:$0xf]
      %v2299 = vld [vmem:[%s2294 + $0x10] sm:$0xf]
      %v2300 = vld [vmem:[%s2294 + $0x14] sm:$0xf]
      %v2301 = vld [vmem:[%s2294 + $0x18] sm:$0xf]
      %v2302 = vld [vmem:[%s2294 + $0x1c] sm:$0xf]
      %v2303 = vld [vmem:[%s2294 + $0x20] sm:$0xf]
      %v2304 = vld [vmem:[%s2294 + $0x24] sm:$0xf]
      %v2305 = vld [vmem:[%s2294 + $0x28] sm:$0xf]
      %v2306 = vld [vmem:[%s2294 + $0x2c] sm:$0xf]
      %v2307 = vld [vmem:[%s2294 + $0x30] sm:$0xf]
      %v2308 = vld [vmem:[%s2294 + $0x34] sm:$0xf]
      %v2309 = vld [vmem:[%s2294 + $0x38] sm:$0xf]
      %v2310 = vld [vmem:[%s2294 + $0x3c] sm:$0xf]
      %v2312 = vunpack.c.l.b16 %v2293
      %v2313 = vpack.c.b16 %v1451, %v2312
      %vm2314 = vcmask 1045504
      %v2315 = vrot.slane %v2313, 2
      %v2316 = vrot.slane %v1488, 2
      %v2317 = vsel %vm2314, %v2315, %v2316
      %v2318 = vrot.slane %v1489, 2
      %v2319 = vsel %vm2314, %v2316, %v2318
      %v2320 = vrot.slane %v1490, 2
      %v2321 = vsel %vm2314, %v2318, %v2320
      %v2322 = vrot.slane %v1491, 2
      %v2323 = vsel %vm2314, %v2320, %v2322
      %v2324 = vrot.slane %v1492, 2
      %v2325 = vsel %vm2314, %v2322, %v2324
      %v2326 = vrot.slane %v1493, 2
      %v2327 = vsel %vm2314, %v2324, %v2326
      %v2328 = vrot.slane %v1494, 2
      %v2329 = vsel %vm2314, %v2326, %v2328
      %v2330 = vrot.slane %v1495, 2
      %v2331 = vsel %vm2314, %v2328, %v2330
      %v2332 = vrot.slane %v1496, 2
      %v2333 = vsel %vm2314, %v2330, %v2332
      %v2334 = vrot.slane %v1497, 2
      %v2335 = vsel %vm2314, %v2332, %v2334
      %v2336 = vrot.slane %v1498, 2
      %v2337 = vsel %vm2314, %v2334, %v2336
      %v2338 = vrot.slane %v1499, 2
      %v2339 = vsel %vm2314, %v2336, %v2338
      %v2340 = vrot.slane %v1500, 2
      %v2341 = vsel %vm2314, %v2338, %v2340
      %v2342 = vrot.slane %v1501, 2
      %v2343 = vsel %vm2314, %v2340, %v2342
      %v2344 = vrot.slane %v1502, 2
      %v2345 = vsel %vm2314, %v2342, %v2344
      %v2346 = vrot.slane %v1503, 2
      %v2347 = vsel %vm2314, %v2344, %v2346
      %v2348 = vrot.slane %v1504, 2
      %v2349 = vsel %vm2314, %v2346, %v2348
      %v2350 = vrot.slane %v1842, 2
      %v2351 = vsel %vm2314, %v2348, %v2350
      %v2386 = vunpack.c.l.b16 %v2295
      %v2387 = vunpack.c.l.b16 %v2296
      %v2388 = vunpack.c.l.b16 %v2297
      %v2389 = vunpack.c.l.b16 %v2298
      %v2390 = vunpack.c.l.b16 %v2299
      %v2391 = vunpack.c.l.b16 %v2300
      %v2392 = vunpack.c.l.b16 %v2301
      %v2393 = vunpack.c.l.b16 %v2302
      %v2394 = vunpack.c.l.b16 %v2303
      %v2395 = vunpack.c.l.b16 %v2304
      %v2396 = vunpack.c.l.b16 %v2305
      %v2397 = vunpack.c.l.b16 %v2306
      %v2398 = vunpack.c.l.b16 %v2307
      %v2399 = vunpack.c.l.b16 %v2308
      %v2400 = vunpack.c.l.b16 %v2309
      %v2401 = vunpack.c.l.b16 %v2310
      %v2402 = vpack.c.b16 %v2387, %v2386
      %v2403 = vpack.c.b16 %v2389, %v2388
      %v2404 = vpack.c.b16 %v2391, %v2390
      %v2405 = vpack.c.b16 %v2393, %v2392
      %v2406 = vpack.c.b16 %v2395, %v2394
      %v2407 = vpack.c.b16 %v2397, %v2396
      %v2408 = vpack.c.b16 %v2399, %v2398
      %v2409 = vpack.c.b16 %v2401, %v2400
      %2418 = vmatprep.subr.bf16.mxu0 0
      %2419 = vmatpush1.bf16.msra.mxu0 %v2402
      %2420 = vmatprep.subr.bf16.mxu0 0
      %2421 = vmatpush1.bf16.msra.mxu0 %v2403
      %2422 = vmatprep.subr.bf16.mxu0 0
      %2423 = vmatpush1.bf16.msra.mxu0 %v2404
      %2424 = vmatprep.subr.bf16.mxu0 0
      %2425 = vmatpush1.bf16.msra.mxu0 %v2405
      %2426 = vmatprep.subr.bf16.mxu0 0
      %2427 = vmatpush1.bf16.msra.mxu0 %v2406
      %2428 = vmatprep.subr.bf16.mxu0 0
      %2429 = vmatpush1.bf16.msra.mxu0 %v2407
      %2430 = vmatprep.subr.bf16.mxu0 0
      %2431 = vmatpush1.bf16.msra.mxu0 %v2408
      %2432 = vmatprep.subr.bf16.mxu0 0
      %2433 = vmatpush1.bf16.msra.mxu0 %v2409
      %2434 = vmatprep.subr.bf16.mxu0 0
      %2435 = vmatpush1.bf16.msra.mxu0 0
      %2436 = vmatprep.subr.bf16.mxu0 0
      %2437 = vmatpush1.bf16.msra.mxu0 0
      %2438 = vmatprep.subr.bf16.mxu0 0
      %2439 = vmatpush1.bf16.msra.mxu0 0
      %2440 = vmatprep.subr.bf16.mxu0 0
      %2441 = vmatpush1.bf16.msra.mxu0 0
      %2442 = vmatprep.subr.bf16.mxu0 0
      %2443 = vmatpush1.bf16.msra.mxu0 0
      %2444 = vmatprep.subr.bf16.mxu0 0
      %2445 = vmatpush1.bf16.msra.mxu0 0
      %2446 = vmatprep.subr.bf16.mxu0 0
      %2447 = vmatpush1.bf16.msra.mxu0 0
      %2448 = vmatprep.subr.bf16.mxu0 0
      %2449 = vmatpush1.bf16.msra.mxu0 0
      %2450 = vmatprep.mubr.bf16.mxu0 0
      %2451 = vmatmul.mubr.bf16.gmra.mrb[0].mxu0 %v2317
      %v2452 = vpop.f32.mrb[0].mxu0
      %v2453 = vadd.f32 0.0, %v2452
      %v2454 = vpop.f32.mrb[0].mxu0
      %v2455 = vpop.f32.mrb[0].mxu0
      %v2456 = vadd.f32 0.0, %v2455
      %v2457 = vpop.f32.mrb[0].mxu0
      %2458 = vmatprep.mubr.bf16.mxu0 0
      %2459 = vmatmul.mubr.bf16.gmra.mrb[0].mxu0 %v2319
      %v2460 = vpop.f32.mrb[0].mxu0
      %v2461 = vadd.f32 0.0, %v2460
      %v2462 = vpop.f32.mrb[0].mxu0
      %v2463 = vpop.f32.mrb[0].mxu0
      %v2464 = vadd.f32 0.0, %v2463
      %v2465 = vpop.f32.mrb[0].mxu0
      %2466 = vmatprep.mubr.bf16.mxu0 0
      %2467 = vmatmul.mubr.bf16.gmra.mrb[0].mxu0 %v2321
      %v2468 = vpop.f32.mrb[0].mxu0
      %v2469 = vadd.f32 0.0, %v2468
      %v2470 = vpop.f32.mrb[0].mxu0
      %v2471 = vpop.f32.mrb[0].mxu0
      %v2472 = vadd.f32 0.0, %v2471
      %v2473 = vpop.f32.mrb[0].mxu0
      %2474 = vmatprep.mubr.bf16.mxu0 0
      %2475 = vmatmul.mubr.bf16.gmra.mrb[0].mxu0 %v2323
      %v2476 = vpop.f32.mrb[0].mxu0
      %v2477 = vadd.f32 0.0, %v2476
      %v2478 = vpop.f32.mrb[0].mxu0
      %v2479 = vpop.f32.mrb[0].mxu0
      %v2480 = vadd.f32 0.0, %v2479
      %v2481 = vpop.f32.mrb[0].mxu0
      %2482 = vmatprep.mubr.bf16.mxu0 0
      %2483 = vmatmul.mubr.bf16.gmra.mrb[0].mxu0 %v2325
      %v2484 = vpop.f32.mrb[0].mxu0
      %v2485 = vadd.f32 0.0, %v2484
      %v2486 = vpop.f32.mrb[0].mxu0
      %v2487 = vpop.f32.mrb[0].mxu0
      %v2488 = vadd.f32 0.0, %v2487
      %v2489 = vpop.f32.mrb[0].mxu0
      %2490 = vmatprep.mubr.bf16.mxu0 0
      %2491 = vmatmul.mubr.bf16.gmra.mrb[0].mxu0 %v2327
      %v2492 = vpop.f32.mrb[0].mxu0
      %v2493 = vadd.f32 0.0, %v2492
      %v2494 = vpop.f32.mrb[0].mxu0
      %v2495 = vpop.f32.mrb[0].mxu0
      %v2496 = vadd.f32 0.0, %v2495
      %v2497 = vpop.f32.mrb[0].mxu0
      %2498 = vmatprep.mubr.bf16.mxu0 0
      %2499 = vmatmul.mubr.bf16.gmra.mrb[0].mxu0 %v2329
      %v2500 = vpop.f32.mrb[0].mxu0
      %v2501 = vadd.f32 0.0, %v2500
      %v2502 = vpop.f32.mrb[0].mxu0
      %v2503 = vpop.f32.mrb[0].mxu0
      %v2504 = vadd.f32 0.0, %v2503
      %v2505 = vpop.f32.mrb[0].mxu0
      %2506 = vmatprep.mubr.bf16.mxu0 0
      %2507 = vmatmul.mubr.bf16.gmra.mrb[0].mxu0 %v2331
      %v2508 = vpop.f32.mrb[0].mxu0
      %v2509 = vadd.f32 0.0, %v2508
      %v2510 = vpop.f32.mrb[0].mxu0
      %v2511 = vpop.f32.mrb[0].mxu0
      %v2512 = vadd.f32 0.0, %v2511
      %v2513 = vpop.f32.mrb[0].mxu0
      %2514 = vmatprep.mubr.bf16.mxu0 0
      %2515 = vmatmul.mubr.bf16.gmra.mrb[0].mxu0 %v2333
      %v2516 = vpop.f32.mrb[0].mxu0
      %v2517 = vadd.f32 0.0, %v2516
      %v2518 = vpop.f32.mrb[0].mxu0
      %v2519 = vpop.f32.mrb[0].mxu0
      %v2520 = vadd.f32 0.0, %v2519
      %v2521 = vpop.f32.mrb[0].mxu0
      %2522 = vmatprep.mubr.bf16.mxu0 0
      %2523 = vmatmul.mubr.bf16.gmra.mrb[0].mxu0 %v2335
      %v2524 = vpop.f32.mrb[0].mxu0
      %v2525 = vadd.f32 0.0, %v2524
      %v2526 = vpop.f32.mrb[0].mxu0
      %v2527 = vpop.f32.mrb[0].mxu0
      %v2528 = vadd.f32 0.0, %v2527
      %v2529 = vpop.f32.mrb[0].mxu0
      %2530 = vmatprep.mubr.bf16.mxu0 0
      %2531 = vmatmul.mubr.bf16.gmra.mrb[0].mxu0 %v2337
      %v2532 = vpop.f32.mrb[0].mxu0
      %v2533 = vadd.f32 0.0, %v2532
      %v2534 = vpop.f32.mrb[0].mxu0
      %v2535 = vpop.f32.mrb[0].mxu0
      %v2536 = vadd.f32 0.0, %v2535
      %v2537 = vpop.f32.mrb[0].mxu0
      %2538 = vmatprep.mubr.bf16.mxu0 0
      %2539 = vmatmul.mubr.bf16.gmra.mrb[0].mxu0 %v2339
      %v2540 = vpop.f32.mrb[0].mxu0
      %v2541 = vadd.f32 0.0, %v2540
      %v2542 = vpop.f32.mrb[0].mxu0
      %v2543 = vpop.f32.mrb[0].mxu0
      %v2544 = vadd.f32 0.0, %v2543
      %v2545 = vpop.f32.mrb[0].mxu0
      %2546 = vmatprep.mubr.bf16.mxu0 0
      %2547 = vmatmul.mubr.bf16.gmra.mrb[0].mxu0 %v2341
      %v2548 = vpop.f32.mrb[0].mxu0
      %v2549 = vadd.f32 0.0, %v2548
      %v2550 = vpop.f32.mrb[0].mxu0
      %v2551 = vpop.f32.mrb[0].mxu0
      %v2552 = vadd.f32 0.0, %v2551
      %v2553 = vpop.f32.mrb[0].mxu0
      %2554 = vmatprep.mubr.bf16.mxu0 0
      %2555 = vmatmul.mubr.bf16.gmra.mrb[0].mxu0 %v2343
      %v2556 = vpop.f32.mrb[0].mxu0
      %v2557 = vadd.f32 0.0, %v2556
      %v2558 = vpop.f32.mrb[0].mxu0
      %v2559 = vpop.f32.mrb[0].mxu0
      %v2560 = vadd.f32 0.0, %v2559
      %v2561 = vpop.f32.mrb[0].mxu0
      %2562 = vmatprep.mubr.bf16.mxu0 0
      %2563 = vmatmul.mubr.bf16.gmra.mrb[0].mxu0 %v2345
      %v2564 = vpop.f32.mrb[0].mxu0
      %v2565 = vadd.f32 0.0, %v2564
      %v2566 = vpop.f32.mrb[0].mxu0
      %v2567 = vpop.f32.mrb[0].mxu0
      %v2568 = vadd.f32 0.0, %v2567
      %v2569 = vpop.f32.mrb[0].mxu0
      %2570 = vmatprep.mubr.bf16.mxu0 0
      %2571 = vmatmul.mubr.bf16.gmra.mrb[0].mxu0 %v2347
      %v2572 = vpop.f32.mrb[0].mxu0
      %v2573 = vadd.f32 0.0, %v2572
      %v2574 = vpop.f32.mrb[0].mxu0
      %v2575 = vpop.f32.mrb[0].mxu0
      %v2576 = vadd.f32 0.0, %v2575
      %v2577 = vpop.f32.mrb[0].mxu0
      %2578 = vmatprep.mubr.bf16.mxu0 0
      %2579 = vmatmul.mubr.bf16.gmra.mrb[0].mxu0 %v2349
      %v2580 = vpop.f32.mrb[0].mxu0
      %v2581 = vadd.f32 0.0, %v2580
      %v2582 = vpop.f32.mrb[0].mxu0
      %v2583 = vpop.f32.mrb[0].mxu0
      %v2584 = vadd.f32 0.0, %v2583
      %v2585 = vpop.f32.mrb[0].mxu0
      %2586 = vmatprep.mubr.bf16.mxu0 0
      %2587 = vmatmul.mubr.bf16.gmra.mrb[0].mxu0 %v2351
      %v2588 = vpop.f32.mrb[0].mxu0
      %v2589 = vadd.f32 0.0, %v2588
      %v2590 = vpop.f32.mrb[0].mxu0
      %v2591 = vpop.f32.mrb[0].mxu0
      %v2592 = vadd.f32 0.0, %v2591
      %v2593 = vpop.f32.mrb[0].mxu0
      %2594 = vdwg.mxu0
      %v2595 = vadd.f32 %v2257, %v2453
      %v2596 = vadd.f32 %v2258, %v2456
      %v2597 = vadd.f32 %v2259, %v2461
      %v2598 = vadd.f32 %v2260, %v2464
      %v2599 = vadd.f32 %v2261, %v2469
      %v2600 = vadd.f32 %v2262, %v2472
      %v2601 = vadd.f32 %v2263, %v2477
      %v2602 = vadd.f32 %v2264, %v2480
      %v2603 = vadd.f32 %v2265, %v2485
      %v2604 = vadd.f32 %v2266, %v2488
      %v2605 = vadd.f32 %v2267, %v2493
      %v2606 = vadd.f32 %v2268, %v2496
      %v2607 = vadd.f32 %v2269, %v2501
      %v2608 = vadd.f32 %v2270, %v2504
      %v2609 = vadd.f32 %v2271, %v2509
      %v2610 = vadd.f32 %v2272, %v2512
      %v2611 = vadd.f32 %v2273, %v2517
      %v2612 = vadd.f32 %v2274, %v2520
      %v2613 = vadd.f32 %v2275, %v2525
      %v2614 = vadd.f32 %v2276, %v2528
      %v2615 = vadd.f32 %v2277, %v2533
      %v2616 = vadd.f32 %v2278, %v2536
      %v2617 = vadd.f32 %v2279, %v2541
      %v2618 = vadd.f32 %v2280, %v2544
      %v2619 = vadd.f32 %v2281, %v2549
      %v2620 = vadd.f32 %v2282, %v2552
      %v2621 = vadd.f32 %v2283, %v2557
      %v2622 = vadd.f32 %v2284, %v2560
      %v2623 = vadd.f32 %v2285, %v2565
      %v2624 = vadd.f32 %v2286, %v2568
      %v2625 = vadd.f32 %v2287, %v2573
      %v2626 = vadd.f32 %v2288, %v2576
      %v2627 = vadd.f32 %v2289, %v2581
      %v2628 = vadd.f32 %v2290, %v2584
      %v2629 = vadd.f32 %v2291, %v2589
      %v2630 = vadd.f32 %v2292, %v2592
      %v2631 = vld [vmem:[%s206 + $0x10] sm:$0xc]
      %v2632 = vld [vmem:[%s206 + $0x14] sm:$0xf]
      %v2633 = vld [vmem:[%s206 + $0x18] sm:$0xf]
      %v2634 = vld [vmem:[%s206 + $0x1c] sm:$0xf]
      %v2635 = vld [vmem:[%s206 + $0x20] sm:$0xf]
      %v2636 = vld [vmem:[%s206 + $0x24] sm:$0xf]
      %v2637 = vld [vmem:[%s206 + $0x28] sm:$0xf]
      %v2638 = vld [vmem:[%s206 + $0x2c] sm:$0xf]
      %v2639 = vld [vmem:[%s206 + $0x30] sm:$0xf]
      %v2640 = vld [vmem:[%s206 + $0x34] sm:$0xf]
      %v2641 = vld [vmem:[%s206 + $0x38] sm:$0xf]
      %v2642 = vld [vmem:[%s206 + $0x3c] sm:$0xf]
      %v2643 = vld [vmem:[%s206 + $0x40] sm:$0xf]
      %v2644 = vld [vmem:[%s206 + $0x44] sm:$0xf]
      %v2645 = vld [vmem:[%s206 + $0x48] sm:$0xf]
      %v2646 = vld [vmem:[%s206 + $0x4c] sm:$0xf]
      %v2647 = vld [vmem:[%s206 + $0x50] sm:$0xf]
      %v2648 = vld [vmem:[%s206 + $0x54] sm:$0xf]
      %v2649 = vld [vmem:[%s206 + $0x58] sm:$0xf]
      %v2650 = vld [vmem:[%s206 + $0x5c] sm:$0xf]
      %v2651 = vld [vmem:[%s206 + $0x60] sm:$0xf]
      %v2652 = vld [vmem:[%s206 + $0x64] sm:$0xf]
      %v2653 = vld [vmem:[%s206 + $0x68] sm:$0xf]
      %v2654 = vld [vmem:[%s206 + $0x6c] sm:$0xf]
      %v2655 = vld [vmem:[%s206 + $0x70] sm:$0xf]
      %v2656 = vld [vmem:[%s206 + $0x74] sm:$0xf]
      %v2657 = vld [vmem:[%s206 + $0x78] sm:$0xf]
      %v2658 = vld [vmem:[%s206 + $0x7c] sm:$0xf]
      %v2659 = vld [vmem:[%s206 + $0x80] sm:$0xf]
      %v2660 = vld [vmem:[%s206 + $0x84] sm:$0xf]
      %v2661 = vld [vmem:[%s206 + $0x88] sm:$0xf]
      %v2662 = vld [vmem:[%s206 + $0x8c] sm:$0xf]
      %v2663 = vld [vmem:[%s206 + $0x90] sm:$0xf]
      %v2664 = vld [vmem:[%s206 + $0x94] sm:$0xf]
      %v2665 = vld [vmem:[%s206 + $0x98] sm:$0xf]
      %v2666 = vld [vmem:[%s206 + $0x9c] sm:$0xf]
      %v2667 = vld [vmem:[%s206 + $0xa0] sm:$0x3]
      %s2668 = scalar_lea.vmem %s210, 384
      %v2669 = vld [vmem:[%s2668] sm:$0xf]
      %v2670 = vld [vmem:[%s2668 + $0x4] sm:$0xf]
      %v2671 = vld [vmem:[%s2668 + $0x8] sm:$0xf]
      %v2672 = vld [vmem:[%s2668 + $0xc] sm:$0xf]
      %v2673 = vld [vmem:[%s2668 + $0x10] sm:$0xf]
      %v2674 = vld [vmem:[%s2668 + $0x14] sm:$0xf]
      %v2675 = vld [vmem:[%s2668 + $0x18] sm:$0xf]
      %v2676 = vld [vmem:[%s2668 + $0x1c] sm:$0xf]
      %v2677 = vld [vmem:[%s2668 + $0x20] sm:$0xf]
      %v2678 = vld [vmem:[%s2668 + $0x24] sm:$0xf]
      %v2679 = vld [vmem:[%s2668 + $0x28] sm:$0xf]
      %v2680 = vld [vmem:[%s2668 + $0x2c] sm:$0xf]
      %v2681 = vld [vmem:[%s2668 + $0x30] sm:$0xf]
      %v2682 = vld [vmem:[%s2668 + $0x34] sm:$0xf]
      %v2683 = vld [vmem:[%s2668 + $0x38] sm:$0xf]
      %v2684 = vld [vmem:[%s2668 + $0x3c] sm:$0xf]
      %v2722 = vunpack.c.l.b16 %v2631
      %v2723 = vunpack.c.l.b16 %v2632
      %v2724 = vunpack.c.l.b16 %v2633
      %v2725 = vunpack.c.l.b16 %v2634
      %v2726 = vunpack.c.l.b16 %v2635
      %v2727 = vunpack.c.l.b16 %v2636
      %v2728 = vunpack.c.l.b16 %v2637
      %v2729 = vunpack.c.l.b16 %v2638
      %v2730 = vunpack.c.l.b16 %v2639
      %v2731 = vunpack.c.l.b16 %v2640
      %v2732 = vunpack.c.l.b16 %v2641
      %v2733 = vunpack.c.l.b16 %v2642
      %v2734 = vunpack.c.l.b16 %v2643
      %v2735 = vunpack.c.l.b16 %v2644
      %v2736 = vunpack.c.l.b16 %v2645
      %v2737 = vunpack.c.l.b16 %v2646
      %v2738 = vunpack.c.l.b16 %v2647
      %v2739 = vunpack.c.l.b16 %v2648
      %v2740 = vunpack.c.l.b16 %v2649
      %v2741 = vunpack.c.l.b16 %v2650
      %v2742 = vunpack.c.l.b16 %v2651
      %v2743 = vunpack.c.l.b16 %v2652
      %v2744 = vunpack.c.l.b16 %v2653
      %v2745 = vunpack.c.l.b16 %v2654
      %v2746 = vunpack.c.l.b16 %v2655
      %v2747 = vunpack.c.l.b16 %v2656
      %v2748 = vunpack.c.l.b16 %v2657
      %v2749 = vunpack.c.l.b16 %v2658
      %v2750 = vunpack.c.l.b16 %v2659
      %v2751 = vunpack.c.l.b16 %v2660
      %v2752 = vunpack.c.l.b16 %v2661
      %v2753 = vunpack.c.l.b16 %v2662
      %v2754 = vunpack.c.l.b16 %v2663
      %v2755 = vunpack.c.l.b16 %v2664
      %v2756 = vunpack.c.l.b16 %v2665
      %v2757 = vunpack.c.l.b16 %v2666
      %v2758 = vunpack.c.l.b16 %v2667
      %v2759 = vpack.c.b16 %v2723, %v2722
      %v2760 = vpack.c.b16 %v2725, %v2724
      %v2761 = vpack.c.b16 %v2727, %v2726
      %v2762 = vpack.c.b16 %v2729, %v2728
      %v2763 = vpack.c.b16 %v2731, %v2730
      %v2764 = vpack.c.b16 %v2733, %v2732
      %v2765 = vpack.c.b16 %v2735, %v2734
      %v2766 = vpack.c.b16 %v2737, %v2736
      %v2767 = vpack.c.b16 %v2739, %v2738
      %v2768 = vpack.c.b16 %v2741, %v2740
      %v2769 = vpack.c.b16 %v2743, %v2742
      %v2770 = vpack.c.b16 %v2745, %v2744
      %v2771 = vpack.c.b16 %v2747, %v2746
      %v2772 = vpack.c.b16 %v2749, %v2748
      %v2773 = vpack.c.b16 %v2751, %v2750
      %v2774 = vpack.c.b16 %v2753, %v2752
      %v2775 = vpack.c.b16 %v2755, %v2754
      %v2776 = vpack.c.b16 %v2757, %v2756
      %v2777 = vpack.c.b16 %v2758, %v2758
      %v2778 = vrot.slane %v2759, 2
      %v2779 = vrot.slane %v2760, 2
      %v2780 = vsel %vm2314, %v2778, %v2779
      %v2781 = vrot.slane %v2761, 2
      %v2782 = vsel %vm2314, %v2779, %v2781
      %v2783 = vrot.slane %v2762, 2
      %v2784 = vsel %vm2314, %v2781, %v2783
      %v2785 = vrot.slane %v2763, 2
      %v2786 = vsel %vm2314, %v2783, %v2785
      %v2787 = vrot.slane %v2764, 2
      %v2788 = vsel %vm2314, %v2785, %v2787
      %v2789 = vrot.slane %v2765, 2
      %v2790 = vsel %vm2314, %v2787, %v2789
      %v2791 = vrot.slane %v2766, 2
      %v2792 = vsel %vm2314, %v2789, %v2791
      %v2793 = vrot.slane %v2767, 2
      %v2794 = vsel %vm2314, %v2791, %v2793
      %v2795 = vrot.slane %v2768, 2
      %v2796 = vsel %vm2314, %v2793, %v2795
      %v2797 = vrot.slane %v2769, 2
      %v2798 = vsel %vm2314, %v2795, %v2797
      %v2799 = vrot.slane %v2770, 2
      %v2800 = vsel %vm2314, %v2797, %v2799
      %v2801 = vrot.slane %v2771, 2
      %v2802 = vsel %vm2314, %v2799, %v2801
      %v2803 = vrot.slane %v2772, 2
      %v2804 = vsel %vm2314, %v2801, %v2803
      %v2805 = vrot.slane %v2773, 2
      %v2806 = vsel %vm2314, %v2803, %v2805
      %v2807 = vrot.slane %v2774, 2
      %v2808 = vsel %vm2314, %v2805, %v2807
      %v2809 = vrot.slane %v2775, 2
      %v2810 = vsel %vm2314, %v2807, %v2809
      %v2811 = vrot.slane %v2776, 2
      %v2812 = vsel %vm2314, %v2809, %v2811
      %v2813 = vrot.slane %v2777, 2
      %v2814 = vsel %vm2314, %v2811, %v2813
      %v2849 = vunpack.c.l.b16 %v2669
      %v2850 = vunpack.c.l.b16 %v2670
      %v2851 = vunpack.c.l.b16 %v2671
      %v2852 = vunpack.c.l.b16 %v2672
      %v2853 = vunpack.c.l.b16 %v2673
      %v2854 = vunpack.c.l.b16 %v2674
      %v2855 = vunpack.c.l.b16 %v2675
      %v2856 = vunpack.c.l.b16 %v2676
      %v2857 = vunpack.c.l.b16 %v2677
      %v2858 = vunpack.c.l.b16 %v2678
      %v2859 = vunpack.c.l.b16 %v2679
      %v2860 = vunpack.c.l.b16 %v2680
      %v2861 = vunpack.c.l.b16 %v2681
      %v2862 = vunpack.c.l.b16 %v2682
      %v2863 = vunpack.c.l.b16 %v2683
      %v2864 = vunpack.c.l.b16 %v2684
      %v2865 = vpack.c.b16 %v2850, %v2849
      %v2866 = vpack.c.b16 %v2852, %v2851
      %v2867 = vpack.c.b16 %v2854, %v2853
      %v2868 = vpack.c.b16 %v2856, %v2855
      %v2869 = vpack.c.b16 %v2858, %v2857
      %v2870 = vpack.c.b16 %v2860, %v2859
      %v2871 = vpack.c.b16 %v2862, %v2861
      %v2872 = vpack.c.b16 %v2864, %v2863
      %2881 = vmatprep.subr.bf16.mxu0 0
      %2882 = vmatpush1.bf16.msra.mxu0 %v2865
      %2883 = vmatprep.subr.bf16.mxu0 0
      %2884 = vmatpush1.bf16.msra.mxu0 %v2866
      %2885 = vmatprep.subr.bf16.mxu0 0
      %2886 = vmatpush1.bf16.msra.mxu0 %v2867
      %2887 = vmatprep.subr.bf16.mxu0 0
      %2888 = vmatpush1.bf16.msra.mxu0 %v2868
      %2889 = vmatprep.subr.bf16.mxu0 0
      %2890 = vmatpush1.bf16.msra.mxu0 %v2869
      %2891 = vmatprep.subr.bf16.mxu0 0
      %2892 = vmatpush1.bf16.msra.mxu0 %v2870
      %2893 = vmatprep.subr.bf16.mxu0 0
      %2894 = vmatpush1.bf16.msra.mxu0 %v2871
      %2895 = vmatprep.subr.bf16.mxu0 0
      %2896 = vmatpush1.bf16.msra.mxu0 %v2872
      %2897 = vmatprep.subr.bf16.mxu0 0
      %2898 = vmatpush1.bf16.msra.mxu0 0
      %2899 = vmatprep.subr.bf16.mxu0 0
      %2900 = vmatpush1.bf16.msra.mxu0 0
      %2901 = vmatprep.subr.bf16.mxu0 0
      %2902 = vmatpush1.bf16.msra.mxu0 0
      %2903 = vmatprep.subr.bf16.mxu0 0
      %2904 = vmatpush1.bf16.msra.mxu0 0
      %2905 = vmatprep.subr.bf16.mxu0 0
      %2906 = vmatpush1.bf16.msra.mxu0 0
      %2907 = vmatprep.subr.bf16.mxu0 0
      %2908 = vmatpush1.bf16.msra.mxu0 0
      %2909 = vmatprep.subr.bf16.mxu0 0
      %2910 = vmatpush1.bf16.msra.mxu0 0
      %2911 = vmatprep.subr.bf16.mxu0 0
      %2912 = vmatpush1.bf16.msra.mxu0 0
      %2913 = vmatprep.mubr.bf16.mxu0 0
      %2914 = vmatmul.mubr.bf16.gmra.mrb[0].mxu0 %v2780
      %v2915 = vpop.f32.mrb[0].mxu0
      %v2916 = vadd.f32 0.0, %v2915
      %v2917 = vpop.f32.mrb[0].mxu0
      %v2918 = vpop.f32.mrb[0].mxu0
      %v2919 = vadd.f32 0.0, %v2918
      %v2920 = vpop.f32.mrb[0].mxu0
      %2921 = vmatprep.mubr.bf16.mxu0 0
      %2922 = vmatmul.mubr.bf16.gmra.mrb[0].mxu0 %v2782
      %v2923 = vpop.f32.mrb[0].mxu0
      %v2924 = vadd.f32 0.0, %v2923
      %v2925 = vpop.f32.mrb[0].mxu0
      %v2926 = vpop.f32.mrb[0].mxu0
      %v2927 = vadd.f32 0.0, %v2926
      %v2928 = vpop.f32.mrb[0].mxu0
      %2929 = vmatprep.mubr.bf16.mxu0 0
      %2930 = vmatmul.mubr.bf16.gmra.mrb[0].mxu0 %v2784
      %v2931 = vpop.f32.mrb[0].mxu0
      %v2932 = vadd.f32 0.0, %v2931
      %v2933 = vpop.f32.mrb[0].mxu0
      %v2934 = vpop.f32.mrb[0].mxu0
      %v2935 = vadd.f32 0.0, %v2934
      %v2936 = vpop.f32.mrb[0].mxu0
      %2937 = vmatprep.mubr.bf16.mxu0 0
      %2938 = vmatmul.mubr.bf16.gmra.mrb[0].mxu0 %v2786
      %v2939 = vpop.f32.mrb[0].mxu0
      %v2940 = vadd.f32 0.0, %v2939
      %v2941 = vpop.f32.mrb[0].mxu0
      %v2942 = vpop.f32.mrb[0].mxu0
      %v2943 = vadd.f32 0.0, %v2942
      %v2944 = vpop.f32.mrb[0].mxu0
      %2945 = vmatprep.mubr.bf16.mxu0 0
      %2946 = vmatmul.mubr.bf16.gmra.mrb[0].mxu0 %v2788
      %v2947 = vpop.f32.mrb[0].mxu0
      %v2948 = vadd.f32 0.0, %v2947
      %v2949 = vpop.f32.mrb[0].mxu0
      %v2950 = vpop.f32.mrb[0].mxu0
      %v2951 = vadd.f32 0.0, %v2950
      %v2952 = vpop.f32.mrb[0].mxu0
      %2953 = vmatprep.mubr.bf16.mxu0 0
      %2954 = vmatmul.mubr.bf16.gmra.mrb[0].mxu0 %v2790
      %v2955 = vpop.f32.mrb[0].mxu0
      %v2956 = vadd.f32 0.0, %v2955
      %v2957 = vpop.f32.mrb[0].mxu0
      %v2958 = vpop.f32.mrb[0].mxu0
      %v2959 = vadd.f32 0.0, %v2958
      %v2960 = vpop.f32.mrb[0].mxu0
      %2961 = vmatprep.mubr.bf16.mxu0 0
      %2962 = vmatmul.mubr.bf16.gmra.mrb[0].mxu0 %v2792
      %v2963 = vpop.f32.mrb[0].mxu0
      %v2964 = vadd.f32 0.0, %v2963
      %v2965 = vpop.f32.mrb[0].mxu0
      %v2966 = vpop.f32.mrb[0].mxu0
      %v2967 = vadd.f32 0.0, %v2966
      %v2968 = vpop.f32.mrb[0].mxu0
      %2969 = vmatprep.mubr.bf16.mxu0 0
      %2970 = vmatmul.mubr.bf16.gmra.mrb[0].mxu0 %v2794
      %v2971 = vpop.f32.mrb[0].mxu0
      %v2972 = vadd.f32 0.0, %v2971
      %v2973 = vpop.f32.mrb[0].mxu0
      %v2974 = vpop.f32.mrb[0].mxu0
      %v2975 = vadd.f32 0.0, %v2974
      %v2976 = vpop.f32.mrb[0].mxu0
      %2977 = vmatprep.mubr.bf16.mxu0 0
      %2978 = vmatmul.mubr.bf16.gmra.mrb[0].mxu0 %v2796
      %v2979 = vpop.f32.mrb[0].mxu0
      %v2980 = vadd.f32 0.0, %v2979
      %v2981 = vpop.f32.mrb[0].mxu0
      %v2982 = vpop.f32.mrb[0].mxu0
      %v2983 = vadd.f32 0.0, %v2982
      %v2984 = vpop.f32.mrb[0].mxu0
      %2985 = vmatprep.mubr.bf16.mxu0 0
      %2986 = vmatmul.mubr.bf16.gmra.mrb[0].mxu0 %v2798
      %v2987 = vpop.f32.mrb[0].mxu0
      %v2988 = vadd.f32 0.0, %v2987
      %v2989 = vpop.f32.mrb[0].mxu0
      %v2990 = vpop.f32.mrb[0].mxu0
      %v2991 = vadd.f32 0.0, %v2990
      %v2992 = vpop.f32.mrb[0].mxu0
      %2993 = vmatprep.mubr.bf16.mxu0 0
      %2994 = vmatmul.mubr.bf16.gmra.mrb[0].mxu0 %v2800
      %v2995 = vpop.f32.mrb[0].mxu0
      %v2996 = vadd.f32 0.0, %v2995
      %v2997 = vpop.f32.mrb[0].mxu0
      %v2998 = vpop.f32.mrb[0].mxu0
      %v2999 = vadd.f32 0.0, %v2998
      %v3000 = vpop.f32.mrb[0].mxu0
      %3001 = vmatprep.mubr.bf16.mxu0 0
      %3002 = vmatmul.mubr.bf16.gmra.mrb[0].mxu0 %v2802
      %v3003 = vpop.f32.mrb[0].mxu0
      %v3004 = vadd.f32 0.0, %v3003
      %v3005 = vpop.f32.mrb[0].mxu0
      %v3006 = vpop.f32.mrb[0].mxu0
      %v3007 = vadd.f32 0.0, %v3006
      %v3008 = vpop.f32.mrb[0].mxu0
      %3009 = vmatprep.mubr.bf16.mxu0 0
      %3010 = vmatmul.mubr.bf16.gmra.mrb[0].mxu0 %v2804
      %v3011 = vpop.f32.mrb[0].mxu0
      %v3012 = vadd.f32 0.0, %v3011
      %v3013 = vpop.f32.mrb[0].mxu0
      %v3014 = vpop.f32.mrb[0].mxu0
      %v3015 = vadd.f32 0.0, %v3014
      %v3016 = vpop.f32.mrb[0].mxu0
      %3017 = vmatprep.mubr.bf16.mxu0 0
      %3018 = vmatmul.mubr.bf16.gmra.mrb[0].mxu0 %v2806
      %v3019 = vpop.f32.mrb[0].mxu0
      %v3020 = vadd.f32 0.0, %v3019
      %v3021 = vpop.f32.mrb[0].mxu0
      %v3022 = vpop.f32.mrb[0].mxu0
      %v3023 = vadd.f32 0.0, %v3022
      %v3024 = vpop.f32.mrb[0].mxu0
      %3025 = vmatprep.mubr.bf16.mxu0 0
      %3026 = vmatmul.mubr.bf16.gmra.mrb[0].mxu0 %v2808
      %v3027 = vpop.f32.mrb[0].mxu0
      %v3028 = vadd.f32 0.0, %v3027
      %v3029 = vpop.f32.mrb[0].mxu0
      %v3030 = vpop.f32.mrb[0].mxu0
      %v3031 = vadd.f32 0.0, %v3030
      %v3032 = vpop.f32.mrb[0].mxu0
      %3033 = vmatprep.mubr.bf16.mxu0 0
      %3034 = vmatmul.mubr.bf16.gmra.mrb[0].mxu0 %v2810
      %v3035 = vpop.f32.mrb[0].mxu0
      %v3036 = vadd.f32 0.0, %v3035
      %v3037 = vpop.f32.mrb[0].mxu0
      %v3038 = vpop.f32.mrb[0].mxu0
      %v3039 = vadd.f32 0.0, %v3038
      %v3040 = vpop.f32.mrb[0].mxu0
      %3041 = vmatprep.mubr.bf16.mxu0 0
      %3042 = vmatmul.mubr.bf16.gmra.mrb[0].mxu0 %v2812
      %v3043 = vpop.f32.mrb[0].mxu0
      %v3044 = vadd.f32 0.0, %v3043
      %v3045 = vpop.f32.mrb[0].mxu0
      %v3046 = vpop.f32.mrb[0].mxu0
      %v3047 = vadd.f32 0.0, %v3046
      %v3048 = vpop.f32.mrb[0].mxu0
      %3049 = vmatprep.mubr.bf16.mxu0 0
      %3050 = vmatmul.mubr.bf16.gmra.mrb[0].mxu0 %v2814
      %v3051 = vpop.f32.mrb[0].mxu0
      %v3052 = vadd.f32 0.0, %v3051
      %v3053 = vpop.f32.mrb[0].mxu0
      %v3054 = vpop.f32.mrb[0].mxu0
      %v3055 = vadd.f32 0.0, %v3054
      %v3056 = vpop.f32.mrb[0].mxu0
      %3057 = vdwg.mxu0
      %v3058 = vadd.f32 %v2595, %v2916
      %v3059 = vadd.f32 %v2596, %v2919
      %v3060 = vadd.f32 %v2597, %v2924
      %v3061 = vadd.f32 %v2598, %v2927
      %v3062 = vadd.f32 %v2599, %v2932
      %v3063 = vadd.f32 %v2600, %v2935
      %v3064 = vadd.f32 %v2601, %v2940
      %v3065 = vadd.f32 %v2602, %v2943
      %v3066 = vadd.f32 %v2603, %v2948
      %v3067 = vadd.f32 %v2604, %v2951
      %v3068 = vadd.f32 %v2605, %v2956
      %v3069 = vadd.f32 %v2606, %v2959
      %v3070 = vadd.f32 %v2607, %v2964
      %v3071 = vadd.f32 %v2608, %v2967
      %v3072 = vadd.f32 %v2609, %v2972
      %v3073 = vadd.f32 %v2610, %v2975
      %v3074 = vadd.f32 %v2611, %v2980
      %v3075 = vadd.f32 %v2612, %v2983
      %v3076 = vadd.f32 %v2613, %v2988
      %v3077 = vadd.f32 %v2614, %v2991
      %v3078 = vadd.f32 %v2615, %v2996
      %v3079 = vadd.f32 %v2616, %v2999
      %v3080 = vadd.f32 %v2617, %v3004
      %v3081 = vadd.f32 %v2618, %v3007
      %v3082 = vadd.f32 %v2619, %v3012
      %v3083 = vadd.f32 %v2620, %v3015
      %v3084 = vadd.f32 %v2621, %v3020
      %v3085 = vadd.f32 %v2622, %v3023
      %v3086 = vadd.f32 %v2623, %v3028
      %v3087 = vadd.f32 %v2624, %v3031
      %v3088 = vadd.f32 %v2625, %v3036
      %v3089 = vadd.f32 %v2626, %v3039
      %v3090 = vadd.f32 %v2627, %v3044
      %v3091 = vadd.f32 %v2628, %v3047
      %v3092 = vadd.f32 %v2629, %v3052
      %v3093 = vadd.f32 %v2630, %v3055
      %v3094 = vld [vmem:[%s206 + $0xa0] sm:$0x7]
      %s3095 = scalar_lea.vmem %s210, 448
      %v3096 = vld [vmem:[%s3095] sm:$0xf]
      %v3097 = vld [vmem:[%s3095 + $0x4] sm:$0xf]
      %v3098 = vld [vmem:[%s3095 + $0x8] sm:$0xf]
      %v3099 = vld [vmem:[%s3095 + $0xc] sm:$0xf]
      %v3100 = vld [vmem:[%s3095 + $0x10] sm:$0xf]
      %v3101 = vld [vmem:[%s3095 + $0x14] sm:$0xf]
      %v3102 = vld [vmem:[%s3095 + $0x18] sm:$0xf]
      %v3103 = vld [vmem:[%s3095 + $0x1c] sm:$0xf]
      %v3104 = vld [vmem:[%s3095 + $0x20] sm:$0xf]
      %v3105 = vld [vmem:[%s3095 + $0x24] sm:$0xf]
      %v3106 = vld [vmem:[%s3095 + $0x28] sm:$0xf]
      %v3107 = vld [vmem:[%s3095 + $0x2c] sm:$0xf]
      %v3108 = vld [vmem:[%s3095 + $0x30] sm:$0xf]
      %v3109 = vld [vmem:[%s3095 + $0x34] sm:$0xf]
      %v3110 = vld [vmem:[%s3095 + $0x38] sm:$0xf]
      %v3111 = vld [vmem:[%s3095 + $0x3c] sm:$0xf]
      %v3113 = vunpack.c.l.b16 %v3094
      %v3114 = vpack.c.b16 %v3113, %v3113
      %vm3115 = vsmask.f32 5376
      %v3117 = vshrl.u32 %v2759, 16
      %v3119 = vrot.slane %v3117, 2
      %v3120 = vshll.u32 %v2759, 16
      %v3122 = vrot.slane %v3120, 3
      %v3123 = vor.u32 %v3119, %v3122
      %v3125 = vshrl.u32 %v2760, 16
      %v3127 = vrot.slane %v3125, 2
      %v3128 = vshll.u32 %v2760, 16
      %v3130 = vrot.slane %v3128, 3
      %v3131 = vor.u32 %v3127, %v3130
      %v3132 = vsel %vm3115, %v3123, %v3131
      %v3134 = vshrl.u32 %v2761, 16
      %v3136 = vrot.slane %v3134, 2
      %v3137 = vshll.u32 %v2761, 16
      %v3139 = vrot.slane %v3137, 3
      %v3140 = vor.u32 %v3136, %v3139
      %v3141 = vsel %vm3115, %v3131, %v3140
      %v3143 = vshrl.u32 %v2762, 16
      %v3145 = vrot.slane %v3143, 2
      %v3146 = vshll.u32 %v2762, 16
      %v3148 = vrot.slane %v3146, 3
      %v3149 = vor.u32 %v3145, %v3148
      %v3150 = vsel %vm3115, %v3140, %v3149
      %v3152 = vshrl.u32 %v2763, 16
      %v3154 = vrot.slane %v3152, 2
      %v3155 = vshll.u32 %v2763, 16
      %v3157 = vrot.slane %v3155, 3
      %v3158 = vor.u32 %v3154, %v3157
      %v3159 = vsel %vm3115, %v3149, %v3158
      %v3161 = vshrl.u32 %v2764, 16
      %v3163 = vrot.slane %v3161, 2
      %v3164 = vshll.u32 %v2764, 16
      %v3166 = vrot.slane %v3164, 3
      %v3167 = vor.u32 %v3163, %v3166
      %v3168 = vsel %vm3115, %v3158, %v3167
      %v3170 = vshrl.u32 %v2765, 16
      %v3172 = vrot.slane %v3170, 2
      %v3173 = vshll.u32 %v2765, 16
      %v3175 = vrot.slane %v3173, 3
      %v3176 = vor.u32 %v3172, %v3175
      %v3177 = vsel %vm3115, %v3167, %v3176
      %v3179 = vshrl.u32 %v2766, 16
      %v3181 = vrot.slane %v3179, 2
      %v3182 = vshll.u32 %v2766, 16
      %v3184 = vrot.slane %v3182, 3
      %v3185 = vor.u32 %v3181, %v3184
      %v3186 = vsel %vm3115, %v3176, %v3185
      %v3188 = vshrl.u32 %v2767, 16
      %v3190 = vrot.slane %v3188, 2
      %v3191 = vshll.u32 %v2767, 16
      %v3193 = vrot.slane %v3191, 3
      %v3194 = vor.u32 %v3190, %v3193
      %v3195 = vsel %vm3115, %v3185, %v3194
      %v3197 = vshrl.u32 %v2768, 16
      %v3199 = vrot.slane %v3197, 2
      %v3200 = vshll.u32 %v2768, 16
      %v3202 = vrot.slane %v3200, 3
      %v3203 = vor.u32 %v3199, %v3202
      %v3204 = vsel %vm3115, %v3194, %v3203
      %v3206 = vshrl.u32 %v2769, 16
      %v3208 = vrot.slane %v3206, 2
      %v3209 = vshll.u32 %v2769, 16
      %v3211 = vrot.slane %v3209, 3
      %v3212 = vor.u32 %v3208, %v3211
      %v3213 = vsel %vm3115, %v3203, %v3212
      %v3215 = vshrl.u32 %v2770, 16
      %v3217 = vrot.slane %v3215, 2
      %v3218 = vshll.u32 %v2770, 16
      %v3220 = vrot.slane %v3218, 3
      %v3221 = vor.u32 %v3217, %v3220
      %v3222 = vsel %vm3115, %v3212, %v3221
      %v3224 = vshrl.u32 %v2771, 16
      %v3226 = vrot.slane %v3224, 2
      %v3227 = vshll.u32 %v2771, 16
      %v3229 = vrot.slane %v3227, 3
      %v3230 = vor.u32 %v3226, %v3229
      %v3231 = vsel %vm3115, %v3221, %v3230
      %v3233 = vshrl.u32 %v2772, 16
      %v3235 = vrot.slane %v3233, 2
      %v3236 = vshll.u32 %v2772, 16
      %v3238 = vrot.slane %v3236, 3
      %v3239 = vor.u32 %v3235, %v3238
      %v3240 = vsel %vm3115, %v3230, %v3239
      %v3242 = vshrl.u32 %v2773, 16
      %v3244 = vrot.slane %v3242, 2
      %v3245 = vshll.u32 %v2773, 16
      %v3247 = vrot.slane %v3245, 3
      %v3248 = vor.u32 %v3244, %v3247
      %v3249 = vsel %vm3115, %v3239, %v3248
      %v3251 = vshrl.u32 %v2774, 16
      %v3253 = vrot.slane %v3251, 2
      %v3254 = vshll.u32 %v2774, 16
      %v3256 = vrot.slane %v3254, 3
      %v3257 = vor.u32 %v3253, %v3256
      %v3258 = vsel %vm3115, %v3248, %v3257
      %v3260 = vshrl.u32 %v2775, 16
      %v3262 = vrot.slane %v3260, 2
      %v3263 = vshll.u32 %v2775, 16
      %v3265 = vrot.slane %v3263, 3
      %v3266 = vor.u32 %v3262, %v3265
      %v3267 = vsel %vm3115, %v3257, %v3266
      %v3269 = vshrl.u32 %v2776, 16
      %v3271 = vrot.slane %v3269, 2
      %v3272 = vshll.u32 %v2776, 16
      %v3274 = vrot.slane %v3272, 3
      %v3275 = vor.u32 %v3271, %v3274
      %v3276 = vsel %vm3115, %v3266, %v3275
      %v3278 = vshrl.u32 %v3114, 16
      %v3280 = vrot.slane %v3278, 2
      %v3281 = vshll.u32 %v3114, 16
      %v3283 = vrot.slane %v3281, 3
      %v3284 = vor.u32 %v3280, %v3283
      %v3285 = vsel %vm3115, %v3275, %v3284
      %v3320 = vunpack.c.l.b16 %v3096
      %v3321 = vunpack.c.l.b16 %v3097
      %v3322 = vunpack.c.l.b16 %v3098
      %v3323 = vunpack.c.l.b16 %v3099
      %v3324 = vunpack.c.l.b16 %v3100
      %v3325 = vunpack.c.l.b16 %v3101
      %v3326 = vunpack.c.l.b16 %v3102
      %v3327 = vunpack.c.l.b16 %v3103
      %v3328 = vunpack.c.l.b16 %v3104
      %v3329 = vunpack.c.l.b16 %v3105
      %v3330 = vunpack.c.l.b16 %v3106
      %v3331 = vunpack.c.l.b16 %v3107
      %v3332 = vunpack.c.l.b16 %v3108
      %v3333 = vunpack.c.l.b16 %v3109
      %v3334 = vunpack.c.l.b16 %v3110
      %v3335 = vunpack.c.l.b16 %v3111
      %v3336 = vpack.c.b16 %v3321, %v3320
      %v3337 = vpack.c.b16 %v3323, %v3322
      %v3338 = vpack.c.b16 %v3325, %v3324
      %v3339 = vpack.c.b16 %v3327, %v3326
      %v3340 = vpack.c.b16 %v3329, %v3328
      %v3341 = vpack.c.b16 %v3331, %v3330
      %v3342 = vpack.c.b16 %v3333, %v3332
      %v3343 = vpack.c.b16 %v3335, %v3334
      %3352 = vmatprep.subr.bf16.mxu0 0
      %3353 = vmatpush1.bf16.msra.mxu0 %v3336
      %3354 = vmatprep.subr.bf16.mxu0 0
      %3355 = vmatpush1.bf16.msra.mxu0 %v3337
      %3356 = vmatprep.subr.bf16.mxu0 0
      %3357 = vmatpush1.bf16.msra.mxu0 %v3338
      %3358 = vmatprep.subr.bf16.mxu0 0
      %3359 = vmatpush1.bf16.msra.mxu0 %v3339
      %3360 = vmatprep.subr.bf16.mxu0 0
      %3361 = vmatpush1.bf16.msra.mxu0 %v3340
      %3362 = vmatprep.subr.bf16.mxu0 0
      %3363 = vmatpush1.bf16.msra.mxu0 %v3341
      %3364 = vmatprep.subr.bf16.mxu0 0
      %3365 = vmatpush1.bf16.msra.mxu0 %v3342
      %3366 = vmatprep.subr.bf16.mxu0 0
      %3367 = vmatpush1.bf16.msra.mxu0 %v3343
      %3368 = vmatprep.subr.bf16.mxu0 0
      %3369 = vmatpush1.bf16.msra.mxu0 0
      %3370 = vmatprep.subr.bf16.mxu0 0
      %3371 = vmatpush1.bf16.msra.mxu0 0
      %3372 = vmatprep.subr.bf16.mxu0 0
      %3373 = vmatpush1.bf16.msra.mxu0 0
      %3374 = vmatprep.subr.bf16.mxu0 0
      %3375 = vmatpush1.bf16.msra.mxu0 0
      %3376 = vmatprep.subr.bf16.mxu0 0
      %3377 = vmatpush1.bf16.msra.mxu0 0
      %3378 = vmatprep.subr.bf16.mxu0 0
      %3379 = vmatpush1.bf16.msra.mxu0 0
      %3380 = vmatprep.subr.bf16.mxu0 0
      %3381 = vmatpush1.bf16.msra.mxu0 0
      %3382 = vmatprep.subr.bf16.mxu0 0
      %3383 = vmatpush1.bf16.msra.mxu0 0
      %3384 = vmatprep.mubr.bf16.mxu0 0
      %3385 = vmatmul.mubr.bf16.gmra.mrb[0].mxu0 %v3132
      %v3386 = vpop.f32.mrb[0].mxu0
      %v3387 = vadd.f32 0.0, %v3386
      %v3388 = vpop.f32.mrb[0].mxu0
      %v3389 = vpop.f32.mrb[0].mxu0
      %v3390 = vadd.f32 0.0, %v3389
      %v3391 = vpop.f32.mrb[0].mxu0
      %3392 = vmatprep.mubr.bf16.mxu0 0
      %3393 = vmatmul.mubr.bf16.gmra.mrb[0].mxu0 %v3141
      %v3394 = vpop.f32.mrb[0].mxu0
      %v3395 = vadd.f32 0.0, %v3394
      %v3396 = vpop.f32.mrb[0].mxu0
      %v3397 = vpop.f32.mrb[0].mxu0
      %v3398 = vadd.f32 0.0, %v3397
      %v3399 = vpop.f32.mrb[0].mxu0
      %3400 = vmatprep.mubr.bf16.mxu0 0
      %3401 = vmatmul.mubr.bf16.gmra.mrb[0].mxu0 %v3150
      %v3402 = vpop.f32.mrb[0].mxu0
      %v3403 = vadd.f32 0.0, %v3402
      %v3404 = vpop.f32.mrb[0].mxu0
      %v3405 = vpop.f32.mrb[0].mxu0
      %v3406 = vadd.f32 0.0, %v3405
      %v3407 = vpop.f32.mrb[0].mxu0
      %3408 = vmatprep.mubr.bf16.mxu0 0
      %3409 = vmatmul.mubr.bf16.gmra.mrb[0].mxu0 %v3159
      %v3410 = vpop.f32.mrb[0].mxu0
      %v3411 = vadd.f32 0.0, %v3410
      %v3412 = vpop.f32.mrb[0].mxu0
      %v3413 = vpop.f32.mrb[0].mxu0
      %v3414 = vadd.f32 0.0, %v3413
      %v3415 = vpop.f32.mrb[0].mxu0
      %3416 = vmatprep.mubr.bf16.mxu0 0
      %3417 = vmatmul.mubr.bf16.gmra.mrb[0].mxu0 %v3168
      %v3418 = vpop.f32.mrb[0].mxu0
      %v3419 = vadd.f32 0.0, %v3418
      %v3420 = vpop.f32.mrb[0].mxu0
      %v3421 = vpop.f32.mrb[0].mxu0
      %v3422 = vadd.f32 0.0, %v3421
      %v3423 = vpop.f32.mrb[0].mxu0
      %3424 = vmatprep.mubr.bf16.mxu0 0
      %3425 = vmatmul.mubr.bf16.gmra.mrb[0].mxu0 %v3177
      %v3426 = vpop.f32.mrb[0].mxu0
      %v3427 = vadd.f32 0.0, %v3426
      %v3428 = vpop.f32.mrb[0].mxu0
      %v3429 = vpop.f32.mrb[0].mxu0
      %v3430 = vadd.f32 0.0, %v3429
      %v3431 = vpop.f32.mrb[0].mxu0
      %3432 = vmatprep.mubr.bf16.mxu0 0
      %3433 = vmatmul.mubr.bf16.gmra.mrb[0].mxu0 %v3186
      %v3434 = vpop.f32.mrb[0].mxu0
      %v3435 = vadd.f32 0.0, %v3434
      %v3436 = vpop.f32.mrb[0].mxu0
      %v3437 = vpop.f32.mrb[0].mxu0
      %v3438 = vadd.f32 0.0, %v3437
      %v3439 = vpop.f32.mrb[0].mxu0
      %3440 = vmatprep.mubr.bf16.mxu0 0
      %3441 = vmatmul.mubr.bf16.gmra.mrb[0].mxu0 %v3195
      %v3442 = vpop.f32.mrb[0].mxu0
      %v3443 = vadd.f32 0.0, %v3442
      %v3444 = vpop.f32.mrb[0].mxu0
      %v3445 = vpop.f32.mrb[0].mxu0
      %v3446 = vadd.f32 0.0, %v3445
      %v3447 = vpop.f32.mrb[0].mxu0
      %3448 = vmatprep.mubr.bf16.mxu0 0
      %3449 = vmatmul.mubr.bf16.gmra.mrb[0].mxu0 %v3204
      %v3450 = vpop.f32.mrb[0].mxu0
      %v3451 = vadd.f32 0.0, %v3450
      %v3452 = vpop.f32.mrb[0].mxu0
      %v3453 = vpop.f32.mrb[0].mxu0
      %v3454 = vadd.f32 0.0, %v3453
      %v3455 = vpop.f32.mrb[0].mxu0
      %3456 = vmatprep.mubr.bf16.mxu0 0
      %3457 = vmatmul.mubr.bf16.gmra.mrb[0].mxu0 %v3213
      %v3458 = vpop.f32.mrb[0].mxu0
      %v3459 = vadd.f32 0.0, %v3458
      %v3460 = vpop.f32.mrb[0].mxu0
      %v3461 = vpop.f32.mrb[0].mxu0
      %v3462 = vadd.f32 0.0, %v3461
      %v3463 = vpop.f32.mrb[0].mxu0
      %3464 = vmatprep.mubr.bf16.mxu0 0
      %3465 = vmatmul.mubr.bf16.gmra.mrb[0].mxu0 %v3222
      %v3466 = vpop.f32.mrb[0].mxu0
      %v3467 = vadd.f32 0.0, %v3466
      %v3468 = vpop.f32.mrb[0].mxu0
      %v3469 = vpop.f32.mrb[0].mxu0
      %v3470 = vadd.f32 0.0, %v3469
      %v3471 = vpop.f32.mrb[0].mxu0
      %3472 = vmatprep.mubr.bf16.mxu0 0
      %3473 = vmatmul.mubr.bf16.gmra.mrb[0].mxu0 %v3231
      %v3474 = vpop.f32.mrb[0].mxu0
      %v3475 = vadd.f32 0.0, %v3474
      %v3476 = vpop.f32.mrb[0].mxu0
      %v3477 = vpop.f32.mrb[0].mxu0
      %v3478 = vadd.f32 0.0, %v3477
      %v3479 = vpop.f32.mrb[0].mxu0
      %3480 = vmatprep.mubr.bf16.mxu0 0
      %3481 = vmatmul.mubr.bf16.gmra.mrb[0].mxu0 %v3240
      %v3482 = vpop.f32.mrb[0].mxu0
      %v3483 = vadd.f32 0.0, %v3482
      %v3484 = vpop.f32.mrb[0].mxu0
      %v3485 = vpop.f32.mrb[0].mxu0
      %v3486 = vadd.f32 0.0, %v3485
      %v3487 = vpop.f32.mrb[0].mxu0
      %3488 = vmatprep.mubr.bf16.mxu0 0
      %3489 = vmatmul.mubr.bf16.gmra.mrb[0].mxu0 %v3249
      %v3490 = vpop.f32.mrb[0].mxu0
      %v3491 = vadd.f32 0.0, %v3490
      %v3492 = vpop.f32.mrb[0].mxu0
      %v3493 = vpop.f32.mrb[0].mxu0
      %v3494 = vadd.f32 0.0, %v3493
      %v3495 = vpop.f32.mrb[0].mxu0
      %3496 = vmatprep.mubr.bf16.mxu0 0
      %3497 = vmatmul.mubr.bf16.gmra.mrb[0].mxu0 %v3258
      %v3498 = vpop.f32.mrb[0].mxu0
      %v3499 = vadd.f32 0.0, %v3498
      %v3500 = vpop.f32.mrb[0].mxu0
      %v3501 = vpop.f32.mrb[0].mxu0
      %v3502 = vadd.f32 0.0, %v3501
      %v3503 = vpop.f32.mrb[0].mxu0
      %3504 = vmatprep.mubr.bf16.mxu0 0
      %3505 = vmatmul.mubr.bf16.gmra.mrb[0].mxu0 %v3267
      %v3506 = vpop.f32.mrb[0].mxu0
      %v3507 = vadd.f32 0.0, %v3506
      %v3508 = vpop.f32.mrb[0].mxu0
      %v3509 = vpop.f32.mrb[0].mxu0
      %v3510 = vadd.f32 0.0, %v3509
      %v3511 = vpop.f32.mrb[0].mxu0
      %3512 = vmatprep.mubr.bf16.mxu0 0
      %3513 = vmatmul.mubr.bf16.gmra.mrb[0].mxu0 %v3276
      %v3514 = vpop.f32.mrb[0].mxu0
      %v3515 = vadd.f32 0.0, %v3514
      %v3516 = vpop.f32.mrb[0].mxu0
      %v3517 = vpop.f32.mrb[0].mxu0
      %v3518 = vadd.f32 0.0, %v3517
      %v3519 = vpop.f32.mrb[0].mxu0
      %3520 = vmatprep.mubr.bf16.mxu0 0
      %3521 = vmatmul.mubr.bf16.gmra.mrb[0].mxu0 %v3285
      %v3522 = vpop.f32.mrb[0].mxu0
      %v3523 = vadd.f32 0.0, %v3522
      %v3524 = vpop.f32.mrb[0].mxu0
      %v3525 = vpop.f32.mrb[0].mxu0
      %v3526 = vadd.f32 0.0, %v3525
      %v3527 = vpop.f32.mrb[0].mxu0
      %3528 = vdwg.mxu0
      %v3529 = vadd.f32 %v3058, %v3387
      %v3530 = vadd.f32 %v3059, %v3390
      %v3531 = vadd.f32 %v3060, %v3395
      %v3532 = vadd.f32 %v3061, %v3398
      %v3533 = vadd.f32 %v3062, %v3403
      %v3534 = vadd.f32 %v3063, %v3406
      %v3535 = vadd.f32 %v3064, %v3411
      %v3536 = vadd.f32 %v3065, %v3414
      %v3537 = vadd.f32 %v3066, %v3419
      %v3538 = vadd.f32 %v3067, %v3422
      %v3539 = vadd.f32 %v3068, %v3427
      %v3540 = vadd.f32 %v3069, %v3430
      %v3541 = vadd.f32 %v3070, %v3435
      %v3542 = vadd.f32 %v3071, %v3438
      %v3543 = vadd.f32 %v3072, %v3443
      %v3544 = vadd.f32 %v3073, %v3446
      %v3545 = vadd.f32 %v3074, %v3451
      %v3546 = vadd.f32 %v3075, %v3454
      %v3547 = vadd.f32 %v3076, %v3459
      %v3548 = vadd.f32 %v3077, %v3462
      %v3549 = vadd.f32 %v3078, %v3467
      %v3550 = vadd.f32 %v3079, %v3470
      %v3551 = vadd.f32 %v3080, %v3475
      %v3552 = vadd.f32 %v3081, %v3478
      %v3553 = vadd.f32 %v3082, %v3483
      %v3554 = vadd.f32 %v3083, %v3486
      %v3555 = vadd.f32 %v3084, %v3491
      %v3556 = vadd.f32 %v3085, %v3494
      %v3557 = vadd.f32 %v3086, %v3499
      %v3558 = vadd.f32 %v3087, %v3502
      %v3559 = vadd.f32 %v3088, %v3507
      %v3560 = vadd.f32 %v3089, %v3510
      %v3561 = vadd.f32 %v3090, %v3515
      %v3562 = vadd.f32 %v3091, %v3518
      %v3563 = vadd.f32 %v3092, %v3523
      %v3564 = vadd.f32 %v3093, %v3526
      %v3565 = vld [vmem:[%s206 + $0x10] sm:$0x8]
      %s3566 = scalar_lea.vmem %s210, 512
      %v3567 = vld [vmem:[%s3566] sm:$0xf]
      %v3568 = vld [vmem:[%s3566 + $0x4] sm:$0xf]
      %v3569 = vld [vmem:[%s3566 + $0x8] sm:$0xf]
      %v3570 = vld [vmem:[%s3566 + $0xc] sm:$0xf]
      %v3571 = vld [vmem:[%s3566 + $0x10] sm:$0xf]
      %v3572 = vld [vmem:[%s3566 + $0x14] sm:$0xf]
      %v3573 = vld [vmem:[%s3566 + $0x18] sm:$0xf]
      %v3574 = vld [vmem:[%s3566 + $0x1c] sm:$0xf]
      %v3575 = vld [vmem:[%s3566 + $0x20] sm:$0xf]
      %v3576 = vld [vmem:[%s3566 + $0x24] sm:$0xf]
      %v3577 = vld [vmem:[%s3566 + $0x28] sm:$0xf]
      %v3578 = vld [vmem:[%s3566 + $0x2c] sm:$0xf]
      %v3579 = vld [vmem:[%s3566 + $0x30] sm:$0xf]
      %v3580 = vld [vmem:[%s3566 + $0x34] sm:$0xf]
      %v3581 = vld [vmem:[%s3566 + $0x38] sm:$0xf]
      %v3582 = vld [vmem:[%s3566 + $0x3c] sm:$0xf]
      %v3584 = vunpack.c.l.b16 %v3565
      %v3585 = vpack.c.b16 %v2723, %v3584
      %vm3586 = vcmask 1044480
      %v3587 = vrot.slane %v3585, 3
      %v3588 = vrot.slane %v2760, 3
      %v3589 = vsel %vm3586, %v3587, %v3588
      %v3590 = vrot.slane %v2761, 3
      %v3591 = vsel %vm3586, %v3588, %v3590
      %v3592 = vrot.slane %v2762, 3
      %v3593 = vsel %vm3586, %v3590, %v3592
      %v3594 = vrot.slane %v2763, 3
      %v3595 = vsel %vm3586, %v3592, %v3594
      %v3596 = vrot.slane %v2764, 3
      %v3597 = vsel %vm3586, %v3594, %v3596
      %v3598 = vrot.slane %v2765, 3
      %v3599 = vsel %vm3586, %v3596, %v3598
      %v3600 = vrot.slane %v2766, 3
      %v3601 = vsel %vm3586, %v3598, %v3600
      %v3602 = vrot.slane %v2767, 3
      %v3603 = vsel %vm3586, %v3600, %v3602
      %v3604 = vrot.slane %v2768, 3
      %v3605 = vsel %vm3586, %v3602, %v3604
      %v3606 = vrot.slane %v2769, 3
      %v3607 = vsel %vm3586, %v3604, %v3606
      %v3608 = vrot.slane %v2770, 3
      %v3609 = vsel %vm3586, %v3606, %v3608
      %v3610 = vrot.slane %v2771, 3
      %v3611 = vsel %vm3586, %v3608, %v3610
      %v3612 = vrot.slane %v2772, 3
      %v3613 = vsel %vm3586, %v3610, %v3612
      %v3614 = vrot.slane %v2773, 3
      %v3615 = vsel %vm3586, %v3612, %v3614
      %v3616 = vrot.slane %v2774, 3
      %v3617 = vsel %vm3586, %v3614, %v3616
      %v3618 = vrot.slane %v2775, 3
      %v3619 = vsel %vm3586, %v3616, %v3618
      %v3620 = vrot.slane %v2776, 3
      %v3621 = vsel %vm3586, %v3618, %v3620
      %v3622 = vrot.slane %v3114, 3
      %v3623 = vsel %vm3586, %v3620, %v3622
      %v3658 = vunpack.c.l.b16 %v3567
      %v3659 = vunpack.c.l.b16 %v3568
      %v3660 = vunpack.c.l.b16 %v3569
      %v3661 = vunpack.c.l.b16 %v3570
      %v3662 = vunpack.c.l.b16 %v3571
      %v3663 = vunpack.c.l.b16 %v3572
      %v3664 = vunpack.c.l.b16 %v3573
      %v3665 = vunpack.c.l.b16 %v3574
      %v3666 = vunpack.c.l.b16 %v3575
      %v3667 = vunpack.c.l.b16 %v3576
      %v3668 = vunpack.c.l.b16 %v3577
      %v3669 = vunpack.c.l.b16 %v3578
      %v3670 = vunpack.c.l.b16 %v3579
      %v3671 = vunpack.c.l.b16 %v3580
      %v3672 = vunpack.c.l.b16 %v3581
      %v3673 = vunpack.c.l.b16 %v3582
      %v3674 = vpack.c.b16 %v3659, %v3658
      %v3675 = vpack.c.b16 %v3661, %v3660
      %v3676 = vpack.c.b16 %v3663, %v3662
      %v3677 = vpack.c.b16 %v3665, %v3664
      %v3678 = vpack.c.b16 %v3667, %v3666
      %v3679 = vpack.c.b16 %v3669, %v3668
      %v3680 = vpack.c.b16 %v3671, %v3670
      %v3681 = vpack.c.b16 %v3673, %v3672
      %3690 = vmatprep.subr.bf16.mxu0 0
      %3691 = vmatpush1.bf16.msra.mxu0 %v3674
      %3692 = vmatprep.subr.bf16.mxu0 0
      %3693 = vmatpush1.bf16.msra.mxu0 %v3675
      %3694 = vmatprep.subr.bf16.mxu0 0
      %3695 = vmatpush1.bf16.msra.mxu0 %v3676
      %3696 = vmatprep.subr.bf16.mxu0 0
      %3697 = vmatpush1.bf16.msra.mxu0 %v3677
      %3698 = vmatprep.subr.bf16.mxu0 0
      %3699 = vmatpush1.bf16.msra.mxu0 %v3678
      %3700 = vmatprep.subr.bf16.mxu0 0
      %3701 = vmatpush1.bf16.msra.mxu0 %v3679
      %3702 = vmatprep.subr.bf16.mxu0 0
      %3703 = vmatpush1.bf16.msra.mxu0 %v3680
      %3704 = vmatprep.subr.bf16.mxu0 0
      %3705 = vmatpush1.bf16.msra.mxu0 %v3681
      %3706 = vmatprep.subr.bf16.mxu0 0
      %3707 = vmatpush1.bf16.msra.mxu0 0
      %3708 = vmatprep.subr.bf16.mxu0 0
      %3709 = vmatpush1.bf16.msra.mxu0 0
      %3710 = vmatprep.subr.bf16.mxu0 0
      %3711 = vmatpush1.bf16.msra.mxu0 0
      %3712 = vmatprep.subr.bf16.mxu0 0
      %3713 = vmatpush1.bf16.msra.mxu0 0
      %3714 = vmatprep.subr.bf16.mxu0 0
      %3715 = vmatpush1.bf16.msra.mxu0 0
      %3716 = vmatprep.subr.bf16.mxu0 0
      %3717 = vmatpush1.bf16.msra.mxu0 0
      %3718 = vmatprep.subr.bf16.mxu0 0
      %3719 = vmatpush1.bf16.msra.mxu0 0
      %3720 = vmatprep.subr.bf16.mxu0 0
      %3721 = vmatpush1.bf16.msra.mxu0 0
      %3722 = vmatprep.mubr.bf16.mxu0 0
      %3723 = vmatmul.mubr.bf16.gmra.mrb[0].mxu0 %v3589
      %v3724 = vpop.f32.mrb[0].mxu0
      %v3725 = vadd.f32 0.0, %v3724
      %v3726 = vpop.f32.mrb[0].mxu0
      %v3727 = vpop.f32.mrb[0].mxu0
      %v3728 = vadd.f32 0.0, %v3727
      %v3729 = vpop.f32.mrb[0].mxu0
      %3730 = vmatprep.mubr.bf16.mxu0 0
      %3731 = vmatmul.mubr.bf16.gmra.mrb[0].mxu0 %v3591
      %v3732 = vpop.f32.mrb[0].mxu0
      %v3733 = vadd.f32 0.0, %v3732
      %v3734 = vpop.f32.mrb[0].mxu0
      %v3735 = vpop.f32.mrb[0].mxu0
      %v3736 = vadd.f32 0.0, %v3735
      %v3737 = vpop.f32.mrb[0].mxu0
      %3738 = vmatprep.mubr.bf16.mxu0 0
      %3739 = vmatmul.mubr.bf16.gmra.mrb[0].mxu0 %v3593
      %v3740 = vpop.f32.mrb[0].mxu0
      %v3741 = vadd.f32 0.0, %v3740
      %v3742 = vpop.f32.mrb[0].mxu0
      %v3743 = vpop.f32.mrb[0].mxu0
      %v3744 = vadd.f32 0.0, %v3743
      %v3745 = vpop.f32.mrb[0].mxu0
      %3746 = vmatprep.mubr.bf16.mxu0 0
      %3747 = vmatmul.mubr.bf16.gmra.mrb[0].mxu0 %v3595
      %v3748 = vpop.f32.mrb[0].mxu0
      %v3749 = vadd.f32 0.0, %v3748
      %v3750 = vpop.f32.mrb[0].mxu0
      %v3751 = vpop.f32.mrb[0].mxu0
      %v3752 = vadd.f32 0.0, %v3751
      %v3753 = vpop.f32.mrb[0].mxu0
      %3754 = vmatprep.mubr.bf16.mxu0 0
      %3755 = vmatmul.mubr.bf16.gmra.mrb[0].mxu0 %v3597
      %v3756 = vpop.f32.mrb[0].mxu0
      %v3757 = vadd.f32 0.0, %v3756
      %v3758 = vpop.f32.mrb[0].mxu0
      %v3759 = vpop.f32.mrb[0].mxu0
      %v3760 = vadd.f32 0.0, %v3759
      %v3761 = vpop.f32.mrb[0].mxu0
      %3762 = vmatprep.mubr.bf16.mxu0 0
      %3763 = vmatmul.mubr.bf16.gmra.mrb[0].mxu0 %v3599
      %v3764 = vpop.f32.mrb[0].mxu0
      %v3765 = vadd.f32 0.0, %v3764
      %v3766 = vpop.f32.mrb[0].mxu0
      %v3767 = vpop.f32.mrb[0].mxu0
      %v3768 = vadd.f32 0.0, %v3767
      %v3769 = vpop.f32.mrb[0].mxu0
      %3770 = vmatprep.mubr.bf16.mxu0 0
      %3771 = vmatmul.mubr.bf16.gmra.mrb[0].mxu0 %v3601
      %v3772 = vpop.f32.mrb[0].mxu0
      %v3773 = vadd.f32 0.0, %v3772
      %v3774 = vpop.f32.mrb[0].mxu0
      %v3775 = vpop.f32.mrb[0].mxu0
      %v3776 = vadd.f32 0.0, %v3775
      %v3777 = vpop.f32.mrb[0].mxu0
      %3778 = vmatprep.mubr.bf16.mxu0 0
      %3779 = vmatmul.mubr.bf16.gmra.mrb[0].mxu0 %v3603
      %v3780 = vpop.f32.mrb[0].mxu0
      %v3781 = vadd.f32 0.0, %v3780
      %v3782 = vpop.f32.mrb[0].mxu0
      %v3783 = vpop.f32.mrb[0].mxu0
      %v3784 = vadd.f32 0.0, %v3783
      %v3785 = vpop.f32.mrb[0].mxu0
      %3786 = vmatprep.mubr.bf16.mxu0 0
      %3787 = vmatmul.mubr.bf16.gmra.mrb[0].mxu0 %v3605
      %v3788 = vpop.f32.mrb[0].mxu0
      %v3789 = vadd.f32 0.0, %v3788
      %v3790 = vpop.f32.mrb[0].mxu0
      %v3791 = vpop.f32.mrb[0].mxu0
      %v3792 = vadd.f32 0.0, %v3791
      %v3793 = vpop.f32.mrb[0].mxu0
      %3794 = vmatprep.mubr.bf16.mxu0 0
      %3795 = vmatmul.mubr.bf16.gmra.mrb[0].mxu0 %v3607
      %v3796 = vpop.f32.mrb[0].mxu0
      %v3797 = vadd.f32 0.0, %v3796
      %v3798 = vpop.f32.mrb[0].mxu0
      %v3799 = vpop.f32.mrb[0].mxu0
      %v3800 = vadd.f32 0.0, %v3799
      %v3801 = vpop.f32.mrb[0].mxu0
      %3802 = vmatprep.mubr.bf16.mxu0 0
      %3803 = vmatmul.mubr.bf16.gmra.mrb[0].mxu0 %v3609
      %v3804 = vpop.f32.mrb[0].mxu0
      %v3805 = vadd.f32 0.0, %v3804
      %v3806 = vpop.f32.mrb[0].mxu0
      %v3807 = vpop.f32.mrb[0].mxu0
      %v3808 = vadd.f32 0.0, %v3807
      %v3809 = vpop.f32.mrb[0].mxu0
      %3810 = vmatprep.mubr.bf16.mxu0 0
      %3811 = vmatmul.mubr.bf16.gmra.mrb[0].mxu0 %v3611
      %v3812 = vpop.f32.mrb[0].mxu0
      %v3813 = vadd.f32 0.0, %v3812
      %v3814 = vpop.f32.mrb[0].mxu0
      %v3815 = vpop.f32.mrb[0].mxu0
      %v3816 = vadd.f32 0.0, %v3815
      %v3817 = vpop.f32.mrb[0].mxu0
      %3818 = vmatprep.mubr.bf16.mxu0 0
      %3819 = vmatmul.mubr.bf16.gmra.mrb[0].mxu0 %v3613
      %v3820 = vpop.f32.mrb[0].mxu0
      %v3821 = vadd.f32 0.0, %v3820
      %v3822 = vpop.f32.mrb[0].mxu0
      %v3823 = vpop.f32.mrb[0].mxu0
      %v3824 = vadd.f32 0.0, %v3823
      %v3825 = vpop.f32.mrb[0].mxu0
      %3826 = vmatprep.mubr.bf16.mxu0 0
      %3827 = vmatmul.mubr.bf16.gmra.mrb[0].mxu0 %v3615
      %v3828 = vpop.f32.mrb[0].mxu0
      %v3829 = vadd.f32 0.0, %v3828
      %v3830 = vpop.f32.mrb[0].mxu0
      %v3831 = vpop.f32.mrb[0].mxu0
      %v3832 = vadd.f32 0.0, %v3831
      %v3833 = vpop.f32.mrb[0].mxu0
      %3834 = vmatprep.mubr.bf16.mxu0 0
      %3835 = vmatmul.mubr.bf16.gmra.mrb[0].mxu0 %v3617
      %v3836 = vpop.f32.mrb[0].mxu0
      %v3837 = vadd.f32 0.0, %v3836
      %v3838 = vpop.f32.mrb[0].mxu0
      %v3839 = vpop.f32.mrb[0].mxu0
      %v3840 = vadd.f32 0.0, %v3839
      %v3841 = vpop.f32.mrb[0].mxu0
      %3842 = vmatprep.mubr.bf16.mxu0 0
      %3843 = vmatmul.mubr.bf16.gmra.mrb[0].mxu0 %v3619
      %v3844 = vpop.f32.mrb[0].mxu0
      %v3845 = vadd.f32 0.0, %v3844
      %v3846 = vpop.f32.mrb[0].mxu0
      %v3847 = vpop.f32.mrb[0].mxu0
      %v3848 = vadd.f32 0.0, %v3847
      %v3849 = vpop.f32.mrb[0].mxu0
      %3850 = vmatprep.mubr.bf16.mxu0 0
      %3851 = vmatmul.mubr.bf16.gmra.mrb[0].mxu0 %v3621
      %v3852 = vpop.f32.mrb[0].mxu0
      %v3853 = vadd.f32 0.0, %v3852
      %v3854 = vpop.f32.mrb[0].mxu0
      %v3855 = vpop.f32.mrb[0].mxu0
      %v3856 = vadd.f32 0.0, %v3855
      %v3857 = vpop.f32.mrb[0].mxu0
      %3858 = vmatprep.mubr.bf16.mxu0 0
      %3859 = vmatmul.mubr.bf16.gmra.mrb[0].mxu0 %v3623
      %v3860 = vpop.f32.mrb[0].mxu0
      %v3861 = vadd.f32 0.0, %v3860
      %v3862 = vpop.f32.mrb[0].mxu0
      %v3863 = vpop.f32.mrb[0].mxu0
      %v3864 = vadd.f32 0.0, %v3863
      %v3865 = vpop.f32.mrb[0].mxu0
      %3866 = vdwg.mxu0
      %v3867 = vadd.f32 %v3529, %v3725
      %v3868 = vadd.f32 %v3530, %v3728
      %v3869 = vadd.f32 %v3531, %v3733
      %v3870 = vadd.f32 %v3532, %v3736
      %v3871 = vadd.f32 %v3533, %v3741
      %v3872 = vadd.f32 %v3534, %v3744
      %v3873 = vadd.f32 %v3535, %v3749
      %v3874 = vadd.f32 %v3536, %v3752
      %v3875 = vadd.f32 %v3537, %v3757
      %v3876 = vadd.f32 %v3538, %v3760
      %v3877 = vadd.f32 %v3539, %v3765
      %v3878 = vadd.f32 %v3540, %v3768
      %v3879 = vadd.f32 %v3541, %v3773
      %v3880 = vadd.f32 %v3542, %v3776
      %v3881 = vadd.f32 %v3543, %v3781
      %v3882 = vadd.f32 %v3544, %v3784
      %v3883 = vadd.f32 %v3545, %v3789
      %v3884 = vadd.f32 %v3546, %v3792
      %v3885 = vadd.f32 %v3547, %v3797
      %v3886 = vadd.f32 %v3548, %v3800
      %v3887 = vadd.f32 %v3549, %v3805
      %v3888 = vadd.f32 %v3550, %v3808
      %v3889 = vadd.f32 %v3551, %v3813
      %v3890 = vadd.f32 %v3552, %v3816
      %v3891 = vadd.f32 %v3553, %v3821
      %v3892 = vadd.f32 %v3554, %v3824
      %v3893 = vadd.f32 %v3555, %v3829
      %v3894 = vadd.f32 %v3556, %v3832
      %v3895 = vadd.f32 %v3557, %v3837
      %v3896 = vadd.f32 %v3558, %v3840
      %v3897 = vadd.f32 %v3559, %v3845
      %v3898 = vadd.f32 %v3560, %v3848
      %v3899 = vadd.f32 %v3561, %v3853
      %v3900 = vadd.f32 %v3562, %v3856
      %v3901 = vadd.f32 %v3563, %v3861
      %v3902 = vadd.f32 %v3564, %v3864
      %v3903 = vld [vmem:[%s213] sm:$0x1]
      %v3905 = vlaneseq
      %v3906 = vshrl.u32 %v3905, 7
      %v3907 = vsub.s32 0, %v3906
      %v3908 = vrot.slane %v3903, %v3907
      %v3910 = vadd.f32 %v3867, %v3908
      %v3911 = vadd.f32 %v3868, %v3908
      %v3912 = vadd.f32 %v3869, %v3908
      %v3913 = vadd.f32 %v3870, %v3908
      %v3914 = vadd.f32 %v3871, %v3908
      %v3915 = vadd.f32 %v3872, %v3908
      %v3916 = vadd.f32 %v3873, %v3908
      %v3917 = vadd.f32 %v3874, %v3908
      %v3918 = vadd.f32 %v3875, %v3908
      %v3919 = vadd.f32 %v3876, %v3908
      %v3920 = vadd.f32 %v3877, %v3908
      %v3921 = vadd.f32 %v3878, %v3908
      %v3922 = vadd.f32 %v3879, %v3908
      %v3923 = vadd.f32 %v3880, %v3908
      %v3924 = vadd.f32 %v3881, %v3908
      %v3925 = vadd.f32 %v3882, %v3908
      %v3926 = vadd.f32 %v3883, %v3908
      %v3927 = vadd.f32 %v3884, %v3908
      %v3928 = vadd.f32 %v3885, %v3908
      %v3929 = vadd.f32 %v3886, %v3908
      %v3930 = vadd.f32 %v3887, %v3908
      %v3931 = vadd.f32 %v3888, %v3908
      %v3932 = vadd.f32 %v3889, %v3908
      %v3933 = vadd.f32 %v3890, %v3908
      %v3934 = vadd.f32 %v3891, %v3908
      %v3935 = vadd.f32 %v3892, %v3908
      %v3936 = vadd.f32 %v3893, %v3908
      %v3937 = vadd.f32 %v3894, %v3908
      %v3938 = vadd.f32 %v3895, %v3908
      %v3939 = vadd.f32 %v3896, %v3908
      %v3940 = vadd.f32 %v3897, %v3908
      %v3941 = vadd.f32 %v3898, %v3908
      %v3942 = vadd.f32 %v3899, %v3908
      %v3943 = vadd.f32 %v3900, %v3908
      %v3944 = vadd.f32 %v3901, %v3908
      %v3945 = vadd.f32 %v3902, %v3908
      %v3946 = vmax.f32 %v3910, 0.0
      %v3947 = vmax.f32 %v3911, 0.0
      %v3948 = vmax.f32 %v3912, 0.0
      %v3949 = vmax.f32 %v3913, 0.0
      %v3950 = vmax.f32 %v3914, 0.0
      %v3951 = vmax.f32 %v3915, 0.0
      %v3952 = vmax.f32 %v3916, 0.0
      %v3953 = vmax.f32 %v3917, 0.0
      %v3954 = vmax.f32 %v3918, 0.0
      %v3955 = vmax.f32 %v3919, 0.0
      %v3956 = vmax.f32 %v3920, 0.0
      %v3957 = vmax.f32 %v3921, 0.0
      %v3958 = vmax.f32 %v3922, 0.0
      %v3959 = vmax.f32 %v3923, 0.0
      %v3960 = vmax.f32 %v3924, 0.0
      %v3961 = vmax.f32 %v3925, 0.0
      %v3962 = vmax.f32 %v3926, 0.0
      %v3963 = vmax.f32 %v3927, 0.0
      %v3964 = vmax.f32 %v3928, 0.0
      %v3965 = vmax.f32 %v3929, 0.0
      %v3966 = vmax.f32 %v3930, 0.0
      %v3967 = vmax.f32 %v3931, 0.0
      %v3968 = vmax.f32 %v3932, 0.0
      %v3969 = vmax.f32 %v3933, 0.0
      %v3970 = vmax.f32 %v3934, 0.0
      %v3971 = vmax.f32 %v3935, 0.0
      %v3972 = vmax.f32 %v3936, 0.0
      %v3973 = vmax.f32 %v3937, 0.0
      %v3974 = vmax.f32 %v3938, 0.0
      %v3975 = vmax.f32 %v3939, 0.0
      %v3976 = vmax.f32 %v3940, 0.0
      %v3977 = vmax.f32 %v3941, 0.0
      %v3978 = vmax.f32 %v3942, 0.0
      %v3979 = vmax.f32 %v3943, 0.0
      %v3980 = vmax.f32 %v3944, 0.0
      %v3981 = vmax.f32 %v3945, 0.0
      %v3982 = vpack.c.bf16 %v3947, %v3946
      %v3983 = vpack.c.bf16 %v3949, %v3948
      %v3984 = vpack.c.bf16 %v3951, %v3950
      %v3985 = vpack.c.bf16 %v3953, %v3952
      %v3986 = vpack.c.bf16 %v3955, %v3954
      %v3987 = vpack.c.bf16 %v3957, %v3956
      %v3988 = vpack.c.bf16 %v3959, %v3958
      %v3989 = vpack.c.bf16 %v3961, %v3960
      %v3990 = vpack.c.bf16 %v3963, %v3962
      %v3991 = vpack.c.bf16 %v3965, %v3964
      %v3992 = vpack.c.bf16 %v3967, %v3966
      %v3993 = vpack.c.bf16 %v3969, %v3968
      %v3994 = vpack.c.bf16 %v3971, %v3970
      %v3995 = vpack.c.bf16 %v3973, %v3972
      %v3996 = vpack.c.bf16 %v3975, %v3974
      %v3997 = vpack.c.bf16 %v3977, %v3976
      %v3998 = vpack.c.bf16 %v3979, %v3978
      %v3999 = vpack.c.bf16 %v3981, %v3980
      %v4018 = vunpack.c.l.b16 %v3982
      %v4019 = vunpack.c.h.b16 %v3982
      %v4020 = vunpack.c.l.b16 %v3983
      %v4021 = vunpack.c.h.b16 %v3983
      %v4022 = vunpack.c.l.b16 %v3984
      %v4023 = vunpack.c.h.b16 %v3984
      %v4024 = vunpack.c.l.b16 %v3985
      %v4025 = vunpack.c.h.b16 %v3985
      %v4026 = vunpack.c.l.b16 %v3986
      %v4027 = vunpack.c.h.b16 %v3986
      %v4028 = vunpack.c.l.b16 %v3987
      %v4029 = vunpack.c.h.b16 %v3987
      %v4030 = vunpack.c.l.b16 %v3988
      %v4031 = vunpack.c.h.b16 %v3988
      %v4032 = vunpack.c.l.b16 %v3989
      %v4033 = vunpack.c.h.b16 %v3989
      %v4034 = vunpack.c.l.b16 %v3990
      %v4035 = vunpack.c.h.b16 %v3990
      %v4036 = vunpack.c.l.b16 %v3991
      %v4037 = vunpack.c.h.b16 %v3991
      %v4038 = vunpack.c.l.b16 %v3992
      %v4039 = vunpack.c.h.b16 %v3992
      %v4040 = vunpack.c.l.b16 %v3993
      %v4041 = vunpack.c.h.b16 %v3993
      %v4042 = vunpack.c.l.b16 %v3994
      %v4043 = vunpack.c.h.b16 %v3994
      %v4044 = vunpack.c.l.b16 %v3995
      %v4045 = vunpack.c.h.b16 %v3995
      %v4046 = vunpack.c.l.b16 %v3996
      %v4047 = vunpack.c.h.b16 %v3996
      %v4048 = vunpack.c.l.b16 %v3997
      %v4049 = vunpack.c.h.b16 %v3997
      %v4050 = vunpack.c.l.b16 %v3998
      %v4051 = vunpack.c.h.b16 %v3998
      %v4052 = vunpack.c.l.b16 %v3999
      %v4053 = vunpack.c.h.b16 %v3999
      %v4054 = vpack.c.b16 %v4018, %v4018
      %v4055 = vpack.c.b16 %v4019, %v4019
      %v4056 = vpack.c.b16 %v4020, %v4020
      %v4057 = vpack.c.b16 %v4021, %v4021
      %v4058 = vpack.c.b16 %v4022, %v4022
      %v4059 = vpack.c.b16 %v4023, %v4023
      %v4060 = vpack.c.b16 %v4024, %v4024
      %v4061 = vpack.c.b16 %v4025, %v4025
      %v4062 = vpack.c.b16 %v4026, %v4026
      %v4063 = vpack.c.b16 %v4027, %v4027
      %v4064 = vpack.c.b16 %v4028, %v4028
      %v4065 = vpack.c.b16 %v4029, %v4029
      %v4066 = vpack.c.b16 %v4030, %v4030
      %v4067 = vpack.c.b16 %v4031, %v4031
      %v4068 = vpack.c.b16 %v4032, %v4032
      %v4069 = vpack.c.b16 %v4033, %v4033
      %v4070 = vpack.c.b16 %v4034, %v4034
      %v4071 = vpack.c.b16 %v4035, %v4035
      %v4072 = vpack.c.b16 %v4036, %v4036
      %v4073 = vpack.c.b16 %v4037, %v4037
      %v4074 = vpack.c.b16 %v4038, %v4038
      %v4075 = vpack.c.b16 %v4039, %v4039
      %v4076 = vpack.c.b16 %v4040, %v4040
      %v4077 = vpack.c.b16 %v4041, %v4041
      %v4078 = vpack.c.b16 %v4042, %v4042
      %v4079 = vpack.c.b16 %v4043, %v4043
      %v4080 = vpack.c.b16 %v4044, %v4044
      %v4081 = vpack.c.b16 %v4045, %v4045
      %v4082 = vpack.c.b16 %v4046, %v4046
      %v4083 = vpack.c.b16 %v4047, %v4047
      %v4084 = vpack.c.b16 %v4048, %v4048
      %v4085 = vpack.c.b16 %v4049, %v4049
      %v4086 = vpack.c.b16 %v4050, %v4050
      %v4087 = vpack.c.b16 %v4051, %v4051
      %v4088 = vpack.c.b16 %v4052, %v4052
      %v4089 = vpack.c.b16 %v4053, %v4053
      %4126 = vst [vmem:[%s221] sm:$0xf] %v4054
      %4127 = vst [vmem:[%s221 + $0x4] sm:$0xf] %v4055
      %4128 = vst [vmem:[%s221 + $0x8] sm:$0xf] %v4056
      %4129 = vst [vmem:[%s221 + $0xc] sm:$0xf] %v4057
      %4130 = vst [vmem:[%s221 + $0x10] sm:$0xf] %v4058
      %4131 = vst [vmem:[%s221 + $0x14] sm:$0xf] %v4059
      %4132 = vst [vmem:[%s221 + $0x18] sm:$0xf] %v4060
      %4133 = vst [vmem:[%s221 + $0x1c] sm:$0xf] %v4061
      %4134 = vst [vmem:[%s221 + $0x20] sm:$0xf] %v4062
      %4135 = vst [vmem:[%s221 + $0x24] sm:$0xf] %v4063
      %4136 = vst [vmem:[%s221 + $0x28] sm:$0xf] %v4064
      %4137 = vst [vmem:[%s221 + $0x2c] sm:$0xf] %v4065
      %4138 = vst [vmem:[%s221 + $0x30] sm:$0xf] %v4066
      %4139 = vst [vmem:[%s221 + $0x34] sm:$0xf] %v4067
      %4140 = vst [vmem:[%s221 + $0x38] sm:$0xf] %v4068
      %4141 = vst [vmem:[%s221 + $0x3c] sm:$0xf] %v4069
      %4142 = vst [vmem:[%s221 + $0x40] sm:$0xf] %v4070
      %4143 = vst [vmem:[%s221 + $0x44] sm:$0xf] %v4071
      %4144 = vst [vmem:[%s221 + $0x48] sm:$0xf] %v4072
      %4145 = vst [vmem:[%s221 + $0x4c] sm:$0xf] %v4073
      %4146 = vst [vmem:[%s221 + $0x50] sm:$0xf] %v4074
      %4147 = vst [vmem:[%s221 + $0x54] sm:$0xf] %v4075
      %4148 = vst [vmem:[%s221 + $0x58] sm:$0xf] %v4076
      %4149 = vst [vmem:[%s221 + $0x5c] sm:$0xf] %v4077
      %4150 = vst [vmem:[%s221 + $0x60] sm:$0xf] %v4078
      %4151 = vst [vmem:[%s221 + $0x64] sm:$0xf] %v4079
      %4152 = vst [vmem:[%s221 + $0x68] sm:$0xf] %v4080
      %4153 = vst [vmem:[%s221 + $0x6c] sm:$0xf] %v4081
      %4154 = vst [vmem:[%s221 + $0x70] sm:$0xf] %v4082
      %4155 = vst [vmem:[%s221 + $0x74] sm:$0xf] %v4083
      %4156 = vst [vmem:[%s221 + $0x78] sm:$0xf] %v4084
      %4157 = vst [vmem:[%s221 + $0x7c] sm:$0xf] %v4085
      %4158 = vst [vmem:[%s221 + $0x80] sm:$0xf] %v4086
      %4159 = vst [vmem:[%s221 + $0x84] sm:$0xf] %v4087
      %4160 = vst [vmem:[%s221 + $0x88] sm:$0xf] %v4088
      %4161 = vst [vmem:[%s221 + $0x8c] sm:$0xf] %v4089
      %p4162 = scmp.lt.s32.totalorder %s18, 1
      %s4163 = scalar_select %p4162, %s18, 1
      %p4164 = scmp.lt.s32.totalorder %s19, 0
      %s4165 = scalar_select %p4164, %s19, 0
      %s4166 = smul.addr %s4163, 36
      %s4167 = sadd.s32 %s4165, %s4166
      %s4168 = smul.addr %s4167, 4
      %s4169 = scalar_lea.vmem %s3, %s4168
      // Predicated region
      $region33: #{_forward.4} parent=31 // pred_check
        %p4170 = pneg %p124
      $region34: #{_forward.4} parent=31 // pred_check_branch
        %4172 = sbr.rel (%p4170) target = $region36
      $region35: #{_forward.4} parent=31 // pred_region
        _
      $region36: #{_forward.4} parent=31 // pred_fallthru
        _
    $region32: #{_forward.4} parent=5 // pred_fallthru
      _
    %p4173 = scmp.le.s32.totalorder 2, %s9
    // Predicated region
    $region37: #{_forward.4} parent=5 // pred_check
      %p4174 = pneg %p4173
    $region38: #{_forward.4} parent=5 // pred_check_branch
      %4176 = sbr.rel (%p4174) target = $region40
    $region39: #{_forward.4} parent=5 // pred_region
      %s4177 = ssub.s32 %s9, 2
      // Predicated region
      $region41: #{_forward.4} parent=39 // pred_check
        %p4178 = pneg %p130
      $region42: #{_forward.4} parent=39 // pred_check_branch
        %4180 = sbr.rel (%p4178) target = $region44
      $region43: #{_forward.4} parent=39 // pred_region
        %p4181 = scmp.lt.s32.totalorder %s20, 1
        %s4182 = scalar_select %p4181, %s20, 1
        %p4183 = scmp.lt.s32.totalorder %s21, 0
        %s4184 = scalar_select %p4183, %s21, 0
        %s4185 = smul.addr %s4182, 36
        %s4186 = sadd.s32 %s4184, %s4185
        %s4187 = smul.addr %s4186, 4
        %s4188 = scalar_lea.vmem %s3, %s4187
      $region44: #{_forward.4} parent=39 // pred_fallthru
        _
    $region40: #{_forward.4} parent=5 // pred_fallthru
      _
  $region6: #{_forward.4} parent=0 // loop_footer
    %s13 = sadd.s32 1, %s9
  $region7: #{_forward.4} parent=0 // loop_footer_branch
    %8 = sbr.rel target = $region3
  $region8: #{_forward.4} parent=0 // loop_exit
    _

</llo_original>
